<compile_context>
chip_gen: v5e
topology: v5e:2x2
jax: 0.10.0
libtpu: 0.0.40
codegen_flags: <defaults>
</compile_context>

<pallas_src>
import jax
import jax.numpy as jnp
from jax.experimental import pallas as pl
from jax.experimental.pallas import tpu as pltpu

NUM_HEADS = 8
LN_EPS = 1e-5
CLAMP = 100000.0


# ---------------------------------------------------------------------------
# In-kernel helpers (pure jnp, traced into the kernel body)
# ---------------------------------------------------------------------------
def _layernorm(x, gamma, beta):
    mu = jnp.mean(x, axis=-1, keepdims=True)
    var = jnp.mean((x - mu) ** 2, axis=-1, keepdims=True)
    return (x - mu) * jax.lax.rsqrt(var + LN_EPS) * gamma + beta


def _silu(x):
    return x * jax.nn.sigmoid(x)


def _dot(a, b):
    return jnp.dot(a, b, preferred_element_type=jnp.float32)


# ---------------------------------------------------------------------------
# The kernel: TitansMAC forward for one block of BB batch elements
# ---------------------------------------------------------------------------
def titans_mac_kernel(
    scal_ref,                       # SMEM (3,): theta, eta, alpha
    x_ref, pm_ref, ps_ref,          # (BB, N, D) each
    m_w1_ref, m_b1_ref, m_g1_ref, m_be1_ref,    # memory net layer 1
    m_w2_ref, m_b2_ref, m_g2_ref, m_be2_ref,    # memory net layer 2
    mq_w_ref, mq_b_ref,             # memory_query linear
    pers_ref,                       # persistent memory (P, D)
    n1_g_ref, n1_b_ref,             # norm1 (1, D)
    qkv_w_ref, qkv_b_ref,           # (D, 3D), (1, 3D)  (q columns pre-scaled)
    proj_w_ref, proj_b_ref,         # (H, hd, D), (1, D)
    n2_g_ref, n2_b_ref,             # norm2 (1, D)
    f_w1_ref, f_b1_ref, f_w2_ref, f_b2_ref,     # ffn
    out_ref, mem_ref, sur_ref,      # outputs (BB, L, D), (BB, N, D), (BB, N, D)
    ctx_ref,                        # VMEM scratch (BB, L, D)
):
    theta = scal_ref[0]
    eta = scal_ref[1]
    alpha = scal_ref[2]

    BB, N, D = x_ref.shape
    P = pers_ref.shape[0]
    H = NUM_HEADS
    hd = D // H
    L = P + 2 * N
    R = BB * N                      # token rows in the memory path
    RL = BB * L                     # token rows in the context path
    HB = H * BB                     # batched-attention batch size

    x2 = x_ref[...].reshape(R, D)

    # ---- LongTermMemory: (Linear -> LN -> SiLU) x 2, all rows at once ----
    h = _silu(_layernorm(_dot(x2, m_w1_ref[...]) + m_b1_ref[...],
                         m_g1_ref[...], m_be1_ref[...]))
    h = _silu(_layernorm(_dot(h, m_w2_ref[...]) + m_b2_ref[...],
                         m_g2_ref[...], m_be2_ref[...]))

    prev_mem = pm_ref[...].reshape(R, D)
    prev_sur = ps_ref[...].reshape(R, D)
    momentary = h - prev_mem
    surprise = eta * prev_sur - theta * momentary
    memory = (1.0 - alpha) * prev_mem + surprise
    memory = jnp.clip(memory, -CLAMP, CLAMP)
    surprise = jnp.clip(surprise, -CLAMP, CLAMP)
    mem_ref[...] = memory.reshape(BB, N, D)
    sur_ref[...] = surprise.reshape(BB, N, D)
    # TODO(synk): PyTorch mutates alpha.data.clamp_(0.001, 0.1) post-forward; that
    # in-place parameter update has no effect on this forward's outputs.

    # ---- context assembly in VMEM scratch (no jnp.concatenate) ----
    mq = _dot(x2, mq_w_ref[...]) + mq_b_ref[...]
    mem_ctx = memory * mq
    ctx_ref[:, 0:P, :] = jnp.broadcast_to(pers_ref[...], (BB, P, D))
    ctx_ref[:, P:P + N, :] = mem_ctx.reshape(BB, N, D)
    ctx_ref[:, P + N:L, :] = x_ref[...]
    context = ctx_ref[...].reshape(RL, D)

    # ---- multi-head attention: all (batch, head) pairs batched ----
    n1 = _layernorm(context, n1_g_ref[...], n1_b_ref[...])
    qkv = _dot(n1, qkv_w_ref[...]) + qkv_b_ref[...]      # (RL, 3D)

    def split_heads(mat):
        # (RL, H*hd) -> (HB, L, hd); stacked index = h * BB + b
        heads = [mat[:, i * hd:(i + 1) * hd] for i in range(H)]
        return jnp.stack(heads, axis=0).reshape(HB, L, hd)

    qh = split_heads(qkv[:, 0:D])          # attention scale already folded in
    kh = split_heads(qkv[:, D:2 * D])
    vh = split_heads(qkv[:, 2 * D:3 * D])

    s = jnp.einsum("bqd,bkd->bqk", qh, kh,
                   preferred_element_type=jnp.float32)   # (HB, L, L)
    s_max = jnp.max(s, axis=-1, keepdims=True)
    e = jnp.exp(s - s_max)
    p = e * pl.reciprocal(jnp.sum(e, axis=-1, keepdims=True), approx=True)
    o = jnp.einsum("bqk,bkd->bqd", p, vh,
                   preferred_element_type=jnp.float32)   # (HB, L, hd)

    # merge heads via per-head blocks of the output projection (no lane concat)
    def head_out(i):
        return o[i * BB:(i + 1) * BB].reshape(RL, hd)

    acc = _dot(head_out(0), proj_w_ref[0])
    for i in range(1, H):
        acc = acc + _dot(head_out(i), proj_w_ref[i])
    attended = acc + proj_b_ref[...]

    xc = context + attended

    # ---- FFN ----
    n2 = _layernorm(xc, n2_g_ref[...], n2_b_ref[...])
    ffn_h = _silu(_dot(n2, f_w1_ref[...]) + f_b1_ref[...])
    out = xc + _dot(ffn_h, f_w2_ref[...]) + f_b2_ref[...]
    out_ref[...] = out.reshape(BB, L, D)


# ---------------------------------------------------------------------------
# Wrapper: parameter plumbing + pallas_call
# ---------------------------------------------------------------------------
def titans_mac_forward(x, params, prev_memory=None, prev_surprise=None,
                       batch_block=None):
    B, N, D = x.shape
    H = NUM_HEADS
    assert D % H == 0
    hd = D // H
    if prev_memory is None:
        prev_memory = jnp.zeros_like(x)
    if prev_surprise is None:
        prev_surprise = jnp.zeros_like(x)
    if batch_block is None:
        # Fold the whole batch into one grid step (best on single-TC v5e/v6e).
        # On v7x (2 TensorCores) pass batch_block = B // 2 so both cores get work.
        batch_block = B
    assert B % batch_block == 0
    BB = batch_block

    P = params["persistent"].shape[0]
    L = P + 2 * N
    f32 = jnp.float32

    scal = jnp.array([params["theta"], params["eta"], params["alpha"]], dtype=f32)

    def row(v):     # 1-D -> (1, n): clean sublane broadcast inside the kernel
        return jnp.asarray(v, f32).reshape(1, -1)

    def mat(v):
        return jnp.asarray(v, f32)

    # Fold the attention scale into the q columns of the qkv projection.
    scale = hd ** (-0.5) + 1e-8
    qkv_w = mat(params["qkv_w"]).at[:, :D].multiply(scale)
    qkv_b = mat(params["qkv_b"]).at[:D].multiply(scale)

    # Per-head blocks of the (pre-transposed) output projection: (D, D) -> (H, hd, D).
    proj_w = mat(params["proj_w"]).reshape(H, hd, D)

    weights = [
        mat(params["m_w1"]), row(params["m_b1"]), row(params["m_g1"]), row(params["m_be1"]),
        mat(params["m_w2"]), row(params["m_b2"]), row(params["m_g2"]), row(params["m_be2"]),
        mat(params["mq_w"]), row(params["mq_b"]),
        mat(params["persistent"]),
        row(params["n1_g"]), row(params["n1_b"]),
        qkv_w, row(qkv_b),
        proj_w, row(params["proj_b"]),
        row(params["n2_g"]), row(params["n2_b"]),
        mat(params["f_w1"]), row(params["f_b1"]), mat(params["f_w2"]), row(params["f_b2"]),
    ]

    def seq_spec(n):
        return pl.BlockSpec((BB, n, D), lambda g: (g, 0, 0))

    def weight_spec(w):
        nd = w.ndim
        return pl.BlockSpec(w.shape, lambda g, nd=nd: (0,) * nd)

    in_specs = (
        [pl.BlockSpec(memory_space=pltpu.MemorySpace.SMEM)]   # theta/eta/alpha
        + [seq_spec(N), seq_spec(N), seq_spec(N)]             # x, prev_mem, prev_sur
        + [weight_spec(w) for w in weights]
    )
    out_specs = (seq_spec(L), seq_spec(N), seq_spec(N))
    out_shape = (
        jax.ShapeDtypeStruct((B, L, D), f32),
        jax.ShapeDtypeStruct((B, N, D), f32),
        jax.ShapeDtypeStruct((B, N, D), f32),
    )

    # Advisory cost estimate so XLA schedules this micro-kernel sensibly.
    R, RL, HB = BB * N, BB * L, H * BB
    steps = B // BB
    flops_per_step = 2 * (
        3 * R * D * D                # two memory-net layers + memory_query
        + RL * D * 3 * D             # qkv projection
        + 2 * HB * L * L * hd        # scores + attn @ v
        + RL * D * D                 # output projection (per-head blocks)
        + 2 * RL * D * 4 * D         # ffn
    )
    trans_per_step = 2 * R * D + RL * 4 * D + HB * L * L + HB * L
    weight_bytes = sum(int(w.size) * 4 for w in weights)
    bytes_accessed = (4 * (3 * B * N * D + B * L * D + 2 * B * N * D)
                      + steps * weight_bytes + 12)
    cost = pl.CostEstimate(flops=steps * flops_per_step,
                           transcendentals=steps * trans_per_step,
                           bytes_accessed=bytes_accessed)

    return pl.pallas_call(
        titans_mac_kernel,
        grid=(B // BB,),
        in_specs=in_specs,
        out_specs=out_specs,
        out_shape=out_shape,
        scratch_shapes=[pltpu.VMEM((BB, L, D), f32)],
        compiler_params=pltpu.CompilerParams(
            dimension_semantics=("parallel",)),
        cost_estimate=cost,
    )(scal, x, prev_memory, prev_surprise, *weights)


# ---------------------------------------------------------------------------
# Pure-JAX reference (mirrors the PyTorch module semantics)
# ---------------------------------------------------------------------------
def titans_mac_reference(x, p, prev_memory=None, prev_surprise=None):
    B, N, D = x.shape
    H, hd = NUM_HEADS, D // NUM_HEADS
    if prev_memory is None:
        prev_memory = jnp.zeros_like(x)
    if prev_surprise is None:
        prev_surprise = jnp.zeros_like(x)

    def ln(v, g, b):
        mu = jnp.mean(v, -1, keepdims=True)
        var = jnp.mean((v - mu) ** 2, -1, keepdims=True)
        return (v - mu) / jnp.sqrt(var + LN_EPS) * g + b

    silu = lambda v: v * jax.nn.sigmoid(v)

    h = silu(ln(x @ p["m_w1"] + p["m_b1"], p["m_g1"], p["m_be1"]))
    h = silu(ln(h @ p["m_w2"] + p["m_b2"], p["m_g2"], p["m_be2"]))
    mom = h - prev_memory
    surprise = p["eta"] * prev_surprise - p["theta"] * mom
    memory = (1.0 - p["alpha"]) * prev_memory + surprise
    memory = jnp.clip(memory, -CLAMP, CLAMP)
    surprise = jnp.clip(surprise, -CLAMP, CLAMP)

    mq = x @ p["mq_w"] + p["mq_b"]
    mem_ctx = memory * mq
    persistent = jnp.broadcast_to(p["persistent"], (B,) + p["persistent"].shape)
    context = jnp.concatenate([persistent, mem_ctx, x], axis=1)
    L = context.shape[1]

    n1 = ln(context, p["n1_g"], p["n1_b"])
    qkv = n1 @ p["qkv_w"] + p["qkv_b"]
    qkv = qkv.reshape(B, L, 3, H, hd).transpose(2, 0, 3, 1, 4)
    q, k, v = qkv[0], qkv[1], qkv[2]
    scale = hd ** (-0.5) + 1e-8
    attn = jax.nn.softmax(jnp.einsum("bhqd,bhkd->bhqk", q, k) * scale, axis=-1)
    att = jnp.einsum("bhqk,bhkd->bhqd", attn, v).transpose(0, 2, 1, 3).reshape(B, L, D)
    attended = att @ p["proj_w"] + p["proj_b"]

    xc = context + attended
    n2 = ln(xc, p["n2_g"], p["n2_b"])
    out = xc + (silu(n2 @ p["f_w1"] + p["f_b1"]) @ p["f_w2"] + p["f_b2"])
    return out, memory, surprise


# ---------------------------------------------------------------------------
# Deterministic parameter init
# ---------------------------------------------------------------------------
def init_params(key, dim):
    ks = jax.random.split(key, 16)
    s = 0.05
    f32 = jnp.float32
    return {
        # LongTermMemory (weights already transposed to (in, out))
        "m_w1": jax.random.normal(ks[0], (dim, dim), f32) * s,
        "m_b1": jnp.zeros((dim,), f32),
        "m_g1": jnp.ones((dim,), f32),
        "m_be1": jnp.zeros((dim,), f32),
        "m_w2": jax.random.normal(ks[1], (dim, dim), f32) * s,
        "m_b2": jnp.zeros((dim,), f32),
        "m_g2": jnp.ones((dim,), f32),
        "m_be2": jnp.zeros((dim,), f32),
        "theta": 1.0, "eta": 1.0, "alpha": 1.0,
        # memory_query
        "mq_w": jax.random.normal(ks[2], (dim, dim), f32) * s,
        "mq_b": jax.random.normal(ks[3], (dim,), f32) * s,
        # persistent memory (8, dim)
        "persistent": jax.random.normal(ks[4], (8, dim), f32),
        # norms
        "n1_g": jnp.ones((dim,), f32), "n1_b": jnp.zeros((dim,), f32),
        "n2_g": jnp.ones((dim,), f32), "n2_b": jnp.zeros((dim,), f32),
        # attention
        "qkv_w": jax.random.normal(ks[5], (dim, 3 * dim), f32) * s,
        "qkv_b": jax.random.normal(ks[6], (3 * dim,), f32) * s,
        "proj_w": jax.random.normal(ks[7], (dim, dim), f32) * s,
        "proj_b": jax.random.normal(ks[8], (dim,), f32) * s,
        # ffn
        "f_w1": jax.random.normal(ks[9], (dim, 4 * dim), f32) * s,
        "f_b1": jax.random.normal(ks[10], (4 * dim,), f32) * s,
        "f_w2": jax.random.normal(ks[11], (4 * dim, dim), f32) * s,
        "f_b2": jax.random.normal(ks[12], (dim,), f32) * s,
    }


if __name__ == "__main__":
    B, N, dim = 2, 8, 32          # seq=8, dim=32, num_heads=8 -> head_dim=4
    key = jax.random.PRNGKey(0)
    kx, kp = jax.random.split(key)
    x = jax.random.normal(kx, (B, N, dim), jnp.float32)
    params = init_params(kp, dim)

    out, memory, surprise = titans_mac_forward(x, params)
    jax.block_until_ready((out, memory, surprise))

    ref_out, ref_mem, ref_sur = titans_mac_reference(x, params)
    assert jnp.allclose(out, ref_out, atol=2e-3, rtol=2e-3)
    assert jnp.allclose(memory, ref_mem, atol=2e-3, rtol=2e-3)
    assert jnp.allclose(surprise, ref_sur, atol=2e-3, rtol=2e-3)

    print("KERNEL_OK")
</pallas_src>

<mosaic_0001>
module attributes {stable_mosaic.version = 11 : i64} {
  func.func @titans_mac_kernel(%arg0: i32, %arg1: memref<3xf32, #tpu.memory_space<smem>>, %arg2: memref<2x8x32xf32, #tpu.memory_space<vmem>>, %arg3: memref<2x8x32xf32, #tpu.memory_space<vmem>>, %arg4: memref<2x8x32xf32, #tpu.memory_space<vmem>>, %arg5: memref<32x32xf32, #tpu.memory_space<vmem>>, %arg6: memref<1x32xf32, #tpu.memory_space<vmem>>, %arg7: memref<1x32xf32, #tpu.memory_space<vmem>>, %arg8: memref<1x32xf32, #tpu.memory_space<vmem>>, %arg9: memref<32x32xf32, #tpu.memory_space<vmem>>, %arg10: memref<1x32xf32, #tpu.memory_space<vmem>>, %arg11: memref<1x32xf32, #tpu.memory_space<vmem>>, %arg12: memref<1x32xf32, #tpu.memory_space<vmem>>, %arg13: memref<32x32xf32, #tpu.memory_space<vmem>>, %arg14: memref<1x32xf32, #tpu.memory_space<vmem>>, %arg15: memref<8x32xf32, #tpu.memory_space<vmem>>, %arg16: memref<1x32xf32, #tpu.memory_space<vmem>>, %arg17: memref<1x32xf32, #tpu.memory_space<vmem>>, %arg18: memref<32x96xf32, #tpu.memory_space<vmem>>, %arg19: memref<1x96xf32, #tpu.memory_space<vmem>>, %arg20: memref<8x4x32xf32, #tpu.memory_space<vmem>>, %arg21: memref<1x32xf32, #tpu.memory_space<vmem>>, %arg22: memref<1x32xf32, #tpu.memory_space<vmem>>, %arg23: memref<1x32xf32, #tpu.memory_space<vmem>>, %arg24: memref<32x128xf32, #tpu.memory_space<vmem>>, %arg25: memref<1x128xf32, #tpu.memory_space<vmem>>, %arg26: memref<128x32xf32, #tpu.memory_space<vmem>>, %arg27: memref<1x32xf32, #tpu.memory_space<vmem>>, %arg28: memref<2x24x32xf32, #tpu.memory_space<vmem>>, %arg29: memref<2x8x32xf32, #tpu.memory_space<vmem>>, %arg30: memref<2x8x32xf32, #tpu.memory_space<vmem>>, %arg31: memref<2x24x32xf32, #tpu.memory_space<vmem>>) attributes {dimension_semantics = [#tpu.dimension_semantics<parallel>], iteration_bounds = array<i64: 1>, scalar_prefetch = 0 : i64, scratch_operands = 1 : i64, tpu.core_type = #tpu.core_type<tc>, window_params = [{transform_indices = @transform_0, window_bounds = array<i64: 3>}, {transform_indices = @transform_1, window_bounds = array<i64: 2, 8, 32>}, {transform_indices = @transform_2, window_bounds = array<i64: 2, 8, 32>}, {transform_indices = @transform_3, window_bounds = array<i64: 2, 8, 32>}, {pipeline_mode = #tpu.pipeline_mode<synchronous>, transform_indices = @transform_4, window_bounds = array<i64: 32, 32>}, {pipeline_mode = #tpu.pipeline_mode<synchronous>, transform_indices = @transform_5, window_bounds = array<i64: 1, 32>}, {pipeline_mode = #tpu.pipeline_mode<synchronous>, transform_indices = @transform_6, window_bounds = array<i64: 1, 32>}, {pipeline_mode = #tpu.pipeline_mode<synchronous>, transform_indices = @transform_7, window_bounds = array<i64: 1, 32>}, {pipeline_mode = #tpu.pipeline_mode<synchronous>, transform_indices = @transform_8, window_bounds = array<i64: 32, 32>}, {pipeline_mode = #tpu.pipeline_mode<synchronous>, transform_indices = @transform_9, window_bounds = array<i64: 1, 32>}, {pipeline_mode = #tpu.pipeline_mode<synchronous>, transform_indices = @transform_10, window_bounds = array<i64: 1, 32>}, {pipeline_mode = #tpu.pipeline_mode<synchronous>, transform_indices = @transform_11, window_bounds = array<i64: 1, 32>}, {pipeline_mode = #tpu.pipeline_mode<synchronous>, transform_indices = @transform_12, window_bounds = array<i64: 32, 32>}, {pipeline_mode = #tpu.pipeline_mode<synchronous>, transform_indices = @transform_13, window_bounds = array<i64: 1, 32>}, {pipeline_mode = #tpu.pipeline_mode<synchronous>, transform_indices = @transform_14, window_bounds = array<i64: 8, 32>}, {pipeline_mode = #tpu.pipeline_mode<synchronous>, transform_indices = @transform_15, window_bounds = array<i64: 1, 32>}, {pipeline_mode = #tpu.pipeline_mode<synchronous>, transform_indices = @transform_16, window_bounds = array<i64: 1, 32>}, {pipeline_mode = #tpu.pipeline_mode<synchronous>, transform_indices = @transform_17, window_bounds = array<i64: 32, 96>}, {pipeline_mode = #tpu.pipeline_mode<synchronous>, transform_indices = @transform_18, window_bounds = array<i64: 1, 96>}, {pipeline_mode = #tpu.pipeline_mode<synchronous>, transform_indices = @transform_19, window_bounds = array<i64: 8, 4, 32>}, {pipeline_mode = #tpu.pipeline_mode<synchronous>, transform_indices = @transform_20, window_bounds = array<i64: 1, 32>}, {pipeline_mode = #tpu.pipeline_mode<synchronous>, transform_indices = @transform_21, window_bounds = array<i64: 1, 32>}, {pipeline_mode = #tpu.pipeline_mode<synchronous>, transform_indices = @transform_22, window_bounds = array<i64: 1, 32>}, {pipeline_mode = #tpu.pipeline_mode<synchronous>, transform_indices = @transform_23, window_bounds = array<i64: 32, 128>}, {pipeline_mode = #tpu.pipeline_mode<synchronous>, transform_indices = @transform_24, window_bounds = array<i64: 1, 128>}, {pipeline_mode = #tpu.pipeline_mode<synchronous>, transform_indices = @transform_25, window_bounds = array<i64: 128, 32>}, {pipeline_mode = #tpu.pipeline_mode<synchronous>, transform_indices = @transform_26, window_bounds = array<i64: 1, 32>}, {transform_indices = @transform_27, window_bounds = array<i64: 2, 24, 32>}, {transform_indices = @transform_28, window_bounds = array<i64: 2, 8, 32>}, {transform_indices = @transform_29, window_bounds = array<i64: 2, 8, 32>}]} {
    %c0 = arith.constant 0 : index
    %0 = memref.load %arg1[%c0] : memref<3xf32, #tpu.memory_space<smem>>
    %c1 = arith.constant 1 : index
    %1 = memref.load %arg1[%c1] : memref<3xf32, #tpu.memory_space<smem>>
    %c2 = arith.constant 2 : index
    %2 = memref.load %arg1[%c2] : memref<3xf32, #tpu.memory_space<smem>>
    %c0_0 = arith.constant 0 : index
    %c0_1 = arith.constant 0 : index
    %c0_2 = arith.constant 0 : index
    %3 = vector.load %arg2[%c0_0, %c0_1, %c0_2] : memref<2x8x32xf32, #tpu.memory_space<vmem>>, vector<2x8x32xf32>
    %4 = vector.shape_cast %3 : vector<2x8x32xf32> to vector<16x32xf32>
    %c0_3 = arith.constant 0 : index
    %c0_4 = arith.constant 0 : index
    %5 = vector.load %arg5[%c0_3, %c0_4] : memref<32x32xf32, #tpu.memory_space<vmem>>, vector<32x32xf32>
    %cst = arith.constant dense<0.000000e+00> : vector<16x32xf32>
    %6 = tpu.matmul %4, %5, %cst {dimension_numbers = #tpu.dot_dimension_numbers<[1], [0], [0], [1], [0, 0, 1, 1], [], []>} : vector<16x32xf32>, vector<32x32xf32>, vector<16x32xf32> -> vector<16x32xf32>
    %c0_5 = arith.constant 0 : index
    %c0_6 = arith.constant 0 : index
    %7 = vector.load %arg6[%c0_5, %c0_6] : memref<1x32xf32, #tpu.memory_space<vmem>>, vector<1x32xf32>
    %8 = vector.broadcast %7 : vector<1x32xf32> to vector<16x32xf32>
    %9 = arith.addf %6, %8 : vector<16x32xf32>
    %c0_7 = arith.constant 0 : index
    %c0_8 = arith.constant 0 : index
    %10 = vector.load %arg7[%c0_7, %c0_8] : memref<1x32xf32, #tpu.memory_space<vmem>>, vector<1x32xf32>
    %c0_9 = arith.constant 0 : index
    %c0_10 = arith.constant 0 : index
    %11 = vector.load %arg8[%c0_9, %c0_10] : memref<1x32xf32, #tpu.memory_space<vmem>>, vector<1x32xf32>
    %cst_11 = arith.constant dense<0.000000e+00> : vector<16xf32>
    %12 = vector.multi_reduction <add>, %9, %cst_11 [1] : vector<16x32xf32> to vector<16xf32>
    %13 = vector.shape_cast %12 : vector<16xf32> to vector<16x1xf32>
    %cst_12 = arith.constant 3.200000e+01 : f32
    %14 = vector.broadcast %cst_12 : f32 to vector<16x1xf32>
    %15 = arith.divf %13, %14 : vector<16x1xf32>
    %16 = vector.broadcast %15 : vector<16x1xf32> to vector<16x32xf32>
    %17 = arith.subf %9, %16 : vector<16x32xf32>
    %18 = arith.mulf %17, %17 : vector<16x32xf32>
    %cst_13 = arith.constant dense<0.000000e+00> : vector<16xf32>
    %19 = vector.multi_reduction <add>, %18, %cst_13 [1] : vector<16x32xf32> to vector<16xf32>
    %20 = vector.shape_cast %19 : vector<16xf32> to vector<16x1xf32>
    %cst_14 = arith.constant 3.200000e+01 : f32
    %21 = vector.broadcast %cst_14 : f32 to vector<16x1xf32>
    %22 = arith.divf %20, %21 : vector<16x1xf32>
    %23 = vector.broadcast %15 : vector<16x1xf32> to vector<16x32xf32>
    %24 = arith.subf %9, %23 : vector<16x32xf32>
    %cst_15 = arith.constant 9.99999974E-6 : f32
    %25 = vector.broadcast %cst_15 : f32 to vector<16x1xf32>
    %26 = arith.addf %22, %25 : vector<16x1xf32>
    %27 = math.rsqrt %26 : vector<16x1xf32>
    %28 = vector.broadcast %27 : vector<16x1xf32> to vector<16x32xf32>
    %29 = arith.mulf %24, %28 : vector<16x32xf32>
    %30 = vector.broadcast %10 : vector<1x32xf32> to vector<16x32xf32>
    %31 = arith.mulf %29, %30 : vector<16x32xf32>
    %32 = vector.broadcast %11 : vector<1x32xf32> to vector<16x32xf32>
    %33 = arith.addf %31, %32 : vector<16x32xf32>
    %34 = arith.negf %33 : vector<16x32xf32>
    %35 = math.exp %34 : vector<16x32xf32>
    %cst_16 = arith.constant 1.000000e+00 : f32
    %36 = vector.broadcast %cst_16 : f32 to vector<16x32xf32>
    %37 = arith.addf %36, %35 : vector<16x32xf32>
    %38 = arith.divf %36, %37 : vector<16x32xf32>
    %39 = arith.mulf %33, %38 : vector<16x32xf32>
    %c0_17 = arith.constant 0 : index
    %c0_18 = arith.constant 0 : index
    %40 = vector.load %arg9[%c0_17, %c0_18] : memref<32x32xf32, #tpu.memory_space<vmem>>, vector<32x32xf32>
    %cst_19 = arith.constant dense<0.000000e+00> : vector<16x32xf32>
    %41 = tpu.matmul %39, %40, %cst_19 {dimension_numbers = #tpu.dot_dimension_numbers<[1], [0], [0], [1], [0, 0, 1, 1], [], []>} : vector<16x32xf32>, vector<32x32xf32>, vector<16x32xf32> -> vector<16x32xf32>
    %c0_20 = arith.constant 0 : index
    %c0_21 = arith.constant 0 : index
    %42 = vector.load %arg10[%c0_20, %c0_21] : memref<1x32xf32, #tpu.memory_space<vmem>>, vector<1x32xf32>
    %43 = vector.broadcast %42 : vector<1x32xf32> to vector<16x32xf32>
    %44 = arith.addf %41, %43 : vector<16x32xf32>
    %c0_22 = arith.constant 0 : index
    %c0_23 = arith.constant 0 : index
    %45 = vector.load %arg11[%c0_22, %c0_23] : memref<1x32xf32, #tpu.memory_space<vmem>>, vector<1x32xf32>
    %c0_24 = arith.constant 0 : index
    %c0_25 = arith.constant 0 : index
    %46 = vector.load %arg12[%c0_24, %c0_25] : memref<1x32xf32, #tpu.memory_space<vmem>>, vector<1x32xf32>
    %cst_26 = arith.constant dense<0.000000e+00> : vector<16xf32>
    %47 = vector.multi_reduction <add>, %44, %cst_26 [1] : vector<16x32xf32> to vector<16xf32>
    %48 = vector.shape_cast %47 : vector<16xf32> to vector<16x1xf32>
    %cst_27 = arith.constant 3.200000e+01 : f32
    %49 = vector.broadcast %cst_27 : f32 to vector<16x1xf32>
    %50 = arith.divf %48, %49 : vector<16x1xf32>
    %51 = vector.broadcast %50 : vector<16x1xf32> to vector<16x32xf32>
    %52 = arith.subf %44, %51 : vector<16x32xf32>
    %53 = arith.mulf %52, %52 : vector<16x32xf32>
    %cst_28 = arith.constant dense<0.000000e+00> : vector<16xf32>
    %54 = vector.multi_reduction <add>, %53, %cst_28 [1] : vector<16x32xf32> to vector<16xf32>
    %55 = vector.shape_cast %54 : vector<16xf32> to vector<16x1xf32>
    %cst_29 = arith.constant 3.200000e+01 : f32
    %56 = vector.broadcast %cst_29 : f32 to vector<16x1xf32>
    %57 = arith.divf %55, %56 : vector<16x1xf32>
    %58 = vector.broadcast %50 : vector<16x1xf32> to vector<16x32xf32>
    %59 = arith.subf %44, %58 : vector<16x32xf32>
    %cst_30 = arith.constant 9.99999974E-6 : f32
    %60 = vector.broadcast %cst_30 : f32 to vector<16x1xf32>
    %61 = arith.addf %57, %60 : vector<16x1xf32>
    %62 = math.rsqrt %61 : vector<16x1xf32>
    %63 = vector.broadcast %62 : vector<16x1xf32> to vector<16x32xf32>
    %64 = arith.mulf %59, %63 : vector<16x32xf32>
    %65 = vector.broadcast %45 : vector<1x32xf32> to vector<16x32xf32>
    %66 = arith.mulf %64, %65 : vector<16x32xf32>
    %67 = vector.broadcast %46 : vector<1x32xf32> to vector<16x32xf32>
    %68 = arith.addf %66, %67 : vector<16x32xf32>
    %69 = arith.negf %68 : vector<16x32xf32>
    %70 = math.exp %69 : vector<16x32xf32>
    %cst_31 = arith.constant 1.000000e+00 : f32
    %71 = vector.broadcast %cst_31 : f32 to vector<16x32xf32>
    %72 = arith.addf %71, %70 : vector<16x32xf32>
    %73 = arith.divf %71, %72 : vector<16x32xf32>
    %74 = arith.mulf %68, %73 : vector<16x32xf32>
    %c0_32 = arith.constant 0 : index
    %c0_33 = arith.constant 0 : index
    %c0_34 = arith.constant 0 : index
    %75 = vector.load %arg3[%c0_32, %c0_33, %c0_34] : memref<2x8x32xf32, #tpu.memory_space<vmem>>, vector<2x8x32xf32>
    %76 = vector.shape_cast %75 : vector<2x8x32xf32> to vector<16x32xf32>
    %c0_35 = arith.constant 0 : index
    %c0_36 = arith.constant 0 : index
    %c0_37 = arith.constant 0 : index
    %77 = vector.load %arg4[%c0_35, %c0_36, %c0_37] : memref<2x8x32xf32, #tpu.memory_space<vmem>>, vector<2x8x32xf32>
    %78 = vector.shape_cast %77 : vector<2x8x32xf32> to vector<16x32xf32>
    %79 = arith.subf %74, %76 : vector<16x32xf32>
    %80 = vector.broadcast %1 : f32 to vector<16x32xf32>
    %81 = arith.mulf %80, %78 : vector<16x32xf32>
    %82 = vector.broadcast %0 : f32 to vector<16x32xf32>
    %83 = arith.mulf %82, %79 : vector<16x32xf32>
    %84 = arith.subf %81, %83 : vector<16x32xf32>
    %cst_38 = arith.constant 1.000000e+00 : f32
    %85 = arith.subf %cst_38, %2 : f32
    %86 = vector.broadcast %85 : f32 to vector<16x32xf32>
    %87 = arith.mulf %86, %76 : vector<16x32xf32>
    %88 = arith.addf %87, %84 : vector<16x32xf32>
    %cst_39 = arith.constant -1.000000e+05 : f32
    %cst_40 = arith.constant 1.000000e+05 : f32
    %89 = vector.broadcast %cst_39 : f32 to vector<16x32xf32>
    %90 = arith.maximumf %89, %88 : vector<16x32xf32>
    %91 = vector.broadcast %cst_40 : f32 to vector<16x32xf32>
    %92 = arith.minimumf %91, %90 : vector<16x32xf32>
    %cst_41 = arith.constant -1.000000e+05 : f32
    %cst_42 = arith.constant 1.000000e+05 : f32
    %93 = vector.broadcast %cst_41 : f32 to vector<16x32xf32>
    %94 = arith.maximumf %93, %84 : vector<16x32xf32>
    %95 = vector.broadcast %cst_42 : f32 to vector<16x32xf32>
    %96 = arith.minimumf %95, %94 : vector<16x32xf32>
    %97 = vector.shape_cast %92 : vector<16x32xf32> to vector<2x8x32xf32>
    %c0_43 = arith.constant 0 : index
    %c0_44 = arith.constant 0 : index
    %c0_45 = arith.constant 0 : index
    %98 = vector.load %arg29[%c0_43, %c0_44, %c0_45] : memref<2x8x32xf32, #tpu.memory_space<vmem>>, vector<2x8x32xf32>
    tpu.vector_store %arg29[%c0_43, %c0_44, %c0_45], %97 {strides = array<i32>} : memref<2x8x32xf32, #tpu.memory_space<vmem>>, vector<2x8x32xf32>,
    %99 = vector.shape_cast %96 : vector<16x32xf32> to vector<2x8x32xf32>
    %c0_46 = arith.constant 0 : index
    %c0_47 = arith.constant 0 : index
    %c0_48 = arith.constant 0 : index
    %100 = vector.load %arg30[%c0_46, %c0_47, %c0_48] : memref<2x8x32xf32, #tpu.memory_space<vmem>>, vector<2x8x32xf32>
    tpu.vector_store %arg30[%c0_46, %c0_47, %c0_48], %99 {strides = array<i32>} : memref<2x8x32xf32, #tpu.memory_space<vmem>>, vector<2x8x32xf32>,
    %c0_49 = arith.constant 0 : index
    %c0_50 = arith.constant 0 : index
    %101 = vector.load %arg13[%c0_49, %c0_50] : memref<32x32xf32, #tpu.memory_space<vmem>>, vector<32x32xf32>
    %cst_51 = arith.constant dense<0.000000e+00> : vector<16x32xf32>
    %102 = tpu.matmul %4, %101, %cst_51 {dimension_numbers = #tpu.dot_dimension_numbers<[1], [0], [0], [1], [0, 0, 1, 1], [], []>} : vector<16x32xf32>, vector<32x32xf32>, vector<16x32xf32> -> vector<16x32xf32>
    %c0_52 = arith.constant 0 : index
    %c0_53 = arith.constant 0 : index
    %103 = vector.load %arg14[%c0_52, %c0_53] : memref<1x32xf32, #tpu.memory_space<vmem>>, vector<1x32xf32>
    %104 = vector.broadcast %103 : vector<1x32xf32> to vector<16x32xf32>
    %105 = arith.addf %102, %104 : vector<16x32xf32>
    %106 = arith.mulf %92, %105 : vector<16x32xf32>
    %c0_54 = arith.constant 0 : index
    %c0_55 = arith.constant 0 : index
    %107 = vector.load %arg15[%c0_54, %c0_55] : memref<8x32xf32, #tpu.memory_space<vmem>>, vector<8x32xf32>
    %108 = vector.shape_cast %107 : vector<8x32xf32> to vector<1x8x32xf32>
    %109 = vector.broadcast %108 : vector<1x8x32xf32> to vector<2x8x32xf32>
    %c0_56 = arith.constant 0 : index
    %c0_57 = arith.constant 0 : index
    %c0_58 = arith.constant 0 : index
    %110 = vector.load %arg31[%c0_56, %c0_57, %c0_58] : memref<2x24x32xf32, #tpu.memory_space<vmem>>, vector<2x8x32xf32>
    tpu.vector_store %arg31[%c0_56, %c0_57, %c0_58], %109 {strides = array<i32>} : memref<2x24x32xf32, #tpu.memory_space<vmem>>, vector<2x8x32xf32>,
    %111 = vector.shape_cast %106 : vector<16x32xf32> to vector<2x8x32xf32>
    %c0_59 = arith.constant 0 : index
    %c8 = arith.constant 8 : index
    %c0_60 = arith.constant 0 : index
    %112 = vector.load %arg31[%c0_59, %c8, %c0_60] : memref<2x24x32xf32, #tpu.memory_space<vmem>>, vector<2x8x32xf32>
    tpu.vector_store %arg31[%c0_59, %c8, %c0_60], %111 {strides = array<i32>} : memref<2x24x32xf32, #tpu.memory_space<vmem>>, vector<2x8x32xf32>,
    %c0_61 = arith.constant 0 : index
    %c0_62 = arith.constant 0 : index
    %c0_63 = arith.constant 0 : index
    %113 = vector.load %arg2[%c0_61, %c0_62, %c0_63] : memref<2x8x32xf32, #tpu.memory_space<vmem>>, vector<2x8x32xf32>
    %c0_64 = arith.constant 0 : index
    %c16 = arith.constant 16 : index
    %c0_65 = arith.constant 0 : index
    %114 = vector.load %arg31[%c0_64, %c16, %c0_65] : memref<2x24x32xf32, #tpu.memory_space<vmem>>, vector<2x8x32xf32>
    tpu.vector_store %arg31[%c0_64, %c16, %c0_65], %113 {strides = array<i32>} : memref<2x24x32xf32, #tpu.memory_space<vmem>>, vector<2x8x32xf32>,
    %c0_66 = arith.constant 0 : index
    %c0_67 = arith.constant 0 : index
    %c0_68 = arith.constant 0 : index
    %115 = vector.load %arg31[%c0_66, %c0_67, %c0_68] : memref<2x24x32xf32, #tpu.memory_space<vmem>>, vector<2x24x32xf32>
    %116 = vector.shape_cast %115 : vector<2x24x32xf32> to vector<48x32xf32>
    %c0_69 = arith.constant 0 : index
    %c0_70 = arith.constant 0 : index
    %117 = vector.load %arg16[%c0_69, %c0_70] : memref<1x32xf32, #tpu.memory_space<vmem>>, vector<1x32xf32>
    %c0_71 = arith.constant 0 : index
    %c0_72 = arith.constant 0 : index
    %118 = vector.load %arg17[%c0_71, %c0_72] : memref<1x32xf32, #tpu.memory_space<vmem>>, vector<1x32xf32>
    %cst_73 = arith.constant dense<0.000000e+00> : vector<48xf32>
    %119 = vector.multi_reduction <add>, %116, %cst_73 [1] : vector<48x32xf32> to vector<48xf32>
    %120 = vector.shape_cast %119 : vector<48xf32> to vector<48x1xf32>
    %cst_74 = arith.constant 3.200000e+01 : f32
    %121 = vector.broadcast %cst_74 : f32 to vector<48x1xf32>
    %122 = arith.divf %120, %121 : vector<48x1xf32>
    %123 = vector.broadcast %122 : vector<48x1xf32> to vector<48x32xf32>
    %124 = arith.subf %116, %123 : vector<48x32xf32>
    %125 = arith.mulf %124, %124 : vector<48x32xf32>
    %cst_75 = arith.constant dense<0.000000e+00> : vector<48xf32>
    %126 = vector.multi_reduction <add>, %125, %cst_75 [1] : vector<48x32xf32> to vector<48xf32>
    %127 = vector.shape_cast %126 : vector<48xf32> to vector<48x1xf32>
    %cst_76 = arith.constant 3.200000e+01 : f32
    %128 = vector.broadcast %cst_76 : f32 to vector<48x1xf32>
    %129 = arith.divf %127, %128 : vector<48x1xf32>
    %130 = vector.broadcast %122 : vector<48x1xf32> to vector<48x32xf32>
    %131 = arith.subf %116, %130 : vector<48x32xf32>
    %cst_77 = arith.constant 9.99999974E-6 : f32
    %132 = vector.broadcast %cst_77 : f32 to vector<48x1xf32>
    %133 = arith.addf %129, %132 : vector<48x1xf32>
    %134 = math.rsqrt %133 : vector<48x1xf32>
    %135 = vector.broadcast %134 : vector<48x1xf32> to vector<48x32xf32>
    %136 = arith.mulf %131, %135 : vector<48x32xf32>
    %137 = vector.broadcast %117 : vector<1x32xf32> to vector<48x32xf32>
    %138 = arith.mulf %136, %137 : vector<48x32xf32>
    %139 = vector.broadcast %118 : vector<1x32xf32> to vector<48x32xf32>
    %140 = arith.addf %138, %139 : vector<48x32xf32>
    %c0_78 = arith.constant 0 : index
    %c0_79 = arith.constant 0 : index
    %141 = vector.load %arg18[%c0_78, %c0_79] : memref<32x96xf32, #tpu.memory_space<vmem>>, vector<32x96xf32>
    %cst_80 = arith.constant dense<0.000000e+00> : vector<48x96xf32>
    %142 = tpu.matmul %140, %141, %cst_80 {dimension_numbers = #tpu.dot_dimension_numbers<[1], [0], [0], [1], [0, 0, 1, 1], [], []>} : vector<48x32xf32>, vector<32x96xf32>, vector<48x96xf32> -> vector<48x96xf32>
    %c0_81 = arith.constant 0 : index
    %c0_82 = arith.constant 0 : index
    %143 = vector.load %arg19[%c0_81, %c0_82] : memref<1x96xf32, #tpu.memory_space<vmem>>, vector<1x96xf32>
    %144 = vector.broadcast %143 : vector<1x96xf32> to vector<48x96xf32>
    %145 = arith.addf %142, %144 : vector<48x96xf32>
    %146 = vector.extract_strided_slice %145 {offsets = [0, 0], sizes = [48, 32], strides = [1, 1]} : vector<48x96xf32> to vector<48x32xf32>
    %147 = vector.extract_strided_slice %146 {offsets = [0, 0], sizes = [48, 4], strides = [1, 1]} : vector<48x32xf32> to vector<48x4xf32>
    %148 = vector.extract_strided_slice %146 {offsets = [0, 4], sizes = [48, 4], strides = [1, 1]} : vector<48x32xf32> to vector<48x4xf32>
    %149 = vector.extract_strided_slice %146 {offsets = [0, 8], sizes = [48, 4], strides = [1, 1]} : vector<48x32xf32> to vector<48x4xf32>
    %150 = vector.extract_strided_slice %146 {offsets = [0, 12], sizes = [48, 4], strides = [1, 1]} : vector<48x32xf32> to vector<48x4xf32>
    %151 = vector.extract_strided_slice %146 {offsets = [0, 16], sizes = [48, 4], strides = [1, 1]} : vector<48x32xf32> to vector<48x4xf32>
    %152 = vector.extract_strided_slice %146 {offsets = [0, 20], sizes = [48, 4], strides = [1, 1]} : vector<48x32xf32> to vector<48x4xf32>
    %153 = vector.extract_strided_slice %146 {offsets = [0, 24], sizes = [48, 4], strides = [1, 1]} : vector<48x32xf32> to vector<48x4xf32>
    %154 = vector.extract_strided_slice %146 {offsets = [0, 28], sizes = [48, 4], strides = [1, 1]} : vector<48x32xf32> to vector<48x4xf32>
    %155 = vector.shape_cast %147 : vector<48x4xf32> to vector<1x48x4xf32>
    %156 = vector.shape_cast %148 : vector<48x4xf32> to vector<1x48x4xf32>
    %157 = vector.shape_cast %149 : vector<48x4xf32> to vector<1x48x4xf32>
    %158 = vector.shape_cast %150 : vector<48x4xf32> to vector<1x48x4xf32>
    %159 = vector.shape_cast %151 : vector<48x4xf32> to vector<1x48x4xf32>
    %160 = vector.shape_cast %152 : vector<48x4xf32> to vector<1x48x4xf32>
    %161 = vector.shape_cast %153 : vector<48x4xf32> to vector<1x48x4xf32>
    %162 = vector.shape_cast %154 : vector<48x4xf32> to vector<1x48x4xf32>
    %163 = tpu.concatenate %155, %156, %157, %158, %159, %160, %161, %162 in 0 : vector<1x48x4xf32>, vector<1x48x4xf32>, vector<1x48x4xf32>, vector<1x48x4xf32>, vector<1x48x4xf32>, vector<1x48x4xf32>, vector<1x48x4xf32>, vector<1x48x4xf32> -> vector<8x48x4xf32>
    %164 = vector.shape_cast %163 : vector<8x48x4xf32> to vector<16x24x4xf32>
    %165 = vector.extract_strided_slice %145 {offsets = [0, 32], sizes = [48, 32], strides = [1, 1]} : vector<48x96xf32> to vector<48x32xf32>
    %166 = vector.extract_strided_slice %165 {offsets = [0, 0], sizes = [48, 4], strides = [1, 1]} : vector<48x32xf32> to vector<48x4xf32>
    %167 = vector.extract_strided_slice %165 {offsets = [0, 4], sizes = [48, 4], strides = [1, 1]} : vector<48x32xf32> to vector<48x4xf32>
    %168 = vector.extract_strided_slice %165 {offsets = [0, 8], sizes = [48, 4], strides = [1, 1]} : vector<48x32xf32> to vector<48x4xf32>
    %169 = vector.extract_strided_slice %165 {offsets = [0, 12], sizes = [48, 4], strides = [1, 1]} : vector<48x32xf32> to vector<48x4xf32>
    %170 = vector.extract_strided_slice %165 {offsets = [0, 16], sizes = [48, 4], strides = [1, 1]} : vector<48x32xf32> to vector<48x4xf32>
    %171 = vector.extract_strided_slice %165 {offsets = [0, 20], sizes = [48, 4], strides = [1, 1]} : vector<48x32xf32> to vector<48x4xf32>
    %172 = vector.extract_strided_slice %165 {offsets = [0, 24], sizes = [48, 4], strides = [1, 1]} : vector<48x32xf32> to vector<48x4xf32>
    %173 = vector.extract_strided_slice %165 {offsets = [0, 28], sizes = [48, 4], strides = [1, 1]} : vector<48x32xf32> to vector<48x4xf32>
    %174 = vector.shape_cast %166 : vector<48x4xf32> to vector<1x48x4xf32>
    %175 = vector.shape_cast %167 : vector<48x4xf32> to vector<1x48x4xf32>
    %176 = vector.shape_cast %168 : vector<48x4xf32> to vector<1x48x4xf32>
    %177 = vector.shape_cast %169 : vector<48x4xf32> to vector<1x48x4xf32>
    %178 = vector.shape_cast %170 : vector<48x4xf32> to vector<1x48x4xf32>
    %179 = vector.shape_cast %171 : vector<48x4xf32> to vector<1x48x4xf32>
    %180 = vector.shape_cast %172 : vector<48x4xf32> to vector<1x48x4xf32>
    %181 = vector.shape_cast %173 : vector<48x4xf32> to vector<1x48x4xf32>
    %182 = tpu.concatenate %174, %175, %176, %177, %178, %179, %180, %181 in 0 : vector<1x48x4xf32>, vector<1x48x4xf32>, vector<1x48x4xf32>, vector<1x48x4xf32>, vector<1x48x4xf32>, vector<1x48x4xf32>, vector<1x48x4xf32>, vector<1x48x4xf32> -> vector<8x48x4xf32>
    %183 = vector.shape_cast %182 : vector<8x48x4xf32> to vector<16x24x4xf32>
    %184 = vector.extract_strided_slice %145 {offsets = [0, 64], sizes = [48, 32], strides = [1, 1]} : vector<48x96xf32> to vector<48x32xf32>
    %185 = vector.extract_strided_slice %184 {offsets = [0, 0], sizes = [48, 4], strides = [1, 1]} : vector<48x32xf32> to vector<48x4xf32>
    %186 = vector.extract_strided_slice %184 {offsets = [0, 4], sizes = [48, 4], strides = [1, 1]} : vector<48x32xf32> to vector<48x4xf32>
    %187 = vector.extract_strided_slice %184 {offsets = [0, 8], sizes = [48, 4], strides = [1, 1]} : vector<48x32xf32> to vector<48x4xf32>
    %188 = vector.extract_strided_slice %184 {offsets = [0, 12], sizes = [48, 4], strides = [1, 1]} : vector<48x32xf32> to vector<48x4xf32>
    %189 = vector.extract_strided_slice %184 {offsets = [0, 16], sizes = [48, 4], strides = [1, 1]} : vector<48x32xf32> to vector<48x4xf32>
    %190 = vector.extract_strided_slice %184 {offsets = [0, 20], sizes = [48, 4], strides = [1, 1]} : vector<48x32xf32> to vector<48x4xf32>
    %191 = vector.extract_strided_slice %184 {offsets = [0, 24], sizes = [48, 4], strides = [1, 1]} : vector<48x32xf32> to vector<48x4xf32>
    %192 = vector.extract_strided_slice %184 {offsets = [0, 28], sizes = [48, 4], strides = [1, 1]} : vector<48x32xf32> to vector<48x4xf32>
    %193 = vector.shape_cast %185 : vector<48x4xf32> to vector<1x48x4xf32>
    %194 = vector.shape_cast %186 : vector<48x4xf32> to vector<1x48x4xf32>
    %195 = vector.shape_cast %187 : vector<48x4xf32> to vector<1x48x4xf32>
    %196 = vector.shape_cast %188 : vector<48x4xf32> to vector<1x48x4xf32>
    %197 = vector.shape_cast %189 : vector<48x4xf32> to vector<1x48x4xf32>
    %198 = vector.shape_cast %190 : vector<48x4xf32> to vector<1x48x4xf32>
    %199 = vector.shape_cast %191 : vector<48x4xf32> to vector<1x48x4xf32>
    %200 = vector.shape_cast %192 : vector<48x4xf32> to vector<1x48x4xf32>
    %201 = tpu.concatenate %193, %194, %195, %196, %197, %198, %199, %200 in 0 : vector<1x48x4xf32>, vector<1x48x4xf32>, vector<1x48x4xf32>, vector<1x48x4xf32>, vector<1x48x4xf32>, vector<1x48x4xf32>, vector<1x48x4xf32>, vector<1x48x4xf32> -> vector<8x48x4xf32>
    %202 = vector.shape_cast %201 : vector<8x48x4xf32> to vector<16x24x4xf32>
    "tpu.trace_start"() <{level = 10 : i32, message = "bqd,bkd->bqk"}> : () -> ()
    %cst_83 = arith.constant dense<0.000000e+00> : vector<16x24x24xf32>
    %203 = tpu.matmul %164, %183, %cst_83 {dimension_numbers = #tpu.dot_dimension_numbers<[2], [2], [1], [1], [0, 0, 0, 1, 1, 1], [0], [0]>} : vector<16x24x4xf32>, vector<16x24x4xf32>, vector<16x24x24xf32> -> vector<16x24x24xf32>
    "tpu.trace_stop"() : () -> ()
    %cst_84 = arith.constant dense<0xFF800000> : vector<16x24xf32>
    %204 = vector.multi_reduction <maximumf>, %203, %cst_84 [2] : vector<16x24x24xf32> to vector<16x24xf32>
    %205 = vector.shape_cast %204 : vector<16x24xf32> to vector<16x24x1xf32>
    %206 = vector.broadcast %205 : vector<16x24x1xf32> to vector<16x24x24xf32>
    %207 = arith.subf %203, %206 : vector<16x24x24xf32>
    %208 = math.exp %207 : vector<16x24x24xf32>
    %cst_85 = arith.constant dense<0.000000e+00> : vector<16x24xf32>
    %209 = vector.multi_reduction <add>, %208, %cst_85 [2] : vector<16x24x24xf32> to vector<16x24xf32>
    %210 = vector.shape_cast %209 : vector<16x24xf32> to vector<16x24x1xf32>
    %211 = tpu.reciprocal %210 {approx = true} : vector<16x24x1xf32> -> vector<16x24x1xf32>
    %212 = vector.broadcast %211 : vector<16x24x1xf32> to vector<16x24x24xf32>
    %213 = arith.mulf %208, %212 : vector<16x24x24xf32>
    "tpu.trace_start"() <{level = 10 : i32, message = "bqk,bkd->bqd"}> : () -> ()
    %cst_86 = arith.constant dense<0.000000e+00> : vector<16x24x4xf32>
    %214 = tpu.matmul %213, %202, %cst_86 {dimension_numbers = #tpu.dot_dimension_numbers<[2], [1], [1], [2], [0, 0, 0, 1, 1, 2], [0], [0]>} : vector<16x24x24xf32>, vector<16x24x4xf32>, vector<16x24x4xf32> -> vector<16x24x4xf32>
    "tpu.trace_stop"() : () -> ()
    %215 = vector.extract_strided_slice %214 {offsets = [0, 0, 0], sizes = [2, 24, 4], strides = [1, 1, 1]} : vector<16x24x4xf32> to vector<2x24x4xf32>
    %216 = vector.shape_cast %215 : vector<2x24x4xf32> to vector<48x4xf32>
    %c0_87 = arith.constant 0 : index
    %c0_88 = arith.constant 0 : index
    %c0_89 = arith.constant 0 : index
    %217 = vector.load %arg20[%c0_87, %c0_88, %c0_89] : memref<8x4x32xf32, #tpu.memory_space<vmem>>, vector<1x4x32xf32>
    %218 = vector.shape_cast %217 : vector<1x4x32xf32> to vector<4x32xf32>
    %cst_90 = arith.constant dense<0.000000e+00> : vector<48x32xf32>
    %219 = tpu.matmul %216, %218, %cst_90 {dimension_numbers = #tpu.dot_dimension_numbers<[1], [0], [0], [1], [0, 0, 1, 1], [], []>} : vector<48x4xf32>, vector<4x32xf32>, vector<48x32xf32> -> vector<48x32xf32>
    %220 = vector.extract_strided_slice %214 {offsets = [2, 0, 0], sizes = [2, 24, 4], strides = [1, 1, 1]} : vector<16x24x4xf32> to vector<2x24x4xf32>
    %221 = vector.shape_cast %220 : vector<2x24x4xf32> to vector<48x4xf32>
    %c1_91 = arith.constant 1 : index
    %c0_92 = arith.constant 0 : index
    %c0_93 = arith.constant 0 : index
    %222 = vector.load %arg20[%c1_91, %c0_92, %c0_93] : memref<8x4x32xf32, #tpu.memory_space<vmem>>, vector<1x4x32xf32>
    %223 = vector.shape_cast %222 : vector<1x4x32xf32> to vector<4x32xf32>
    %cst_94 = arith.constant dense<0.000000e+00> : vector<48x32xf32>
    %224 = tpu.matmul %221, %223, %cst_94 {dimension_numbers = #tpu.dot_dimension_numbers<[1], [0], [0], [1], [0, 0, 1, 1], [], []>} : vector<48x4xf32>, vector<4x32xf32>, vector<48x32xf32> -> vector<48x32xf32>
    %225 = arith.addf %219, %224 : vector<48x32xf32>
    %226 = vector.extract_strided_slice %214 {offsets = [4, 0, 0], sizes = [2, 24, 4], strides = [1, 1, 1]} : vector<16x24x4xf32> to vector<2x24x4xf32>
    %227 = vector.shape_cast %226 : vector<2x24x4xf32> to vector<48x4xf32>
    %c2_95 = arith.constant 2 : index
    %c0_96 = arith.constant 0 : index
    %c0_97 = arith.constant 0 : index
    %228 = vector.load %arg20[%c2_95, %c0_96, %c0_97] : memref<8x4x32xf32, #tpu.memory_space<vmem>>, vector<1x4x32xf32>
    %229 = vector.shape_cast %228 : vector<1x4x32xf32> to vector<4x32xf32>
    %cst_98 = arith.constant dense<0.000000e+00> : vector<48x32xf32>
    %230 = tpu.matmul %227, %229, %cst_98 {dimension_numbers = #tpu.dot_dimension_numbers<[1], [0], [0], [1], [0, 0, 1, 1], [], []>} : vector<48x4xf32>, vector<4x32xf32>, vector<48x32xf32> -> vector<48x32xf32>
    %231 = arith.addf %225, %230 : vector<48x32xf32>
    %232 = vector.extract_strided_slice %214 {offsets = [6, 0, 0], sizes = [2, 24, 4], strides = [1, 1, 1]} : vector<16x24x4xf32> to vector<2x24x4xf32>
    %233 = vector.shape_cast %232 : vector<2x24x4xf32> to vector<48x4xf32>
    %c3 = arith.constant 3 : index
    %c0_99 = arith.constant 0 : index
    %c0_100 = arith.constant 0 : index
    %234 = vector.load %arg20[%c3, %c0_99, %c0_100] : memref<8x4x32xf32, #tpu.memory_space<vmem>>, vector<1x4x32xf32>
    %235 = vector.shape_cast %234 : vector<1x4x32xf32> to vector<4x32xf32>
    %cst_101 = arith.constant dense<0.000000e+00> : vector<48x32xf32>
    %236 = tpu.matmul %233, %235, %cst_101 {dimension_numbers = #tpu.dot_dimension_numbers<[1], [0], [0], [1], [0, 0, 1, 1], [], []>} : vector<48x4xf32>, vector<4x32xf32>, vector<48x32xf32> -> vector<48x32xf32>
    %237 = arith.addf %231, %236 : vector<48x32xf32>
    %238 = vector.extract_strided_slice %214 {offsets = [8, 0, 0], sizes = [2, 24, 4], strides = [1, 1, 1]} : vector<16x24x4xf32> to vector<2x24x4xf32>
    %239 = vector.shape_cast %238 : vector<2x24x4xf32> to vector<48x4xf32>
    %c4 = arith.constant 4 : index
    %c0_102 = arith.constant 0 : index
    %c0_103 = arith.constant 0 : index
    %240 = vector.load %arg20[%c4, %c0_102, %c0_103] : memref<8x4x32xf32, #tpu.memory_space<vmem>>, vector<1x4x32xf32>
    %241 = vector.shape_cast %240 : vector<1x4x32xf32> to vector<4x32xf32>
    %cst_104 = arith.constant dense<0.000000e+00> : vector<48x32xf32>
    %242 = tpu.matmul %239, %241, %cst_104 {dimension_numbers = #tpu.dot_dimension_numbers<[1], [0], [0], [1], [0, 0, 1, 1], [], []>} : vector<48x4xf32>, vector<4x32xf32>, vector<48x32xf32> -> vector<48x32xf32>
    %243 = arith.addf %237, %242 : vector<48x32xf32>
    %244 = vector.extract_strided_slice %214 {offsets = [10, 0, 0], sizes = [2, 24, 4], strides = [1, 1, 1]} : vector<16x24x4xf32> to vector<2x24x4xf32>
    %245 = vector.shape_cast %244 : vector<2x24x4xf32> to vector<48x4xf32>
    %c5 = arith.constant 5 : index
    %c0_105 = arith.constant 0 : index
    %c0_106 = arith.constant 0 : index
    %246 = vector.load %arg20[%c5, %c0_105, %c0_106] : memref<8x4x32xf32, #tpu.memory_space<vmem>>, vector<1x4x32xf32>
    %247 = vector.shape_cast %246 : vector<1x4x32xf32> to vector<4x32xf32>
    %cst_107 = arith.constant dense<0.000000e+00> : vector<48x32xf32>
    %248 = tpu.matmul %245, %247, %cst_107 {dimension_numbers = #tpu.dot_dimension_numbers<[1], [0], [0], [1], [0, 0, 1, 1], [], []>} : vector<48x4xf32>, vector<4x32xf32>, vector<48x32xf32> -> vector<48x32xf32>
    %249 = arith.addf %243, %248 : vector<48x32xf32>
    %250 = vector.extract_strided_slice %214 {offsets = [12, 0, 0], sizes = [2, 24, 4], strides = [1, 1, 1]} : vector<16x24x4xf32> to vector<2x24x4xf32>
    %251 = vector.shape_cast %250 : vector<2x24x4xf32> to vector<48x4xf32>
    %c6 = arith.constant 6 : index
    %c0_108 = arith.constant 0 : index
    %c0_109 = arith.constant 0 : index
    %252 = vector.load %arg20[%c6, %c0_108, %c0_109] : memref<8x4x32xf32, #tpu.memory_space<vmem>>, vector<1x4x32xf32>
    %253 = vector.shape_cast %252 : vector<1x4x32xf32> to vector<4x32xf32>
    %cst_110 = arith.constant dense<0.000000e+00> : vector<48x32xf32>
    %254 = tpu.matmul %251, %253, %cst_110 {dimension_numbers = #tpu.dot_dimension_numbers<[1], [0], [0], [1], [0, 0, 1, 1], [], []>} : vector<48x4xf32>, vector<4x32xf32>, vector<48x32xf32> -> vector<48x32xf32>
    %255 = arith.addf %249, %254 : vector<48x32xf32>
    %256 = vector.extract_strided_slice %214 {offsets = [14, 0, 0], sizes = [2, 24, 4], strides = [1, 1, 1]} : vector<16x24x4xf32> to vector<2x24x4xf32>
    %257 = vector.shape_cast %256 : vector<2x24x4xf32> to vector<48x4xf32>
    %c7 = arith.constant 7 : index
    %c0_111 = arith.constant 0 : index
    %c0_112 = arith.constant 0 : index
    %258 = vector.load %arg20[%c7, %c0_111, %c0_112] : memref<8x4x32xf32, #tpu.memory_space<vmem>>, vector<1x4x32xf32>
    %259 = vector.shape_cast %258 : vector<1x4x32xf32> to vector<4x32xf32>
    %cst_113 = arith.constant dense<0.000000e+00> : vector<48x32xf32>
    %260 = tpu.matmul %257, %259, %cst_113 {dimension_numbers = #tpu.dot_dimension_numbers<[1], [0], [0], [1], [0, 0, 1, 1], [], []>} : vector<48x4xf32>, vector<4x32xf32>, vector<48x32xf32> -> vector<48x32xf32>
    %261 = arith.addf %255, %260 : vector<48x32xf32>
    %c0_114 = arith.constant 0 : index
    %c0_115 = arith.constant 0 : index
    %262 = vector.load %arg21[%c0_114, %c0_115] : memref<1x32xf32, #tpu.memory_space<vmem>>, vector<1x32xf32>
    %263 = vector.broadcast %262 : vector<1x32xf32> to vector<48x32xf32>
    %264 = arith.addf %261, %263 : vector<48x32xf32>
    %265 = arith.addf %116, %264 : vector<48x32xf32>
    %c0_116 = arith.constant 0 : index
    %c0_117 = arith.constant 0 : index
    %266 = vector.load %arg22[%c0_116, %c0_117] : memref<1x32xf32, #tpu.memory_space<vmem>>, vector<1x32xf32>
    %c0_118 = arith.constant 0 : index
    %c0_119 = arith.constant 0 : index
    %267 = vector.load %arg23[%c0_118, %c0_119] : memref<1x32xf32, #tpu.memory_space<vmem>>, vector<1x32xf32>
    %cst_120 = arith.constant dense<0.000000e+00> : vector<48xf32>
    %268 = vector.multi_reduction <add>, %265, %cst_120 [1] : vector<48x32xf32> to vector<48xf32>
    %269 = vector.shape_cast %268 : vector<48xf32> to vector<48x1xf32>
    %cst_121 = arith.constant 3.200000e+01 : f32
    %270 = vector.broadcast %cst_121 : f32 to vector<48x1xf32>
    %271 = arith.divf %269, %270 : vector<48x1xf32>
    %272 = vector.broadcast %271 : vector<48x1xf32> to vector<48x32xf32>
    %273 = arith.subf %265, %272 : vector<48x32xf32>
    %274 = arith.mulf %273, %273 : vector<48x32xf32>
    %cst_122 = arith.constant dense<0.000000e+00> : vector<48xf32>
    %275 = vector.multi_reduction <add>, %274, %cst_122 [1] : vector<48x32xf32> to vector<48xf32>
    %276 = vector.shape_cast %275 : vector<48xf32> to vector<48x1xf32>
    %cst_123 = arith.constant 3.200000e+01 : f32
    %277 = vector.broadcast %cst_123 : f32 to vector<48x1xf32>
    %278 = arith.divf %276, %277 : vector<48x1xf32>
    %279 = vector.broadcast %271 : vector<48x1xf32> to vector<48x32xf32>
    %280 = arith.subf %265, %279 : vector<48x32xf32>
    %cst_124 = arith.constant 9.99999974E-6 : f32
    %281 = vector.broadcast %cst_124 : f32 to vector<48x1xf32>
    %282 = arith.addf %278, %281 : vector<48x1xf32>
    %283 = math.rsqrt %282 : vector<48x1xf32>
    %284 = vector.broadcast %283 : vector<48x1xf32> to vector<48x32xf32>
    %285 = arith.mulf %280, %284 : vector<48x32xf32>
    %286 = vector.broadcast %266 : vector<1x32xf32> to vector<48x32xf32>
    %287 = arith.mulf %285, %286 : vector<48x32xf32>
    %288 = vector.broadcast %267 : vector<1x32xf32> to vector<48x32xf32>
    %289 = arith.addf %287, %288 : vector<48x32xf32>
    %c0_125 = arith.constant 0 : index
    %c0_126 = arith.constant 0 : index
    %290 = vector.load %arg24[%c0_125, %c0_126] : memref<32x128xf32, #tpu.memory_space<vmem>>, vector<32x128xf32>
    %cst_127 = arith.constant dense<0.000000e+00> : vector<48x128xf32>
    %291 = tpu.matmul %289, %290, %cst_127 {dimension_numbers = #tpu.dot_dimension_numbers<[1], [0], [0], [1], [0, 0, 1, 1], [], []>} : vector<48x32xf32>, vector<32x128xf32>, vector<48x128xf32> -> vector<48x128xf32>
    %c0_128 = arith.constant 0 : index
    %c0_129 = arith.constant 0 : index
    %292 = vector.load %arg25[%c0_128, %c0_129] : memref<1x128xf32, #tpu.memory_space<vmem>>, vector<1x128xf32>
    %293 = vector.broadcast %292 : vector<1x128xf32> to vector<48x128xf32>
    %294 = arith.addf %291, %293 : vector<48x128xf32>
    %295 = arith.negf %294 : vector<48x128xf32>
    %296 = math.exp %295 : vector<48x128xf32>
    %cst_130 = arith.constant 1.000000e+00 : f32
    %297 = vector.broadcast %cst_130 : f32 to vector<48x128xf32>
    %298 = arith.addf %297, %296 : vector<48x128xf32>
    %299 = arith.divf %297, %298 : vector<48x128xf32>
    %300 = arith.mulf %294, %299 : vector<48x128xf32>
    %c0_131 = arith.constant 0 : index
    %c0_132 = arith.constant 0 : index
    %301 = vector.load %arg26[%c0_131, %c0_132] : memref<128x32xf32, #tpu.memory_space<vmem>>, vector<128x32xf32>
    %cst_133 = arith.constant dense<0.000000e+00> : vector<48x32xf32>
    %302 = tpu.matmul %300, %301, %cst_133 {dimension_numbers = #tpu.dot_dimension_numbers<[1], [0], [0], [1], [0, 0, 1, 1], [], []>} : vector<48x128xf32>, vector<128x32xf32>, vector<48x32xf32> -> vector<48x32xf32>
    %303 = arith.addf %265, %302 : vector<48x32xf32>
    %c0_134 = arith.constant 0 : index
    %c0_135 = arith.constant 0 : index
    %304 = vector.load %arg27[%c0_134, %c0_135] : memref<1x32xf32, #tpu.memory_space<vmem>>, vector<1x32xf32>
    %305 = vector.broadcast %304 : vector<1x32xf32> to vector<48x32xf32>
    %306 = arith.addf %303, %305 : vector<48x32xf32>
    %307 = vector.shape_cast %306 : vector<48x32xf32> to vector<2x24x32xf32>
    %c0_136 = arith.constant 0 : index
    %c0_137 = arith.constant 0 : index
    %c0_138 = arith.constant 0 : index
    %308 = vector.load %arg28[%c0_136, %c0_137, %c0_138] : memref<2x24x32xf32, #tpu.memory_space<vmem>>, vector<2x24x32xf32>
    tpu.vector_store %arg28[%c0_136, %c0_137, %c0_138], %307 {strides = array<i32>} : memref<2x24x32xf32, #tpu.memory_space<vmem>>, vector<2x24x32xf32>,
    return
  }
  func.func @transform_0(%arg0: i32) -> i32 {
    %c0_i32 = arith.constant 0 : i32
    %c0_i32_0 = arith.constant 0 : i32
    return %c0_i32 : i32
  }
  func.func @transform_1(%arg0: i32) -> (i32, i32, i32) {
    %c0_i32 = arith.constant 0 : i32
    %c0_i32_0 = arith.constant 0 : i32
    %c0_i32_1 = arith.constant 0 : i32
    return %arg0, %c0_i32, %c0_i32_0 : i32, i32, i32
  }
  func.func @transform_2(%arg0: i32) -> (i32, i32, i32) {
    %c0_i32 = arith.constant 0 : i32
    %c0_i32_0 = arith.constant 0 : i32
    %c0_i32_1 = arith.constant 0 : i32
    return %arg0, %c0_i32, %c0_i32_0 : i32, i32, i32
  }
  func.func @transform_3(%arg0: i32) -> (i32, i32, i32) {
    %c0_i32 = arith.constant 0 : i32
    %c0_i32_0 = arith.constant 0 : i32
    %c0_i32_1 = arith.constant 0 : i32
    return %arg0, %c0_i32, %c0_i32_0 : i32, i32, i32
  }
  func.func @transform_4(%arg0: i32) -> (i32, i32) {
    %c0_i32 = arith.constant 0 : i32
    %c0_i32_0 = arith.constant 0 : i32
    %c0_i32_1 = arith.constant 0 : i32
    return %c0_i32, %c0_i32_0 : i32, i32
  }
  func.func @transform_5(%arg0: i32) -> (i32, i32) {
    %c0_i32 = arith.constant 0 : i32
    %c0_i32_0 = arith.constant 0 : i32
    %c0_i32_1 = arith.constant 0 : i32
    return %c0_i32, %c0_i32_0 : i32, i32
  }
  func.func @transform_6(%arg0: i32) -> (i32, i32) {
    %c0_i32 = arith.constant 0 : i32
    %c0_i32_0 = arith.constant 0 : i32
    %c0_i32_1 = arith.constant 0 : i32
    return %c0_i32, %c0_i32_0 : i32, i32
  }
  func.func @transform_7(%arg0: i32) -> (i32, i32) {
    %c0_i32 = arith.constant 0 : i32
    %c0_i32_0 = arith.constant 0 : i32
    %c0_i32_1 = arith.constant 0 : i32
    return %c0_i32, %c0_i32_0 : i32, i32
  }
  func.func @transform_8(%arg0: i32) -> (i32, i32) {
    %c0_i32 = arith.constant 0 : i32
    %c0_i32_0 = arith.constant 0 : i32
    %c0_i32_1 = arith.constant 0 : i32
    return %c0_i32, %c0_i32_0 : i32, i32
  }
  func.func @transform_9(%arg0: i32) -> (i32, i32) {
    %c0_i32 = arith.constant 0 : i32
    %c0_i32_0 = arith.constant 0 : i32
    %c0_i32_1 = arith.constant 0 : i32
    return %c0_i32, %c0_i32_0 : i32, i32
  }
  func.func @transform_10(%arg0: i32) -> (i32, i32) {
    %c0_i32 = arith.constant 0 : i32
    %c0_i32_0 = arith.constant 0 : i32
    %c0_i32_1 = arith.constant 0 : i32
    return %c0_i32, %c0_i32_0 : i32, i32
  }
  func.func @transform_11(%arg0: i32) -> (i32, i32) {
    %c0_i32 = arith.constant 0 : i32
    %c0_i32_0 = arith.constant 0 : i32
    %c0_i32_1 = arith.constant 0 : i32
    return %c0_i32, %c0_i32_0 : i32, i32
  }
  func.func @transform_12(%arg0: i32) -> (i32, i32) {
    %c0_i32 = arith.constant 0 : i32
    %c0_i32_0 = arith.constant 0 : i32
    %c0_i32_1 = arith.constant 0 : i32
    return %c0_i32, %c0_i32_0 : i32, i32
  }
  func.func @transform_13(%arg0: i32) -> (i32, i32) {
    %c0_i32 = arith.constant 0 : i32
    %c0_i32_0 = arith.constant 0 : i32
    %c0_i32_1 = arith.constant 0 : i32
    return %c0_i32, %c0_i32_0 : i32, i32
  }
  func.func @transform_14(%arg0: i32) -> (i32, i32) {
    %c0_i32 = arith.constant 0 : i32
    %c0_i32_0 = arith.constant 0 : i32
    %c0_i32_1 = arith.constant 0 : i32
    return %c0_i32, %c0_i32_0 : i32, i32
  }
  func.func @transform_15(%arg0: i32) -> (i32, i32) {
    %c0_i32 = arith.constant 0 : i32
    %c0_i32_0 = arith.constant 0 : i32
    %c0_i32_1 = arith.constant 0 : i32
    return %c0_i32, %c0_i32_0 : i32, i32
  }
  func.func @transform_16(%arg0: i32) -> (i32, i32) {
    %c0_i32 = arith.constant 0 : i32
    %c0_i32_0 = arith.constant 0 : i32
    %c0_i32_1 = arith.constant 0 : i32
    return %c0_i32, %c0_i32_0 : i32, i32
  }
  func.func @transform_17(%arg0: i32) -> (i32, i32) {
    %c0_i32 = arith.constant 0 : i32
    %c0_i32_0 = arith.constant 0 : i32
    %c0_i32_1 = arith.constant 0 : i32
    return %c0_i32, %c0_i32_0 : i32, i32
  }
  func.func @transform_18(%arg0: i32) -> (i32, i32) {
    %c0_i32 = arith.constant 0 : i32
    %c0_i32_0 = arith.constant 0 : i32
    %c0_i32_1 = arith.constant 0 : i32
    return %c0_i32, %c0_i32_0 : i32, i32
  }
  func.func @transform_19(%arg0: i32) -> (i32, i32, i32) {
    %c0_i32 = arith.constant 0 : i32
    %c0_i32_0 = arith.constant 0 : i32
    %c0_i32_1 = arith.constant 0 : i32
    %c0_i32_2 = arith.constant 0 : i32
    return %c0_i32, %c0_i32_0, %c0_i32_1 : i32, i32, i32
  }
  func.func @transform_20(%arg0: i32) -> (i32, i32) {
    %c0_i32 = arith.constant 0 : i32
    %c0_i32_0 = arith.constant 0 : i32
    %c0_i32_1 = arith.constant 0 : i32
    return %c0_i32, %c0_i32_0 : i32, i32
  }
  func.func @transform_21(%arg0: i32) -> (i32, i32) {
    %c0_i32 = arith.constant 0 : i32
    %c0_i32_0 = arith.constant 0 : i32
    %c0_i32_1 = arith.constant 0 : i32
    return %c0_i32, %c0_i32_0 : i32, i32
  }
  func.func @transform_22(%arg0: i32) -> (i32, i32) {
    %c0_i32 = arith.constant 0 : i32
    %c0_i32_0 = arith.constant 0 : i32
    %c0_i32_1 = arith.constant 0 : i32
    return %c0_i32, %c0_i32_0 : i32, i32
  }
  func.func @transform_23(%arg0: i32) -> (i32, i32) {
    %c0_i32 = arith.constant 0 : i32
    %c0_i32_0 = arith.constant 0 : i32
    %c0_i32_1 = arith.constant 0 : i32
    return %c0_i32, %c0_i32_0 : i32, i32
  }
  func.func @transform_24(%arg0: i32) -> (i32, i32) {
    %c0_i32 = arith.constant 0 : i32
    %c0_i32_0 = arith.constant 0 : i32
    %c0_i32_1 = arith.constant 0 : i32
    return %c0_i32, %c0_i32_0 : i32, i32
  }
  func.func @transform_25(%arg0: i32) -> (i32, i32) {
    %c0_i32 = arith.constant 0 : i32
    %c0_i32_0 = arith.constant 0 : i32
    %c0_i32_1 = arith.constant 0 : i32
    return %c0_i32, %c0_i32_0 : i32, i32
  }
  func.func @transform_26(%arg0: i32) -> (i32, i32) {
    %c0_i32 = arith.constant 0 : i32
    %c0_i32_0 = arith.constant 0 : i32
    %c0_i32_1 = arith.constant 0 : i32
    return %c0_i32, %c0_i32_0 : i32, i32
  }
  func.func @transform_27(%arg0: i32) -> (i32, i32, i32) {
    %c0_i32 = arith.constant 0 : i32
    %c0_i32_0 = arith.constant 0 : i32
    %c0_i32_1 = arith.constant 0 : i32
    return %arg0, %c0_i32, %c0_i32_0 : i32, i32, i32
  }
  func.func @transform_28(%arg0: i32) -> (i32, i32, i32) {
    %c0_i32 = arith.constant 0 : i32
    %c0_i32_0 = arith.constant 0 : i32
    %c0_i32_1 = arith.constant 0 : i32
    return %arg0, %c0_i32, %c0_i32_0 : i32, i32, i32
  }
  func.func @transform_29(%arg0: i32) -> (i32, i32, i32) {
    %c0_i32 = arith.constant 0 : i32
    %c0_i32_0 = arith.constant 0 : i32
    %c0_i32_1 = arith.constant 0 : i32
    return %arg0, %c0_i32, %c0_i32_0 : i32, i32, i32
  }
}

</mosaic_0001>

<llo_original>
// kernel: tpu_custom_call.1
$region0: #{tpu_custom_call.1}
  #allocation0 [shape = 'u32[]', space=smem, size = 0x4, offset = 0x4, fixed_abs, tag = 'smem constant byte address 0x4 - core index']
  #allocation1 [shape = 'u32[72,128]{1,0:T(1,128)}', space=vmem, size = 0x9000, scoped, tag = 'internal scratch']
  #allocation2 [shape = 'f32[2,24,32]{2,1,0:T(8,128)}', space=vmem, size = 0x6000, scoped, tag = 'scratch operand']
  %s0 = inlined_call_operand.smem [shape: u32[30], index: -1, kind: input, shape index: {}]
  %s1 = sld [smem:[%s0]]
  %s2 = scalar_lea.smem %s0, 1
  %s3 = sld [smem:[%s2]]
  %s4 = scalar_lea.smem %s0, 2
  %s5 = sld [smem:[%s4]]
  %s6 = scalar_lea.smem %s0, 3
  %s7 = sld [smem:[%s6]]
  %s8 = scalar_lea.smem %s0, 4
  %s9 = sld [smem:[%s8]]
  %s10 = scalar_lea.smem %s0, 5
  %s11 = sld [smem:[%s10]]
  %s12 = scalar_lea.smem %s0, 6
  %s13 = sld [smem:[%s12]]
  %s14 = scalar_lea.smem %s0, 7
  %s15 = sld [smem:[%s14]]
  %s16 = scalar_lea.smem %s0, 8
  %s17 = sld [smem:[%s16]]
  %s18 = scalar_lea.smem %s0, 9
  %s19 = sld [smem:[%s18]]
  %s20 = scalar_lea.smem %s0, 10
  %s21 = sld [smem:[%s20]]
  %s22 = scalar_lea.smem %s0, 11
  %s23 = sld [smem:[%s22]]
  %s24 = scalar_lea.smem %s0, 12
  %s25 = sld [smem:[%s24]]
  %s26 = scalar_lea.smem %s0, 13
  %s27 = sld [smem:[%s26]]
  %s28 = scalar_lea.smem %s0, 14
  %s29 = sld [smem:[%s28]]
  %s30 = scalar_lea.smem %s0, 15
  %s31 = sld [smem:[%s30]]
  %s32 = scalar_lea.smem %s0, 16
  %s33 = sld [smem:[%s32]]
  %s34 = scalar_lea.smem %s0, 17
  %s35 = sld [smem:[%s34]]
  %s36 = scalar_lea.smem %s0, 18
  %s37 = sld [smem:[%s36]]
  %s38 = scalar_lea.smem %s0, 19
  %s39 = sld [smem:[%s38]]
  %s40 = scalar_lea.smem %s0, 20
  %s41 = sld [smem:[%s40]]
  %s42 = scalar_lea.smem %s0, 21
  %s43 = sld [smem:[%s42]]
  %s44 = scalar_lea.smem %s0, 22
  %s45 = sld [smem:[%s44]]
  %s46 = scalar_lea.smem %s0, 23
  %s47 = sld [smem:[%s46]]
  %s48 = scalar_lea.smem %s0, 24
  %s49 = sld [smem:[%s48]]
  %s50 = scalar_lea.smem %s0, 25
  %s51 = sld [smem:[%s50]]
  %s52 = scalar_lea.smem %s0, 26
  %s53 = sld [smem:[%s52]]
  %s54 = scalar_lea.smem %s0, 27
  %s55 = sld [smem:[%s54]]
  %s56 = scalar_lea.smem %s0, 28
  %s57 = sld [smem:[%s56]]
  %s58 = scalar_lea.smem %s0, 29
  %s59 = sld [smem:[%s58]]
  %60 = xla_tuple %s55, %s57, %s59
  %s61 = sld [smem:[#allocation0]]
  $region174: #{tpu_custom_call.1} parent=0
    _
  %s63 = ssub.s32 1, %s61
  %s64 = scalar_select 0, %s63, %s61
  $region1: #{tpu_custom_call.1} parent=0
    #allocation3 [shape = 'u8[512]{0}', space=smem, size = 0x200, scoped, tag = 'input window, operand 0, single buffered']
    #allocation4 [shape = 's32[1]{0}', space=sflag, size = 0x4, scoped, tag = 'scoped memory for tpu_custom_call.1']
    #allocation5 [shape = 's32[1]{0}', space=sflag, size = 0x4, scoped, tag = 'scoped memory for tpu_custom_call.1']
    #allocation6 [shape = 's32[1]{0}', space=sflag, size = 0x4, scoped, tag = 'scoped memory for tpu_custom_call.1']
    #allocation7 [shape = 'u8[8192]{0}', space=vmem, size = 0x2000, scoped, tag = 'input window, operand 1, single buffered']
    #allocation8 [shape = 'u8[8192]{0}', space=vmem, size = 0x2000, scoped, tag = 'input window, operand 2, single buffered']
    #allocation9 [shape = 's32[1]{0}', space=sflag, size = 0x4, scoped, tag = 'scoped memory for tpu_custom_call.1']
    #allocation10 [shape = 'u8[8192]{0}', space=vmem, size = 0x2000, scoped, tag = 'input window, operand 3, single buffered']
    #allocation11 [shape = 'u8[512]{0}', space=vmem, size = 0x400, scoped, tag = 'input window, operand 6, single buffered']
    #allocation12 [shape = 's32[1]{0}', space=sflag, size = 0x4, scoped, tag = 'scoped memory for tpu_custom_call.1']
    #allocation13 [shape = 'u8[512]{0}', space=vmem, size = 0x400, scoped, tag = 'input window, operand 7, single buffered']
    #allocation14 [shape = 'u8[512]{0}', space=vmem, size = 0x400, scoped, tag = 'input window, operand 9, single buffered']
    #allocation15 [shape = 's32[1]{0}', space=sflag, size = 0x4, scoped, tag = 'scoped memory for tpu_custom_call.1']
    #allocation16 [shape = 'u8[512]{0}', space=vmem, size = 0x400, scoped, tag = 'input window, operand 10, single buffered']
    #allocation17 [shape = 'u8[512]{0}', space=vmem, size = 0x400, scoped, tag = 'input window, operand 11, single buffered']
    #allocation18 [shape = 's32[1]{0}', space=sflag, size = 0x4, scoped, tag = 'scoped memory for tpu_custom_call.1']
    #allocation19 [shape = 'u8[16384]{0}', space=vmem, size = 0x4000, scoped, tag = 'input window, operand 23, single buffered']
    #allocation20 [shape = 'u8[24576]{0}', space=vmem, size = 0x6000, scoped, tag = 'output window, operand 0, single buffered']
    #allocation21 [shape = 'u8[8192]{0}', space=vmem, size = 0x2000, scoped, tag = 'output window, operand 1, single buffered']
    #allocation22 [shape = 's32[1]{0}', space=sflag, size = 0x4, scoped, tag = 'scoped memory for tpu_custom_call.1']
    #allocation23 [shape = 'u8[8192]{0}', space=vmem, size = 0x2000, scoped, tag = 'output window, operand 2, single buffered']
    %65 = vsyncpa [#allocation6], 0
    %66 = vsyncpa [#allocation4], 0
    %67 = vsyncpa [#allocation9], 0
    %68 = vsyncpa [#allocation12], 0
    %69 = vsyncpa [#allocation15], 0
    %70 = vsyncpa [#allocation18], 0
    %71 = vsyncpa [#allocation5], 0
    %72 = vsyncpa [#allocation22], 0
    // Predicated region
    $region2: #{tpu_custom_call.1} parent=1 // pred_check
      _
    $region3: #{tpu_custom_call.1} parent=1 // pred_check_branch
      %74 = sbr.rel (0) target = $region5
    $region4: #{tpu_custom_call.1} parent=1 // pred_region
      %76 = vsyncadd [#allocation6], 0
      %s78 = sshll.u32 %s1, 4
      %s79 = int_to_ptr.hbm [resolvable:$true] %s78
      %81 = dma.hbm_to_smem %s79, 16, [#allocation3], [#allocation6]
    $region5: #{tpu_custom_call.1} parent=1 // pred_fallthru
      _
    // Predicated region
    $region6: #{tpu_custom_call.1} parent=1 // pred_check
      _
    $region7: #{tpu_custom_call.1} parent=1 // pred_check_branch
      %83 = sbr.rel (0) target = $region9
    $region8: #{tpu_custom_call.1} parent=1 // pred_region
      %85 = vsyncadd [#allocation4], 0
      %s86 = sshll.u32 %s3, 4
      %s87 = int_to_ptr.hbm [resolvable:$true] %s86
      %s88 = sshll.u32 [#allocation7], 4
      %s89 = int_to_ptr.vmem [resolvable:$true] %s88
      %94 = dma.hbm_to_vmem [thread:$0]  %s87, 256, %s89, [#allocation4], 128, 128, 8
    $region9: #{tpu_custom_call.1} parent=1 // pred_fallthru
      _
    // Predicated region
    $region10: #{tpu_custom_call.1} parent=1 // pred_check
      _
    $region11: #{tpu_custom_call.1} parent=1 // pred_check_branch
      %96 = sbr.rel (0) target = $region13
    $region12: #{tpu_custom_call.1} parent=1 // pred_region
      %98 = vsyncadd [#allocation9], 0
      %s99 = sshll.u32 %s5, 4
      %s100 = int_to_ptr.hbm [resolvable:$true] %s99
      %s101 = sshll.u32 [#allocation8], 4
      %s102 = int_to_ptr.vmem [resolvable:$true] %s101
      %107 = dma.hbm_to_vmem [thread:$0]  %s100, 256, %s102, [#allocation9], 128, 128, 8
    $region13: #{tpu_custom_call.1} parent=1 // pred_fallthru
      _
    // Predicated region
    $region14: #{tpu_custom_call.1} parent=1 // pred_check
      _
    $region15: #{tpu_custom_call.1} parent=1 // pred_check_branch
      %109 = sbr.rel (0) target = $region17
    $region16: #{tpu_custom_call.1} parent=1 // pred_region
      %111 = vsyncadd [#allocation9], 0
      %s112 = sshll.u32 %s7, 4
      %s113 = int_to_ptr.hbm [resolvable:$true] %s112
      %s114 = sshll.u32 [#allocation10], 4
      %s115 = int_to_ptr.vmem [resolvable:$true] %s114
      %120 = dma.hbm_to_vmem [thread:$0]  %s113, 256, %s115, [#allocation9], 128, 128, 8
    $region17: #{tpu_custom_call.1} parent=1 // pred_fallthru
      _
    // Predicated region
    $region18: #{tpu_custom_call.1} parent=1 // pred_check
      _
    $region19: #{tpu_custom_call.1} parent=1 // pred_check_branch
      %122 = sbr.rel (0) target = $region21
    $region20: #{tpu_custom_call.1} parent=1 // pred_region
      _
    $region21: #{tpu_custom_call.1} parent=1 // pred_fallthru
      _
    // Predicated region
    $region22: #{tpu_custom_call.1} parent=1 // pred_check
      _
    $region23: #{tpu_custom_call.1} parent=1 // pred_check_branch
      %124 = sbr.rel (0) target = $region25
    $region24: #{tpu_custom_call.1} parent=1 // pred_region
      _
    $region25: #{tpu_custom_call.1} parent=1 // pred_fallthru
      _
    // Predicated region
    $region26: #{tpu_custom_call.1} parent=1 // pred_check
      _
    $region27: #{tpu_custom_call.1} parent=1 // pred_check_branch
      %126 = sbr.rel (0) target = $region29
    $region28: #{tpu_custom_call.1} parent=1 // pred_region
      %128 = vsyncadd [#allocation12], 0
      %s130 = sshll.u32 %s13, 4
      %s131 = int_to_ptr.hbm [resolvable:$true] %s130
      %s132 = sshll.u32 [#allocation11], 4
      %s133 = int_to_ptr.vmem [resolvable:$true] %s132
      %135 = dma.hbm_to_vmem [thread:$0]  %s131, 16, %s133, [#allocation12]
    $region29: #{tpu_custom_call.1} parent=1 // pred_fallthru
      _
    // Predicated region
    $region30: #{tpu_custom_call.1} parent=1 // pred_check
      _
    $region31: #{tpu_custom_call.1} parent=1 // pred_check_branch
      %137 = sbr.rel (0) target = $region33
    $region32: #{tpu_custom_call.1} parent=1 // pred_region
      %139 = vsyncadd [#allocation12], 0
      %s141 = sshll.u32 %s15, 4
      %s142 = int_to_ptr.hbm [resolvable:$true] %s141
      %s143 = sshll.u32 [#allocation13], 4
      %s144 = int_to_ptr.vmem [resolvable:$true] %s143
      %146 = dma.hbm_to_vmem [thread:$0]  %s142, 16, %s144, [#allocation12]
    $region33: #{tpu_custom_call.1} parent=1 // pred_fallthru
      _
    // Predicated region
    $region34: #{tpu_custom_call.1} parent=1 // pred_check
      _
    $region35: #{tpu_custom_call.1} parent=1 // pred_check_branch
      %148 = sbr.rel (0) target = $region37
    $region36: #{tpu_custom_call.1} parent=1 // pred_region
      _
    $region37: #{tpu_custom_call.1} parent=1 // pred_fallthru
      _
    // Predicated region
    $region38: #{tpu_custom_call.1} parent=1 // pred_check
      _
    $region39: #{tpu_custom_call.1} parent=1 // pred_check_branch
      %150 = sbr.rel (0) target = $region41
    $region40: #{tpu_custom_call.1} parent=1 // pred_region
      %152 = vsyncadd [#allocation15], 0
      %s154 = sshll.u32 %s19, 4
      %s155 = int_to_ptr.hbm [resolvable:$true] %s154
      %s156 = sshll.u32 [#allocation14], 4
      %s157 = int_to_ptr.vmem [resolvable:$true] %s156
      %159 = dma.hbm_to_vmem [thread:$0]  %s155, 16, %s157, [#allocation15]
    $region41: #{tpu_custom_call.1} parent=1 // pred_fallthru
      _
    // Predicated region
    $region42: #{tpu_custom_call.1} parent=1 // pred_check
      _
    $region43: #{tpu_custom_call.1} parent=1 // pred_check_branch
      %161 = sbr.rel (0) target = $region45
    $region44: #{tpu_custom_call.1} parent=1 // pred_region
      %163 = vsyncadd [#allocation15], 0
      %s165 = sshll.u32 %s21, 4
      %s166 = int_to_ptr.hbm [resolvable:$true] %s165
      %s167 = sshll.u32 [#allocation16], 4
      %s168 = int_to_ptr.vmem [resolvable:$true] %s167
      %170 = dma.hbm_to_vmem [thread:$0]  %s166, 16, %s168, [#allocation15]
    $region45: #{tpu_custom_call.1} parent=1 // pred_fallthru
      _
    // Predicated region
    $region46: #{tpu_custom_call.1} parent=1 // pred_check
      _
    $region47: #{tpu_custom_call.1} parent=1 // pred_check_branch
      %172 = sbr.rel (0) target = $region49
    $region48: #{tpu_custom_call.1} parent=1 // pred_region
      %174 = vsyncadd [#allocation18], 0
      %s176 = sshll.u32 %s23, 4
      %s177 = int_to_ptr.hbm [resolvable:$true] %s176
      %s178 = sshll.u32 [#allocation17], 4
      %s179 = int_to_ptr.vmem [resolvable:$true] %s178
      %181 = dma.hbm_to_vmem [thread:$0]  %s177, 16, %s179, [#allocation18]
    $region49: #{tpu_custom_call.1} parent=1 // pred_fallthru
      _
    // Predicated region
    $region50: #{tpu_custom_call.1} parent=1 // pred_check
      _
    $region51: #{tpu_custom_call.1} parent=1 // pred_check_branch
      %183 = sbr.rel (0) target = $region53
    $region52: #{tpu_custom_call.1} parent=1 // pred_region
      _
    $region53: #{tpu_custom_call.1} parent=1 // pred_fallthru
      _
    // Predicated region
    $region54: #{tpu_custom_call.1} parent=1 // pred_check
      _
    $region55: #{tpu_custom_call.1} parent=1 // pred_check_branch
      %185 = sbr.rel (0) target = $region57
    $region56: #{tpu_custom_call.1} parent=1 // pred_region
      _
    $region57: #{tpu_custom_call.1} parent=1 // pred_fallthru
      _
    // Predicated region
    $region58: #{tpu_custom_call.1} parent=1 // pred_check
      _
    $region59: #{tpu_custom_call.1} parent=1 // pred_check_branch
      %187 = sbr.rel (0) target = $region61
    $region60: #{tpu_custom_call.1} parent=1 // pred_region
      _
    $region61: #{tpu_custom_call.1} parent=1 // pred_fallthru
      _
    // Predicated region
    $region62: #{tpu_custom_call.1} parent=1 // pred_check
      _
    $region63: #{tpu_custom_call.1} parent=1 // pred_check_branch
      %189 = sbr.rel (0) target = $region65
    $region64: #{tpu_custom_call.1} parent=1 // pred_region
      _
    $region65: #{tpu_custom_call.1} parent=1 // pred_fallthru
      _
    // Predicated region
    $region66: #{tpu_custom_call.1} parent=1 // pred_check
      _
    $region67: #{tpu_custom_call.1} parent=1 // pred_check_branch
      %191 = sbr.rel (0) target = $region69
    $region68: #{tpu_custom_call.1} parent=1 // pred_region
      _
    $region69: #{tpu_custom_call.1} parent=1 // pred_fallthru
      _
    // Predicated region
    $region70: #{tpu_custom_call.1} parent=1 // pred_check
      _
    $region71: #{tpu_custom_call.1} parent=1 // pred_check_branch
      %193 = sbr.rel (0) target = $region73
    $region72: #{tpu_custom_call.1} parent=1 // pred_region
      _
    $region73: #{tpu_custom_call.1} parent=1 // pred_fallthru
      _
    // Predicated region
    $region74: #{tpu_custom_call.1} parent=1 // pred_check
      _
    $region75: #{tpu_custom_call.1} parent=1 // pred_check_branch
      %195 = sbr.rel (0) target = $region77
    $region76: #{tpu_custom_call.1} parent=1 // pred_region
      _
    $region77: #{tpu_custom_call.1} parent=1 // pred_fallthru
      _
    // Predicated region
    $region78: #{tpu_custom_call.1} parent=1 // pred_check
      _
    $region79: #{tpu_custom_call.1} parent=1 // pred_check_branch
      %197 = sbr.rel (0) target = $region81
    $region80: #{tpu_custom_call.1} parent=1 // pred_region
      _
    $region81: #{tpu_custom_call.1} parent=1 // pred_fallthru
      _
    // Predicated region
    $region82: #{tpu_custom_call.1} parent=1 // pred_check
      _
    $region83: #{tpu_custom_call.1} parent=1 // pred_check_branch
      %199 = sbr.rel (0) target = $region85
    $region84: #{tpu_custom_call.1} parent=1 // pred_region
      _
    $region85: #{tpu_custom_call.1} parent=1 // pred_fallthru
      _
    // Predicated region
    $region86: #{tpu_custom_call.1} parent=1 // pred_check
      _
    $region87: #{tpu_custom_call.1} parent=1 // pred_check_branch
      %201 = sbr.rel (0) target = $region89
    $region88: #{tpu_custom_call.1} parent=1 // pred_region
      _
    $region89: #{tpu_custom_call.1} parent=1 // pred_fallthru
      _
    // Predicated region
    $region90: #{tpu_custom_call.1} parent=1 // pred_check
      _
    $region91: #{tpu_custom_call.1} parent=1 // pred_check_branch
      %203 = sbr.rel (0) target = $region93
    $region92: #{tpu_custom_call.1} parent=1 // pred_region
      _
    $region93: #{tpu_custom_call.1} parent=1 // pred_fallthru
      _
    // Predicated region
    $region94: #{tpu_custom_call.1} parent=1 // pred_check
      _
    $region95: #{tpu_custom_call.1} parent=1 // pred_check_branch
      %205 = sbr.rel (0) target = $region97
    $region96: #{tpu_custom_call.1} parent=1 // pred_region
      %207 = vsyncadd [#allocation18], 0
      %s208 = sshll.u32 %s47, 4
      %s209 = int_to_ptr.hbm [resolvable:$true] %s208
      %s210 = sshll.u32 [#allocation19], 4
      %s211 = int_to_ptr.vmem [resolvable:$true] %s210
      %216 = dma.hbm_to_vmem [thread:$0]  %s209, 512, %s211, [#allocation18], 128, 128, 8
    $region97: #{tpu_custom_call.1} parent=1 // pred_fallthru
      _
    // Predicated region
    $region98: #{tpu_custom_call.1} parent=1 // pred_check
      _
    $region99: #{tpu_custom_call.1} parent=1 // pred_check_branch
      %218 = sbr.rel (0) target = $region101
    $region100: #{tpu_custom_call.1} parent=1 // pred_region
      _
    $region101: #{tpu_custom_call.1} parent=1 // pred_fallthru
      _
    // Predicated region
    $region102: #{tpu_custom_call.1} parent=1 // pred_check
      _
    $region103: #{tpu_custom_call.1} parent=1 // pred_check_branch
      %220 = sbr.rel (0) target = $region105
    $region104: #{tpu_custom_call.1} parent=1 // pred_region
      _
    $region105: #{tpu_custom_call.1} parent=1 // pred_fallthru
      _
    // Predicated region
    $region106: #{tpu_custom_call.1} parent=1 // pred_check
      _
    $region107: #{tpu_custom_call.1} parent=1 // pred_check_branch
      %222 = sbr.rel (0) target = $region109
    $region108: #{tpu_custom_call.1} parent=1 // pred_region
      _
    $region109: #{tpu_custom_call.1} parent=1 // pred_fallthru
      _
    // Predicated region
    $region110: #{tpu_custom_call.1} parent=1 // pred_check
      _
    $region111: #{tpu_custom_call.1} parent=1 // pred_check_branch
      %224 = sbr.rel (0) target = $region113
    $region112: #{tpu_custom_call.1} parent=1 // pred_region
      %226 = dma.done [#allocation6], 16
    $region113: #{tpu_custom_call.1} parent=1 // pred_fallthru
      _
    // Predicated region
    $region114: #{tpu_custom_call.1} parent=1 // pred_check
      _
    $region115: #{tpu_custom_call.1} parent=1 // pred_check_branch
      %228 = sbr.rel (0) target = $region117
    $region116: #{tpu_custom_call.1} parent=1 // pred_region
      %230 = dma.done [#allocation4], 256
    $region117: #{tpu_custom_call.1} parent=1 // pred_fallthru
      _
    // Predicated region
    $region118: #{tpu_custom_call.1} parent=1 // pred_check
      _
    $region119: #{tpu_custom_call.1} parent=1 // pred_check_branch
      %232 = sbr.rel (0) target = $region121
    $region120: #{tpu_custom_call.1} parent=1 // pred_region
      %234 = dma.done [#allocation9], 256
    $region121: #{tpu_custom_call.1} parent=1 // pred_fallthru
      _
    // Predicated region
    $region122: #{tpu_custom_call.1} parent=1 // pred_check
      _
    $region123: #{tpu_custom_call.1} parent=1 // pred_check_branch
      %236 = sbr.rel (0) target = $region125
    $region124: #{tpu_custom_call.1} parent=1 // pred_region
      %238 = dma.done [#allocation9], 256
    $region125: #{tpu_custom_call.1} parent=1 // pred_fallthru
      _
    // Predicated region
    $region126: #{tpu_custom_call.1} parent=1 // pred_check
      _
    $region127: #{tpu_custom_call.1} parent=1 // pred_check_branch
      %240 = sbr.rel (0) target = $region129
    $region128: #{tpu_custom_call.1} parent=1 // pred_region
      %242 = dma.done [#allocation12], 16
    $region129: #{tpu_custom_call.1} parent=1 // pred_fallthru
      _
    // Predicated region
    $region130: #{tpu_custom_call.1} parent=1 // pred_check
      _
    $region131: #{tpu_custom_call.1} parent=1 // pred_check_branch
      %244 = sbr.rel (0) target = $region133
    $region132: #{tpu_custom_call.1} parent=1 // pred_region
      %246 = dma.done [#allocation12], 16
    $region133: #{tpu_custom_call.1} parent=1 // pred_fallthru
      _
    // Predicated region
    $region134: #{tpu_custom_call.1} parent=1 // pred_check
      _
    $region135: #{tpu_custom_call.1} parent=1 // pred_check_branch
      %248 = sbr.rel (0) target = $region137
    $region136: #{tpu_custom_call.1} parent=1 // pred_region
      %250 = dma.done [#allocation15], 16
    $region137: #{tpu_custom_call.1} parent=1 // pred_fallthru
      _
    // Predicated region
    $region138: #{tpu_custom_call.1} parent=1 // pred_check
      _
    $region139: #{tpu_custom_call.1} parent=1 // pred_check_branch
      %252 = sbr.rel (0) target = $region141
    $region140: #{tpu_custom_call.1} parent=1 // pred_region
      %254 = dma.done [#allocation15], 16
    $region141: #{tpu_custom_call.1} parent=1 // pred_fallthru
      _
    // Predicated region
    $region142: #{tpu_custom_call.1} parent=1 // pred_check
      _
    $region143: #{tpu_custom_call.1} parent=1 // pred_check_branch
      %256 = sbr.rel (0) target = $region145
    $region144: #{tpu_custom_call.1} parent=1 // pred_region
      %258 = dma.done [#allocation18], 16
    $region145: #{tpu_custom_call.1} parent=1 // pred_fallthru
      _
    // Predicated region
    $region146: #{tpu_custom_call.1} parent=1 // pred_check
      _
    $region147: #{tpu_custom_call.1} parent=1 // pred_check_branch
      %260 = sbr.rel (0) target = $region149
    $region148: #{tpu_custom_call.1} parent=1 // pred_region
      %262 = dma.done [#allocation18], 512
    $region149: #{tpu_custom_call.1} parent=1 // pred_fallthru
      _
    %263 = sfence
    %s264 = sld [smem:[#allocation3]]
    %s265 = sld [smem:[#allocation3 + $0x1]]
    %s266 = sld [smem:[#allocation3 + $0x2]]
    %v267 = vld [vmem:[#allocation7] sm:$0xff]
    %v268 = vld [vmem:[#allocation7 + $0x8] sm:$0xff]
    %v269 = vld [vmem:[%s9] sm:$0xff]
    %v270 = vld [vmem:[%s9 + $0x8] sm:$0xff]
    %v271 = vld [vmem:[%s9 + $0x10] sm:$0xff]
    %v272 = vld [vmem:[%s9 + $0x18] sm:$0xff]
    %v273 = vld [vmem:[%s11] sm:$0x1]
    %v275 = vperm.slane %v273, 0
    %vm277 = vcmask 261120
    %v279 = vsel %vm277, %v267, 0
    %v282 = vsel %vm277, %v268, 0
    %284 = vmatpush.msra.mxu0 0.0
    %285 = vmatpush.msra.mxu0 0.0
    %286 = vmatpush.msra.mxu0 0.0
    %287 = vmatpush.msra.mxu0 0.0
    %288 = vmatpush.msra.mxu0 0.0
    %289 = vmatpush.msra.mxu0 0.0
    %290 = vmatpush.msra.mxu0 0.0
    %291 = vmatpush.msra.mxu0 0.0
    %292 = vmatpush.msra.mxu0 0.0
    %293 = vmatpush.msra.mxu0 0.0
    %294 = vmatpush.msra.mxu0 0.0
    %295 = vmatpush.msra.mxu0 0.0
    %296 = vmatpush.msra.mxu0 %v272
    %297 = vmatpush.msra.mxu0 %v271
    %298 = vmatpush.msra.mxu0 %v270
    %299 = vmatpush.msra.mxu0 %v269
    %300 = vmatmul.f32.gmra.mxu0 %v279
    %v301 = vpop.f32.mrf.mxu0
    %v302 = vadd.f32 %v275, %v301
    %303 = vmatmul.f32.gmra.mxu0 %v282
    %v304 = vpop.f32.mrf.mxu0
    %v305 = vadd.f32 %v275, %v304
    %306 = vdwg.mxu0
    %v307 = vld [vmem:[#allocation11] sm:$0x1]
    %v308 = vld [vmem:[#allocation13] sm:$0x1]
    %v309 = vsel %vm277, %v302, 0.0
    %310 = vadd.xlane.f32.xlu0 %v309
    %v311 = vpop.xlane.xlu0 %310
    %v312 = vsel %vm277, %v305, 0.0
    %313 = vadd.xlane.f32.xlu0 %v312
    %v314 = vpop.xlane.xlu0 %313
    %v315 = vrcp.pop 32.0
    %v316 = vmul.f32 32.0, %v315
    %v317 = vsub.f32 1.0, %v316
    %v318 = vmul.f32 %v315, %v317
    %v319 = vadd.f32 %v315, %v318
    %vm320 = vweird.f32 %v315
    %v321 = vsel %vm320, %v315, %v319
    %v322 = vmul.f32 %v311, %v321
    %v323 = vmul.f32 %v314, %v321
    %v324 = vsub.f32 %v302, %v322
    %v325 = vsub.f32 %v305, %v323
    %v326 = vmul.f32 %v324, %v324
    %v327 = vmul.f32 %v325, %v325
    %v328 = vsel %vm277, %v326, 0.0
    %329 = vadd.xlane.f32.xlu0 %v328
    %v330 = vpop.xlane.xlu0 %329
    %v331 = vsel %vm277, %v327, 0.0
    %332 = vadd.xlane.f32.xlu0 %v331
    %v333 = vpop.xlane.xlu0 %332
    %v334 = vmul.f32 %v330, %v321
    %v335 = vmul.f32 %v333, %v321
    %v336 = vadd.f32 %v334, 1e-05
    %v337 = vadd.f32 %v335, 1e-05
    %v338 = vrsqrt.pop %v336
    %v339 = vmul.f32 %v338, %v336
    %v340 = vmul.f32 %v339, %v338
    %v341 = vmul.f32 0.5, %v340
    %v342 = vsub.f32 1.5, %v341
    %v343 = vmul.f32 %v338, %v342
    %vm344 = vweird.f32 %v336
    %vm345 = vweird.f32 %v338
    %vm346 = vmor %vm344, %vm345
    %v347 = vsel %vm346, %v338, %v343
    %v348 = vrsqrt.pop %v337
    %v349 = vmul.f32 %v348, %v337
    %v350 = vmul.f32 %v349, %v348
    %v351 = vmul.f32 0.5, %v350
    %v352 = vsub.f32 1.5, %v351
    %v353 = vmul.f32 %v348, %v352
    %vm354 = vweird.f32 %v337
    %vm355 = vweird.f32 %v348
    %vm356 = vmor %vm354, %vm355
    %v357 = vsel %vm356, %v348, %v353
    %v358 = vmul.f32 %v324, %v347
    %v359 = vmul.f32 %v325, %v357
    %v361 = vperm.slane %v307, 0
    %v363 = vmul.f32 %v358, %v361
    %v364 = vmul.f32 %v359, %v361
    %v366 = vperm.slane %v308, 0
    %v368 = vadd.f32 %v363, %v366
    %v369 = vadd.f32 %v364, %v366
    %v370 = vxor.u32 %v368, 2147483648
    %v371 = vxor.u32 %v369, 2147483648
    %v372 = vmul.f32 %v370, 1.442695
    %v373 = vpow.pop %v372
    %v374 = vmul.f32 %v371, 1.442695
    %v375 = vpow.pop %v374
    %v376 = vadd.f32 %v373, 1.0
    %v377 = vadd.f32 %v375, 1.0
    %v378 = vrcp.pop %v376
    %v379 = vmul.f32 %v376, %v378
    %v380 = vsub.f32 1.0, %v379
    %v381 = vmul.f32 %v378, %v380
    %v382 = vadd.f32 %v378, %v381
    %vm383 = vweird.f32 %v376
    %vm384 = vweird.f32 %v378
    %vm385 = vmor %vm383, %vm384
    %v386 = vsel %vm385, %v378, %v382
    %v387 = vand.u32 2147483647, %v376
    %vm388 = vcmp.eq.f32.partialorder %v387, 8.507059e+37
    %v389 = vand.u32 %v376, 2147483648
    %v390 = vor.u32 1.1754944e-38, %v389
    %v391 = vsel %vm388, %v390, %v386
    %v392 = vmul.f32 1.0, %v391
    %v393 = vrcp.pop %v377
    %v394 = vmul.f32 %v377, %v393
    %v395 = vsub.f32 1.0, %v394
    %v396 = vmul.f32 %v393, %v395
    %v397 = vadd.f32 %v393, %v396
    %vm398 = vweird.f32 %v377
    %vm399 = vweird.f32 %v393
    %vm400 = vmor %vm398, %vm399
    %v401 = vsel %vm400, %v393, %v397
    %v402 = vand.u32 2147483647, %v377
    %vm403 = vcmp.eq.f32.partialorder %v402, 8.507059e+37
    %v404 = vand.u32 %v377, 2147483648
    %v405 = vor.u32 1.1754944e-38, %v404
    %v406 = vsel %vm403, %v405, %v401
    %v407 = vmul.f32 1.0, %v406
    %v408 = vmul.f32 %v368, %v392
    %v409 = vmul.f32 %v369, %v407
    %v410 = vld [vmem:[%s17] sm:$0xff]
    %v411 = vld [vmem:[%s17 + $0x8] sm:$0xff]
    %v412 = vld [vmem:[%s17 + $0x10] sm:$0xff]
    %v413 = vld [vmem:[%s17 + $0x18] sm:$0xff]
    %v414 = vld [vmem:[#allocation14] sm:$0x1]
    %v416 = vperm.slane %v414, 0
    %v419 = vsel %vm277, %v408, 0
    %v422 = vsel %vm277, %v409, 0
    %424 = vmatpush.msra.mxu0 0.0
    %425 = vmatpush.msra.mxu0 0.0
    %426 = vmatpush.msra.mxu0 0.0
    %427 = vmatpush.msra.mxu0 0.0
    %428 = vmatpush.msra.mxu0 0.0
    %429 = vmatpush.msra.mxu0 0.0
    %430 = vmatpush.msra.mxu0 0.0
    %431 = vmatpush.msra.mxu0 0.0
    %432 = vmatpush.msra.mxu0 0.0
    %433 = vmatpush.msra.mxu0 0.0
    %434 = vmatpush.msra.mxu0 0.0
    %435 = vmatpush.msra.mxu0 0.0
    %436 = vmatpush.msra.mxu0 %v413
    %437 = vmatpush.msra.mxu0 %v412
    %438 = vmatpush.msra.mxu0 %v411
    %439 = vmatpush.msra.mxu0 %v410
    %440 = vmatmul.f32.gmra.mxu0 %v419
    %v441 = vpop.f32.mrf.mxu0
    %v442 = vadd.f32 %v416, %v441
    %443 = vmatmul.f32.gmra.mxu0 %v422
    %v444 = vpop.f32.mrf.mxu0
    %v445 = vadd.f32 %v416, %v444
    %446 = vdwg.mxu0
    %v447 = vld [vmem:[#allocation16] sm:$0x1]
    %v448 = vld [vmem:[#allocation17] sm:$0x1]
    %v449 = vsel %vm277, %v442, 0.0
    %450 = vadd.xlane.f32.xlu0 %v449
    %v451 = vpop.xlane.xlu0 %450
    %v452 = vsel %vm277, %v445, 0.0
    %453 = vadd.xlane.f32.xlu0 %v452
    %v454 = vpop.xlane.xlu0 %453
    %v455 = vmul.f32 %v451, %v321
    %v456 = vmul.f32 %v454, %v321
    %v457 = vsub.f32 %v442, %v455
    %v458 = vsub.f32 %v445, %v456
    %v459 = vmul.f32 %v457, %v457
    %v460 = vmul.f32 %v458, %v458
    %v461 = vsel %vm277, %v459, 0.0
    %462 = vadd.xlane.f32.xlu0 %v461
    %v463 = vpop.xlane.xlu0 %462
    %v464 = vsel %vm277, %v460, 0.0
    %465 = vadd.xlane.f32.xlu0 %v464
    %v466 = vpop.xlane.xlu0 %465
    %v467 = vmul.f32 %v463, %v321
    %v468 = vmul.f32 %v466, %v321
    %v469 = vadd.f32 %v467, 1e-05
    %v470 = vadd.f32 %v468, 1e-05
    %v471 = vrsqrt.pop %v469
    %v472 = vmul.f32 %v471, %v469
    %v473 = vmul.f32 %v472, %v471
    %v474 = vmul.f32 0.5, %v473
    %v475 = vsub.f32 1.5, %v474
    %v476 = vmul.f32 %v471, %v475
    %vm477 = vweird.f32 %v469
    %vm478 = vweird.f32 %v471
    %vm479 = vmor %vm477, %vm478
    %v480 = vsel %vm479, %v471, %v476
    %v481 = vrsqrt.pop %v470
    %v482 = vmul.f32 %v481, %v470
    %v483 = vmul.f32 %v482, %v481
    %v484 = vmul.f32 0.5, %v483
    %v485 = vsub.f32 1.5, %v484
    %v486 = vmul.f32 %v481, %v485
    %vm487 = vweird.f32 %v470
    %vm488 = vweird.f32 %v481
    %vm489 = vmor %vm487, %vm488
    %v490 = vsel %vm489, %v481, %v486
    %v491 = vmul.f32 %v457, %v480
    %v492 = vmul.f32 %v458, %v490
    %v494 = vperm.slane %v447, 0
    %v496 = vmul.f32 %v491, %v494
    %v497 = vmul.f32 %v492, %v494
    %v499 = vperm.slane %v448, 0
    %v501 = vadd.f32 %v496, %v499
    %v502 = vadd.f32 %v497, %v499
    %v503 = vxor.u32 %v501, 2147483648
    %v504 = vxor.u32 %v502, 2147483648
    %v505 = vmul.f32 %v503, 1.442695
    %v506 = vpow.pop %v505
    %v507 = vmul.f32 %v504, 1.442695
    %v508 = vpow.pop %v507
    %v509 = vadd.f32 %v506, 1.0
    %v510 = vadd.f32 %v508, 1.0
    %v511 = vrcp.pop %v509
    %v512 = vmul.f32 %v509, %v511
    %v513 = vsub.f32 1.0, %v512
    %v514 = vmul.f32 %v511, %v513
    %v515 = vadd.f32 %v511, %v514
    %vm516 = vweird.f32 %v509
    %vm517 = vweird.f32 %v511
    %vm518 = vmor %vm516, %vm517
    %v519 = vsel %vm518, %v511, %v515
    %v520 = vand.u32 2147483647, %v509
    %vm521 = vcmp.eq.f32.partialorder %v520, 8.507059e+37
    %v522 = vand.u32 %v509, 2147483648
    %v523 = vor.u32 1.1754944e-38, %v522
    %v524 = vsel %vm521, %v523, %v519
    %v525 = vmul.f32 1.0, %v524
    %v526 = vrcp.pop %v510
    %v527 = vmul.f32 %v510, %v526
    %v528 = vsub.f32 1.0, %v527
    %v529 = vmul.f32 %v526, %v528
    %v530 = vadd.f32 %v526, %v529
    %vm531 = vweird.f32 %v510
    %vm532 = vweird.f32 %v526
    %vm533 = vmor %vm531, %vm532
    %v534 = vsel %vm533, %v526, %v530
    %v535 = vand.u32 2147483647, %v510
    %vm536 = vcmp.eq.f32.partialorder %v535, 8.507059e+37
    %v537 = vand.u32 %v510, 2147483648
    %v538 = vor.u32 1.1754944e-38, %v537
    %v539 = vsel %vm536, %v538, %v534
    %v540 = vmul.f32 1.0, %v539
    %v541 = vmul.f32 %v501, %v525
    %v542 = vmul.f32 %v502, %v540
    %v543 = vld [vmem:[#allocation8] sm:$0xff]
    %v544 = vld [vmem:[#allocation8 + $0x8] sm:$0xff]
    %v545 = vld [vmem:[#allocation10] sm:$0xff]
    %v546 = vld [vmem:[#allocation10 + $0x8] sm:$0xff]
    %v547 = vsub.f32 %v541, %v543
    %v548 = vsub.f32 %v542, %v544
    %v549 = vstv %s265
    %v550 = vmul.f32 %v549, %v545
    %v551 = vmul.f32 %v549, %v546
    %v552 = vstv %s264
    %v553 = vmul.f32 %v552, %v547
    %v554 = vmul.f32 %v552, %v548
    %v555 = vsub.f32 %v550, %v553
    %v556 = vsub.f32 %v551, %v554
    %s557 = ssub.f32 1.0, %s266
    %v558 = vstv %s557
    %v559 = vmul.f32 %v558, %v543
    %v560 = vmul.f32 %v558, %v544
    %v561 = vadd.f32 %v559, %v555
    %v562 = vadd.f32 %v560, %v556
    %v563 = vmax.f32 %v561, -100000.0
    %v564 = vmax.f32 %v562, -100000.0
    %v565 = vmin.f32 %v563, 100000.0
    %v566 = vmin.f32 %v564, 100000.0
    %v567 = vmax.f32 %v555, -100000.0
    %v568 = vmax.f32 %v556, -100000.0
    %v569 = vmin.f32 %v567, 100000.0
    %v570 = vmin.f32 %v568, 100000.0
    %571 = vst.msk [vmem:[#allocation21] sm:$0xff] %vm277, %v565
    %572 = vst.msk [vmem:[#allocation21 + $0x8] sm:$0xff] %vm277, %v566
    %573 = vst.msk [vmem:[#allocation23] sm:$0xff] %vm277, %v569
    %574 = vst.msk [vmem:[#allocation23 + $0x8] sm:$0xff] %vm277, %v570
    %v575 = vld [vmem:[%s25] sm:$0xff]
    %v576 = vld [vmem:[%s25 + $0x8] sm:$0xff]
    %v577 = vld [vmem:[%s25 + $0x10] sm:$0xff]
    %v578 = vld [vmem:[%s25 + $0x18] sm:$0xff]
    %v579 = vld [vmem:[%s27] sm:$0x1]
    %v581 = vperm.slane %v579, 0
    %583 = vmatpush.msra.mxu0 0.0
    %584 = vmatpush.msra.mxu0 0.0
    %585 = vmatpush.msra.mxu0 0.0
    %586 = vmatpush.msra.mxu0 0.0
    %587 = vmatpush.msra.mxu0 0.0
    %588 = vmatpush.msra.mxu0 0.0
    %589 = vmatpush.msra.mxu0 0.0
    %590 = vmatpush.msra.mxu0 0.0
    %591 = vmatpush.msra.mxu0 0.0
    %592 = vmatpush.msra.mxu0 0.0
    %593 = vmatpush.msra.mxu0 0.0
    %594 = vmatpush.msra.mxu0 0.0
    %595 = vmatpush.msra.mxu0 %v578
    %596 = vmatpush.msra.mxu0 %v577
    %597 = vmatpush.msra.mxu0 %v576
    %598 = vmatpush.msra.mxu0 %v575
    %599 = vmatmul.f32.gmra.mxu0 %v279
    %v600 = vpop.f32.mrf.mxu0
    %v601 = vadd.f32 %v581, %v600
    %602 = vmatmul.f32.gmra.mxu0 %v282
    %v603 = vpop.f32.mrf.mxu0
    %v604 = vadd.f32 %v581, %v603
    %605 = vdwg.mxu0
    %v606 = vmul.f32 %v565, %v601
    %v607 = vmul.f32 %v566, %v604
    %v608 = vld [vmem:[%s29] sm:$0xff]
    %609 = vst.msk [vmem:[#allocation2] sm:$0xff] %vm277, %v608
    %610 = vst.msk [vmem:[#allocation2 + $0x18] sm:$0xff] %vm277, %v608
    %611 = vst.msk [vmem:[#allocation2 + $0x8] sm:$0xff] %vm277, %v606
    %612 = vst.msk [vmem:[#allocation2 + $0x20] sm:$0xff] %vm277, %v607
    %v613 = vld [vmem:[#allocation7] sm:$0xff]
    %v614 = vld [vmem:[#allocation7 + $0x8] sm:$0xff]
    %615 = vst.msk [vmem:[#allocation2 + $0x10] sm:$0xff] %vm277, %v613
    %616 = vst.msk [vmem:[#allocation2 + $0x28] sm:$0xff] %vm277, %v614
    %v617 = vld [vmem:[#allocation2] sm:$0xff]
    %v618 = vld [vmem:[#allocation2 + $0x8] sm:$0xff]
    %v619 = vld [vmem:[#allocation2 + $0x10] sm:$0xff]
    %v620 = vld [vmem:[#allocation2 + $0x18] sm:$0xff]
    %v621 = vld [vmem:[#allocation2 + $0x20] sm:$0xff]
    %v622 = vld [vmem:[#allocation2 + $0x28] sm:$0xff]
    %v623 = vld [vmem:[%s31] sm:$0x1]
    %v624 = vld [vmem:[%s33] sm:$0x1]
    %v625 = vsel %vm277, %v617, 0.0
    %626 = vadd.xlane.f32.xlu0 %v625
    %v627 = vpop.xlane.xlu0 %626
    %v628 = vsel %vm277, %v618, 0.0
    %629 = vadd.xlane.f32.xlu0 %v628
    %v630 = vpop.xlane.xlu0 %629
    %v631 = vsel %vm277, %v619, 0.0
    %632 = vadd.xlane.f32.xlu0 %v631
    %v633 = vpop.xlane.xlu0 %632
    %v634 = vsel %vm277, %v620, 0.0
    %635 = vadd.xlane.f32.xlu0 %v634
    %v636 = vpop.xlane.xlu0 %635
    %v637 = vsel %vm277, %v621, 0.0
    %638 = vadd.xlane.f32.xlu0 %v637
    %v639 = vpop.xlane.xlu0 %638
    %v640 = vsel %vm277, %v622, 0.0
    %641 = vadd.xlane.f32.xlu0 %v640
    %v642 = vpop.xlane.xlu0 %641
    %v643 = vmul.f32 %v627, %v321
    %v644 = vmul.f32 %v630, %v321
    %v645 = vmul.f32 %v633, %v321
    %v646 = vmul.f32 %v636, %v321
    %v647 = vmul.f32 %v639, %v321
    %v648 = vmul.f32 %v642, %v321
    %v649 = vsub.f32 %v617, %v643
    %v650 = vsub.f32 %v618, %v644
    %v651 = vsub.f32 %v619, %v645
    %v652 = vsub.f32 %v620, %v646
    %v653 = vsub.f32 %v621, %v647
    %v654 = vsub.f32 %v622, %v648
    %v655 = vmul.f32 %v649, %v649
    %v656 = vmul.f32 %v650, %v650
    %v657 = vmul.f32 %v651, %v651
    %v658 = vmul.f32 %v652, %v652
    %v659 = vmul.f32 %v653, %v653
    %v660 = vmul.f32 %v654, %v654
    %v661 = vsel %vm277, %v655, 0.0
    %662 = vadd.xlane.f32.xlu0 %v661
    %v663 = vpop.xlane.xlu0 %662
    %v664 = vsel %vm277, %v656, 0.0
    %665 = vadd.xlane.f32.xlu0 %v664
    %v666 = vpop.xlane.xlu0 %665
    %v667 = vsel %vm277, %v657, 0.0
    %668 = vadd.xlane.f32.xlu0 %v667
    %v669 = vpop.xlane.xlu0 %668
    %v670 = vsel %vm277, %v658, 0.0
    %671 = vadd.xlane.f32.xlu0 %v670
    %v672 = vpop.xlane.xlu0 %671
    %v673 = vsel %vm277, %v659, 0.0
    %674 = vadd.xlane.f32.xlu0 %v673
    %v675 = vpop.xlane.xlu0 %674
    %v676 = vsel %vm277, %v660, 0.0
    %677 = vadd.xlane.f32.xlu0 %v676
    %v678 = vpop.xlane.xlu0 %677
    %v679 = vmul.f32 %v663, %v321
    %v680 = vmul.f32 %v666, %v321
    %v681 = vmul.f32 %v669, %v321
    %v682 = vmul.f32 %v672, %v321
    %v683 = vmul.f32 %v675, %v321
    %v684 = vmul.f32 %v678, %v321
    %v685 = vadd.f32 %v679, 1e-05
    %v686 = vadd.f32 %v680, 1e-05
    %v687 = vadd.f32 %v681, 1e-05
    %v688 = vadd.f32 %v682, 1e-05
    %v689 = vadd.f32 %v683, 1e-05
    %v690 = vadd.f32 %v684, 1e-05
    %v691 = vrsqrt.pop %v685
    %v692 = vmul.f32 %v691, %v685
    %v693 = vmul.f32 %v692, %v691
    %v694 = vmul.f32 0.5, %v693
    %v695 = vsub.f32 1.5, %v694
    %v696 = vmul.f32 %v691, %v695
    %vm697 = vweird.f32 %v685
    %vm698 = vweird.f32 %v691
    %vm699 = vmor %vm697, %vm698
    %v700 = vsel %vm699, %v691, %v696
    %v701 = vrsqrt.pop %v686
    %v702 = vmul.f32 %v701, %v686
    %v703 = vmul.f32 %v702, %v701
    %v704 = vmul.f32 0.5, %v703
    %v705 = vsub.f32 1.5, %v704
    %v706 = vmul.f32 %v701, %v705
    %vm707 = vweird.f32 %v686
    %vm708 = vweird.f32 %v701
    %vm709 = vmor %vm707, %vm708
    %v710 = vsel %vm709, %v701, %v706
    %v711 = vrsqrt.pop %v687
    %v712 = vmul.f32 %v711, %v687
    %v713 = vmul.f32 %v712, %v711
    %v714 = vmul.f32 0.5, %v713
    %v715 = vsub.f32 1.5, %v714
    %v716 = vmul.f32 %v711, %v715
    %vm717 = vweird.f32 %v687
    %vm718 = vweird.f32 %v711
    %vm719 = vmor %vm717, %vm718
    %v720 = vsel %vm719, %v711, %v716
    %v721 = vrsqrt.pop %v688
    %v722 = vmul.f32 %v721, %v688
    %v723 = vmul.f32 %v722, %v721
    %v724 = vmul.f32 0.5, %v723
    %v725 = vsub.f32 1.5, %v724
    %v726 = vmul.f32 %v721, %v725
    %vm727 = vweird.f32 %v688
    %vm728 = vweird.f32 %v721
    %vm729 = vmor %vm727, %vm728
    %v730 = vsel %vm729, %v721, %v726
    %v731 = vrsqrt.pop %v689
    %v732 = vmul.f32 %v731, %v689
    %v733 = vmul.f32 %v732, %v731
    %v734 = vmul.f32 0.5, %v733
    %v735 = vsub.f32 1.5, %v734
    %v736 = vmul.f32 %v731, %v735
    %vm737 = vweird.f32 %v689
    %vm738 = vweird.f32 %v731
    %vm739 = vmor %vm737, %vm738
    %v740 = vsel %vm739, %v731, %v736
    %v741 = vrsqrt.pop %v690
    %v742 = vmul.f32 %v741, %v690
    %v743 = vmul.f32 %v742, %v741
    %v744 = vmul.f32 0.5, %v743
    %v745 = vsub.f32 1.5, %v744
    %v746 = vmul.f32 %v741, %v745
    %vm747 = vweird.f32 %v690
    %vm748 = vweird.f32 %v741
    %vm749 = vmor %vm747, %vm748
    %v750 = vsel %vm749, %v741, %v746
    %v751 = vmul.f32 %v649, %v700
    %v752 = vmul.f32 %v650, %v710
    %v753 = vmul.f32 %v651, %v720
    %v754 = vmul.f32 %v652, %v730
    %v755 = vmul.f32 %v653, %v740
    %v756 = vmul.f32 %v654, %v750
    %v758 = vperm.slane %v623, 0
    %v760 = vmul.f32 %v751, %v758
    %v761 = vmul.f32 %v752, %v758
    %v762 = vmul.f32 %v753, %v758
    %v763 = vmul.f32 %v754, %v758
    %v764 = vmul.f32 %v755, %v758
    %v765 = vmul.f32 %v756, %v758
    %v767 = vperm.slane %v624, 0
    %v769 = vadd.f32 %v760, %v767
    %v770 = vadd.f32 %v761, %v767
    %v771 = vadd.f32 %v762, %v767
    %v772 = vadd.f32 %v763, %v767
    %v773 = vadd.f32 %v764, %v767
    %v774 = vadd.f32 %v765, %v767
    %v775 = vld [vmem:[%s35] sm:$0xff]
    %v776 = vld [vmem:[%s35 + $0x8] sm:$0xff]
    %v777 = vld [vmem:[%s35 + $0x10] sm:$0xff]
    %v778 = vld [vmem:[%s35 + $0x18] sm:$0xff]
    %v779 = vld [vmem:[%s37] sm:$0x1]
    %v781 = vperm.slane %v779, 0
    %v784 = vsel %vm277, %v769, 0
    %v787 = vsel %vm277, %v770, 0
    %v790 = vsel %vm277, %v771, 0
    %v793 = vsel %vm277, %v772, 0
    %v796 = vsel %vm277, %v773, 0
    %v799 = vsel %vm277, %v774, 0
    %801 = vmatpush.msra.mxu0 0.0
    %802 = vmatpush.msra.mxu0 0.0
    %803 = vmatpush.msra.mxu0 0.0
    %804 = vmatpush.msra.mxu0 0.0
    %805 = vmatpush.msra.mxu0 0.0
    %806 = vmatpush.msra.mxu0 0.0
    %807 = vmatpush.msra.mxu0 0.0
    %808 = vmatpush.msra.mxu0 0.0
    %809 = vmatpush.msra.mxu0 0.0
    %810 = vmatpush.msra.mxu0 0.0
    %811 = vmatpush.msra.mxu0 0.0
    %812 = vmatpush.msra.mxu0 0.0
    %813 = vmatpush.msra.mxu0 %v778
    %814 = vmatpush.msra.mxu0 %v777
    %815 = vmatpush.msra.mxu0 %v776
    %816 = vmatpush.msra.mxu0 %v775
    %817 = vmatmul.f32.gmra.mxu0 %v784
    %v818 = vpop.f32.mrf.mxu0
    %v819 = vadd.f32 %v781, %v818
    %820 = vmatmul.f32.gmra.mxu0 %v787
    %v821 = vpop.f32.mrf.mxu0
    %v822 = vadd.f32 %v781, %v821
    %823 = vmatmul.f32.gmra.mxu0 %v790
    %v824 = vpop.f32.mrf.mxu0
    %v825 = vadd.f32 %v781, %v824
    %826 = vmatmul.f32.gmra.mxu0 %v793
    %v827 = vpop.f32.mrf.mxu0
    %v828 = vadd.f32 %v781, %v827
    %829 = vmatmul.f32.gmra.mxu0 %v796
    %v830 = vpop.f32.mrf.mxu0
    %v831 = vadd.f32 %v781, %v830
    %832 = vmatmul.f32.gmra.mxu0 %v799
    %v833 = vpop.f32.mrf.mxu0
    %v834 = vadd.f32 %v781, %v833
    %835 = vdwg.mxu0
    %842 = vrot.lane.b32.xlu0 %v819, 124
    %v843 = vpop.permute.xlu0 %842
    %844 = vrot.lane.b32.xlu0 %v822, 124
    %v845 = vpop.permute.xlu0 %844
    %846 = vrot.lane.b32.xlu0 %v825, 124
    %v847 = vpop.permute.xlu0 %846
    %848 = vrot.lane.b32.xlu0 %v828, 124
    %v849 = vpop.permute.xlu0 %848
    %850 = vrot.lane.b32.xlu0 %v831, 124
    %v851 = vpop.permute.xlu0 %850
    %852 = vrot.lane.b32.xlu0 %v834, 124
    %v853 = vpop.permute.xlu0 %852
    %854 = vrot.lane.b32.xlu0 %v819, 120
    %v855 = vpop.permute.xlu0 %854
    %856 = vrot.lane.b32.xlu0 %v822, 120
    %v857 = vpop.permute.xlu0 %856
    %858 = vrot.lane.b32.xlu0 %v825, 120
    %v859 = vpop.permute.xlu0 %858
    %860 = vrot.lane.b32.xlu0 %v828, 120
    %v861 = vpop.permute.xlu0 %860
    %862 = vrot.lane.b32.xlu0 %v831, 120
    %v863 = vpop.permute.xlu0 %862
    %864 = vrot.lane.b32.xlu0 %v834, 120
    %v865 = vpop.permute.xlu0 %864
    %866 = vrot.lane.b32.xlu0 %v819, 116
    %v867 = vpop.permute.xlu0 %866
    %868 = vrot.lane.b32.xlu0 %v822, 116
    %v869 = vpop.permute.xlu0 %868
    %870 = vrot.lane.b32.xlu0 %v825, 116
    %v871 = vpop.permute.xlu0 %870
    %872 = vrot.lane.b32.xlu0 %v828, 116
    %v873 = vpop.permute.xlu0 %872
    %874 = vrot.lane.b32.xlu0 %v831, 116
    %v875 = vpop.permute.xlu0 %874
    %876 = vrot.lane.b32.xlu0 %v834, 116
    %v877 = vpop.permute.xlu0 %876
    %878 = vrot.lane.b32.xlu0 %v819, 112
    %v879 = vpop.permute.xlu0 %878
    %880 = vrot.lane.b32.xlu0 %v822, 112
    %v881 = vpop.permute.xlu0 %880
    %882 = vrot.lane.b32.xlu0 %v825, 112
    %v883 = vpop.permute.xlu0 %882
    %884 = vrot.lane.b32.xlu0 %v828, 112
    %v885 = vpop.permute.xlu0 %884
    %886 = vrot.lane.b32.xlu0 %v831, 112
    %v887 = vpop.permute.xlu0 %886
    %888 = vrot.lane.b32.xlu0 %v834, 112
    %v889 = vpop.permute.xlu0 %888
    %890 = vrot.lane.b32.xlu0 %v819, 108
    %v891 = vpop.permute.xlu0 %890
    %892 = vrot.lane.b32.xlu0 %v822, 108
    %v893 = vpop.permute.xlu0 %892
    %894 = vrot.lane.b32.xlu0 %v825, 108
    %v895 = vpop.permute.xlu0 %894
    %896 = vrot.lane.b32.xlu0 %v828, 108
    %v897 = vpop.permute.xlu0 %896
    %898 = vrot.lane.b32.xlu0 %v831, 108
    %v899 = vpop.permute.xlu0 %898
    %900 = vrot.lane.b32.xlu0 %v834, 108
    %v901 = vpop.permute.xlu0 %900
    %902 = vrot.lane.b32.xlu0 %v819, 104
    %v903 = vpop.permute.xlu0 %902
    %904 = vrot.lane.b32.xlu0 %v822, 104
    %v905 = vpop.permute.xlu0 %904
    %906 = vrot.lane.b32.xlu0 %v825, 104
    %v907 = vpop.permute.xlu0 %906
    %908 = vrot.lane.b32.xlu0 %v828, 104
    %v909 = vpop.permute.xlu0 %908
    %910 = vrot.lane.b32.xlu0 %v831, 104
    %v911 = vpop.permute.xlu0 %910
    %912 = vrot.lane.b32.xlu0 %v834, 104
    %v913 = vpop.permute.xlu0 %912
    %914 = vrot.lane.b32.xlu0 %v819, 100
    %v915 = vpop.permute.xlu0 %914
    %916 = vrot.lane.b32.xlu0 %v822, 100
    %v917 = vpop.permute.xlu0 %916
    %918 = vrot.lane.b32.xlu0 %v825, 100
    %v919 = vpop.permute.xlu0 %918
    %920 = vrot.lane.b32.xlu0 %v828, 100
    %v921 = vpop.permute.xlu0 %920
    %922 = vrot.lane.b32.xlu0 %v831, 100
    %v923 = vpop.permute.xlu0 %922
    %924 = vrot.lane.b32.xlu0 %v834, 100
    %v925 = vpop.permute.xlu0 %924
    %926 = vrot.lane.b32.xlu0 %v819, 96
    %v927 = vpop.permute.xlu0 %926
    %928 = vrot.lane.b32.xlu0 %v822, 96
    %v929 = vpop.permute.xlu0 %928
    %930 = vrot.lane.b32.xlu0 %v825, 96
    %v931 = vpop.permute.xlu0 %930
    %vm932 = vcmask 31744
    %v933 = vsel %vm932, %v819, 0
    %v935 = vsel %vm932, %v822, 0
    %v937 = vsel %vm932, %v825, 0
    %v939 = vsel %vm932, %v927, 0
    %v941 = vsel %vm932, %v929, 0
    %v943 = vsel %vm932, %v931, 0
    %945 = vmatpush.xpose.msra.mxu0 0.0
    %946 = vmatpush.xpose.msra.mxu0 0.0
    %947 = vmatpush.xpose.msra.mxu0 0.0
    %948 = vmatpush.xpose.msra.mxu0 0.0
    %949 = vmatpush.xpose.msra.mxu0 0.0
    %950 = vmatpush.xpose.msra.mxu0 0.0
    %951 = vmatpush.xpose.msra.mxu0 0.0
    %952 = vmatpush.xpose.msra.mxu0 0.0
    %953 = vmatpush.xpose.msra.mxu0 0.0
    %954 = vmatpush.xpose.msra.mxu0 0.0
    %955 = vmatpush.xpose.msra.mxu0 0.0
    %956 = vmatpush.xpose.msra.mxu0 0.0
    %957 = vmatpush.xpose.msra.mxu0 0.0
    %958 = vmatpush.xpose.msra.mxu0 %v943
    %959 = vmatpush.xpose.msra.mxu0 %v941
    %960 = vmatpush.xpose.msra.mxu0 %v939
    %961 = vmatmul.f32.gmra.mxu0 %v933
    %v962 = vpop.f32.mrf.mxu0
    %v963 = vadd.f32 0.0, %v962
    %964 = vmatmul.f32.gmra.mxu0 %v935
    %v965 = vpop.f32.mrf.mxu0
    %v966 = vadd.f32 0.0, %v965
    %967 = vmatmul.f32.gmra.mxu0 %v937
    %v968 = vpop.f32.mrf.mxu0
    %v969 = vadd.f32 0.0, %v968
    %970 = vdwg.mxu0
    %971 = vrot.lane.b32.xlu0 %v828, 96
    %v972 = vpop.permute.xlu0 %971
    %973 = vrot.lane.b32.xlu0 %v831, 96
    %v974 = vpop.permute.xlu0 %973
    %975 = vrot.lane.b32.xlu0 %v834, 96
    %v976 = vpop.permute.xlu0 %975
    %v977 = vsel %vm932, %v828, 0
    %v979 = vsel %vm932, %v831, 0
    %v981 = vsel %vm932, %v834, 0
    %v983 = vsel %vm932, %v972, 0
    %v985 = vsel %vm932, %v974, 0
    %v987 = vsel %vm932, %v976, 0
    %989 = vmatpush.xpose.msra.mxu0 0.0
    %990 = vmatpush.xpose.msra.mxu0 0.0
    %991 = vmatpush.xpose.msra.mxu0 0.0
    %992 = vmatpush.xpose.msra.mxu0 0.0
    %993 = vmatpush.xpose.msra.mxu0 0.0
    %994 = vmatpush.xpose.msra.mxu0 0.0
    %995 = vmatpush.xpose.msra.mxu0 0.0
    %996 = vmatpush.xpose.msra.mxu0 0.0
    %997 = vmatpush.xpose.msra.mxu0 0.0
    %998 = vmatpush.xpose.msra.mxu0 0.0
    %999 = vmatpush.xpose.msra.mxu0 0.0
    %1000 = vmatpush.xpose.msra.mxu0 0.0
    %1001 = vmatpush.xpose.msra.mxu0 0.0
    %1002 = vmatpush.xpose.msra.mxu0 %v987
    %1003 = vmatpush.xpose.msra.mxu0 %v985
    %1004 = vmatpush.xpose.msra.mxu0 %v983
    %1005 = vmatmul.f32.gmra.mxu0 %v977
    %v1006 = vpop.f32.mrf.mxu0
    %v1007 = vadd.f32 0.0, %v1006
    %1008 = vmatmul.f32.gmra.mxu0 %v979
    %v1009 = vpop.f32.mrf.mxu0
    %v1010 = vadd.f32 0.0, %v1009
    %1011 = vmatmul.f32.gmra.mxu0 %v981
    %v1012 = vpop.f32.mrf.mxu0
    %v1013 = vadd.f32 0.0, %v1012
    %1014 = vdwg.mxu0
    %1015 = vrot.lane.b32.xlu0 %v843, 96
    %v1016 = vpop.permute.xlu0 %1015
    %1017 = vrot.lane.b32.xlu0 %v845, 96
    %v1018 = vpop.permute.xlu0 %1017
    %1019 = vrot.lane.b32.xlu0 %v847, 96
    %v1020 = vpop.permute.xlu0 %1019
    %v1021 = vsel %vm932, %v843, 0
    %v1023 = vsel %vm932, %v845, 0
    %v1025 = vsel %vm932, %v847, 0
    %v1027 = vsel %vm932, %v1016, 0
    %v1029 = vsel %vm932, %v1018, 0
    %v1031 = vsel %vm932, %v1020, 0
    %1033 = vmatpush.xpose.msra.mxu0 0.0
    %1034 = vmatpush.xpose.msra.mxu0 0.0
    %1035 = vmatpush.xpose.msra.mxu0 0.0
    %1036 = vmatpush.xpose.msra.mxu0 0.0
    %1037 = vmatpush.xpose.msra.mxu0 0.0
    %1038 = vmatpush.xpose.msra.mxu0 0.0
    %1039 = vmatpush.xpose.msra.mxu0 0.0
    %1040 = vmatpush.xpose.msra.mxu0 0.0
    %1041 = vmatpush.xpose.msra.mxu0 0.0
    %1042 = vmatpush.xpose.msra.mxu0 0.0
    %1043 = vmatpush.xpose.msra.mxu0 0.0
    %1044 = vmatpush.xpose.msra.mxu0 0.0
    %1045 = vmatpush.xpose.msra.mxu0 0.0
    %1046 = vmatpush.xpose.msra.mxu0 %v1031
    %1047 = vmatpush.xpose.msra.mxu0 %v1029
    %1048 = vmatpush.xpose.msra.mxu0 %v1027
    %1049 = vmatmul.f32.gmra.mxu0 %v1021
    %v1050 = vpop.f32.mrf.mxu0
    %v1051 = vadd.f32 0.0, %v1050
    %1052 = vmatmul.f32.gmra.mxu0 %v1023
    %v1053 = vpop.f32.mrf.mxu0
    %v1054 = vadd.f32 0.0, %v1053
    %1055 = vmatmul.f32.gmra.mxu0 %v1025
    %v1056 = vpop.f32.mrf.mxu0
    %v1057 = vadd.f32 0.0, %v1056
    %1058 = vdwg.mxu0
    %1059 = vrot.lane.b32.xlu0 %v849, 96
    %v1060 = vpop.permute.xlu0 %1059
    %1061 = vrot.lane.b32.xlu0 %v851, 96
    %v1062 = vpop.permute.xlu0 %1061
    %1063 = vrot.lane.b32.xlu0 %v853, 96
    %v1064 = vpop.permute.xlu0 %1063
    %v1065 = vsel %vm932, %v849, 0
    %v1067 = vsel %vm932, %v851, 0
    %v1069 = vsel %vm932, %v853, 0
    %v1071 = vsel %vm932, %v1060, 0
    %v1073 = vsel %vm932, %v1062, 0
    %v1075 = vsel %vm932, %v1064, 0
    %1077 = vmatpush.xpose.msra.mxu0 0.0
    %1078 = vmatpush.xpose.msra.mxu0 0.0
    %1079 = vmatpush.xpose.msra.mxu0 0.0
    %1080 = vmatpush.xpose.msra.mxu0 0.0
    %1081 = vmatpush.xpose.msra.mxu0 0.0
    %1082 = vmatpush.xpose.msra.mxu0 0.0
    %1083 = vmatpush.xpose.msra.mxu0 0.0
    %1084 = vmatpush.xpose.msra.mxu0 0.0
    %1085 = vmatpush.xpose.msra.mxu0 0.0
    %1086 = vmatpush.xpose.msra.mxu0 0.0
    %1087 = vmatpush.xpose.msra.mxu0 0.0
    %1088 = vmatpush.xpose.msra.mxu0 0.0
    %1089 = vmatpush.xpose.msra.mxu0 0.0
    %1090 = vmatpush.xpose.msra.mxu0 %v1075
    %1091 = vmatpush.xpose.msra.mxu0 %v1073
    %1092 = vmatpush.xpose.msra.mxu0 %v1071
    %1093 = vmatmul.f32.gmra.mxu0 %v1065
    %v1094 = vpop.f32.mrf.mxu0
    %v1095 = vadd.f32 0.0, %v1094
    %1096 = vmatmul.f32.gmra.mxu0 %v1067
    %v1097 = vpop.f32.mrf.mxu0
    %v1098 = vadd.f32 0.0, %v1097
    %1099 = vmatmul.f32.gmra.mxu0 %v1069
    %v1100 = vpop.f32.mrf.mxu0
    %v1101 = vadd.f32 0.0, %v1100
    %1102 = vdwg.mxu0
    %1103 = vrot.lane.b32.xlu0 %v855, 96
    %v1104 = vpop.permute.xlu0 %1103
    %1105 = vrot.lane.b32.xlu0 %v857, 96
    %v1106 = vpop.permute.xlu0 %1105
    %1107 = vrot.lane.b32.xlu0 %v859, 96
    %v1108 = vpop.permute.xlu0 %1107
    %v1109 = vsel %vm932, %v855, 0
    %v1111 = vsel %vm932, %v857, 0
    %v1113 = vsel %vm932, %v859, 0
    %v1115 = vsel %vm932, %v1104, 0
    %v1117 = vsel %vm932, %v1106, 0
    %v1119 = vsel %vm932, %v1108, 0
    %1121 = vmatpush.xpose.msra.mxu0 0.0
    %1122 = vmatpush.xpose.msra.mxu0 0.0
    %1123 = vmatpush.xpose.msra.mxu0 0.0
    %1124 = vmatpush.xpose.msra.mxu0 0.0
    %1125 = vmatpush.xpose.msra.mxu0 0.0
    %1126 = vmatpush.xpose.msra.mxu0 0.0
    %1127 = vmatpush.xpose.msra.mxu0 0.0
    %1128 = vmatpush.xpose.msra.mxu0 0.0
    %1129 = vmatpush.xpose.msra.mxu0 0.0
    %1130 = vmatpush.xpose.msra.mxu0 0.0
    %1131 = vmatpush.xpose.msra.mxu0 0.0
    %1132 = vmatpush.xpose.msra.mxu0 0.0
    %1133 = vmatpush.xpose.msra.mxu0 0.0
    %1134 = vmatpush.xpose.msra.mxu0 %v1119
    %1135 = vmatpush.xpose.msra.mxu0 %v1117
    %1136 = vmatpush.xpose.msra.mxu0 %v1115
    %1137 = vmatmul.f32.gmra.mxu0 %v1109
    %v1138 = vpop.f32.mrf.mxu0
    %v1139 = vadd.f32 0.0, %v1138
    %1140 = vmatmul.f32.gmra.mxu0 %v1111
    %v1141 = vpop.f32.mrf.mxu0
    %v1142 = vadd.f32 0.0, %v1141
    %1143 = vmatmul.f32.gmra.mxu0 %v1113
    %v1144 = vpop.f32.mrf.mxu0
    %v1145 = vadd.f32 0.0, %v1144
    %1146 = vdwg.mxu0
    %1147 = vrot.lane.b32.xlu0 %v861, 96
    %v1148 = vpop.permute.xlu0 %1147
    %1149 = vrot.lane.b32.xlu0 %v863, 96
    %v1150 = vpop.permute.xlu0 %1149
    %1151 = vrot.lane.b32.xlu0 %v865, 96
    %v1152 = vpop.permute.xlu0 %1151
    %v1153 = vsel %vm932, %v861, 0
    %v1155 = vsel %vm932, %v863, 0
    %v1157 = vsel %vm932, %v865, 0
    %v1159 = vsel %vm932, %v1148, 0
    %v1161 = vsel %vm932, %v1150, 0
    %v1163 = vsel %vm932, %v1152, 0
    %1165 = vmatpush.xpose.msra.mxu0 0.0
    %1166 = vmatpush.xpose.msra.mxu0 0.0
    %1167 = vmatpush.xpose.msra.mxu0 0.0
    %1168 = vmatpush.xpose.msra.mxu0 0.0
    %1169 = vmatpush.xpose.msra.mxu0 0.0
    %1170 = vmatpush.xpose.msra.mxu0 0.0
    %1171 = vmatpush.xpose.msra.mxu0 0.0
    %1172 = vmatpush.xpose.msra.mxu0 0.0
    %1173 = vmatpush.xpose.msra.mxu0 0.0
    %1174 = vmatpush.xpose.msra.mxu0 0.0
    %1175 = vmatpush.xpose.msra.mxu0 0.0
    %1176 = vmatpush.xpose.msra.mxu0 0.0
    %1177 = vmatpush.xpose.msra.mxu0 0.0
    %1178 = vmatpush.xpose.msra.mxu0 %v1163
    %1179 = vmatpush.xpose.msra.mxu0 %v1161
    %1180 = vmatpush.xpose.msra.mxu0 %v1159
    %1181 = vmatmul.f32.gmra.mxu0 %v1153
    %v1182 = vpop.f32.mrf.mxu0
    %v1183 = vadd.f32 0.0, %v1182
    %1184 = vmatmul.f32.gmra.mxu0 %v1155
    %v1185 = vpop.f32.mrf.mxu0
    %v1186 = vadd.f32 0.0, %v1185
    %1187 = vmatmul.f32.gmra.mxu0 %v1157
    %v1188 = vpop.f32.mrf.mxu0
    %v1189 = vadd.f32 0.0, %v1188
    %1190 = vdwg.mxu0
    %1191 = vrot.lane.b32.xlu0 %v867, 96
    %v1192 = vpop.permute.xlu0 %1191
    %1193 = vrot.lane.b32.xlu0 %v869, 96
    %v1194 = vpop.permute.xlu0 %1193
    %1195 = vrot.lane.b32.xlu0 %v871, 96
    %v1196 = vpop.permute.xlu0 %1195
    %v1197 = vsel %vm932, %v867, 0
    %v1199 = vsel %vm932, %v869, 0
    %v1201 = vsel %vm932, %v871, 0
    %v1203 = vsel %vm932, %v1192, 0
    %v1205 = vsel %vm932, %v1194, 0
    %v1207 = vsel %vm932, %v1196, 0
    %1209 = vmatpush.xpose.msra.mxu0 0.0
    %1210 = vmatpush.xpose.msra.mxu0 0.0
    %1211 = vmatpush.xpose.msra.mxu0 0.0
    %1212 = vmatpush.xpose.msra.mxu0 0.0
    %1213 = vmatpush.xpose.msra.mxu0 0.0
    %1214 = vmatpush.xpose.msra.mxu0 0.0
    %1215 = vmatpush.xpose.msra.mxu0 0.0
    %1216 = vmatpush.xpose.msra.mxu0 0.0
    %1217 = vmatpush.xpose.msra.mxu0 0.0
    %1218 = vmatpush.xpose.msra.mxu0 0.0
    %1219 = vmatpush.xpose.msra.mxu0 0.0
    %1220 = vmatpush.xpose.msra.mxu0 0.0
    %1221 = vmatpush.xpose.msra.mxu0 0.0
    %1222 = vmatpush.xpose.msra.mxu0 %v1207
    %1223 = vmatpush.xpose.msra.mxu0 %v1205
    %1224 = vmatpush.xpose.msra.mxu0 %v1203
    %1225 = vmatmul.f32.gmra.mxu0 %v1197
    %v1226 = vpop.f32.mrf.mxu0
    %v1227 = vadd.f32 0.0, %v1226
    %1228 = vmatmul.f32.gmra.mxu0 %v1199
    %v1229 = vpop.f32.mrf.mxu0
    %v1230 = vadd.f32 0.0, %v1229
    %1231 = vmatmul.f32.gmra.mxu0 %v1201
    %v1232 = vpop.f32.mrf.mxu0
    %v1233 = vadd.f32 0.0, %v1232
    %1234 = vdwg.mxu0
    %1235 = vrot.lane.b32.xlu0 %v873, 96
    %v1236 = vpop.permute.xlu0 %1235
    %1237 = vrot.lane.b32.xlu0 %v875, 96
    %v1238 = vpop.permute.xlu0 %1237
    %1239 = vrot.lane.b32.xlu0 %v877, 96
    %v1240 = vpop.permute.xlu0 %1239
    %v1241 = vsel %vm932, %v873, 0
    %v1243 = vsel %vm932, %v875, 0
    %v1245 = vsel %vm932, %v877, 0
    %v1247 = vsel %vm932, %v1236, 0
    %v1249 = vsel %vm932, %v1238, 0
    %v1251 = vsel %vm932, %v1240, 0
    %1253 = vmatpush.xpose.msra.mxu0 0.0
    %1254 = vmatpush.xpose.msra.mxu0 0.0
    %1255 = vmatpush.xpose.msra.mxu0 0.0
    %1256 = vmatpush.xpose.msra.mxu0 0.0
    %1257 = vmatpush.xpose.msra.mxu0 0.0
    %1258 = vmatpush.xpose.msra.mxu0 0.0
    %1259 = vmatpush.xpose.msra.mxu0 0.0
    %1260 = vmatpush.xpose.msra.mxu0 0.0
    %1261 = vmatpush.xpose.msra.mxu0 0.0
    %1262 = vmatpush.xpose.msra.mxu0 0.0
    %1263 = vmatpush.xpose.msra.mxu0 0.0
    %1264 = vmatpush.xpose.msra.mxu0 0.0
    %1265 = vmatpush.xpose.msra.mxu0 0.0
    %1266 = vmatpush.xpose.msra.mxu0 %v1251
    %1267 = vmatpush.xpose.msra.mxu0 %v1249
    %1268 = vmatpush.xpose.msra.mxu0 %v1247
    %1269 = vmatmul.f32.gmra.mxu0 %v1241
    %v1270 = vpop.f32.mrf.mxu0
    %v1271 = vadd.f32 0.0, %v1270
    %1272 = vmatmul.f32.gmra.mxu0 %v1243
    %v1273 = vpop.f32.mrf.mxu0
    %v1274 = vadd.f32 0.0, %v1273
    %1275 = vmatmul.f32.gmra.mxu0 %v1245
    %v1276 = vpop.f32.mrf.mxu0
    %v1277 = vadd.f32 0.0, %v1276
    %1278 = vdwg.mxu0
    %1279 = vrot.lane.b32.xlu0 %v879, 96
    %v1280 = vpop.permute.xlu0 %1279
    %1281 = vrot.lane.b32.xlu0 %v881, 96
    %v1282 = vpop.permute.xlu0 %1281
    %1283 = vrot.lane.b32.xlu0 %v883, 96
    %v1284 = vpop.permute.xlu0 %1283
    %v1285 = vsel %vm932, %v879, 0
    %v1287 = vsel %vm932, %v881, 0
    %v1289 = vsel %vm932, %v883, 0
    %v1291 = vsel %vm932, %v1280, 0
    %v1293 = vsel %vm932, %v1282, 0
    %v1295 = vsel %vm932, %v1284, 0
    %1297 = vmatpush.xpose.msra.mxu0 0.0
    %1298 = vmatpush.xpose.msra.mxu0 0.0
    %1299 = vmatpush.xpose.msra.mxu0 0.0
    %1300 = vmatpush.xpose.msra.mxu0 0.0
    %1301 = vmatpush.xpose.msra.mxu0 0.0
    %1302 = vmatpush.xpose.msra.mxu0 0.0
    %1303 = vmatpush.xpose.msra.mxu0 0.0
    %1304 = vmatpush.xpose.msra.mxu0 0.0
    %1305 = vmatpush.xpose.msra.mxu0 0.0
    %1306 = vmatpush.xpose.msra.mxu0 0.0
    %1307 = vmatpush.xpose.msra.mxu0 0.0
    %1308 = vmatpush.xpose.msra.mxu0 0.0
    %1309 = vmatpush.xpose.msra.mxu0 0.0
    %1310 = vmatpush.xpose.msra.mxu0 %v1295
    %1311 = vmatpush.xpose.msra.mxu0 %v1293
    %1312 = vmatpush.xpose.msra.mxu0 %v1291
    %1313 = vmatmul.f32.gmra.mxu0 %v1285
    %v1314 = vpop.f32.mrf.mxu0
    %v1315 = vadd.f32 0.0, %v1314
    %1316 = vmatmul.f32.gmra.mxu0 %v1287
    %v1317 = vpop.f32.mrf.mxu0
    %v1318 = vadd.f32 0.0, %v1317
    %1319 = vmatmul.f32.gmra.mxu0 %v1289
    %v1320 = vpop.f32.mrf.mxu0
    %v1321 = vadd.f32 0.0, %v1320
    %1322 = vdwg.mxu0
    %1323 = vrot.lane.b32.xlu0 %v885, 96
    %v1324 = vpop.permute.xlu0 %1323
    %1325 = vrot.lane.b32.xlu0 %v887, 96
    %v1326 = vpop.permute.xlu0 %1325
    %1327 = vrot.lane.b32.xlu0 %v889, 96
    %v1328 = vpop.permute.xlu0 %1327
    %v1329 = vsel %vm932, %v885, 0
    %v1331 = vsel %vm932, %v887, 0
    %v1333 = vsel %vm932, %v889, 0
    %v1335 = vsel %vm932, %v1324, 0
    %v1337 = vsel %vm932, %v1326, 0
    %v1339 = vsel %vm932, %v1328, 0
    %1341 = vmatpush.xpose.msra.mxu0 0.0
    %1342 = vmatpush.xpose.msra.mxu0 0.0
    %1343 = vmatpush.xpose.msra.mxu0 0.0
    %1344 = vmatpush.xpose.msra.mxu0 0.0
    %1345 = vmatpush.xpose.msra.mxu0 0.0
    %1346 = vmatpush.xpose.msra.mxu0 0.0
    %1347 = vmatpush.xpose.msra.mxu0 0.0
    %1348 = vmatpush.xpose.msra.mxu0 0.0
    %1349 = vmatpush.xpose.msra.mxu0 0.0
    %1350 = vmatpush.xpose.msra.mxu0 0.0
    %1351 = vmatpush.xpose.msra.mxu0 0.0
    %1352 = vmatpush.xpose.msra.mxu0 0.0
    %1353 = vmatpush.xpose.msra.mxu0 0.0
    %1354 = vmatpush.xpose.msra.mxu0 %v1339
    %1355 = vmatpush.xpose.msra.mxu0 %v1337
    %1356 = vmatpush.xpose.msra.mxu0 %v1335
    %1357 = vmatmul.f32.gmra.mxu0 %v1329
    %v1358 = vpop.f32.mrf.mxu0
    %v1359 = vadd.f32 0.0, %v1358
    %1360 = vmatmul.f32.gmra.mxu0 %v1331
    %v1361 = vpop.f32.mrf.mxu0
    %v1362 = vadd.f32 0.0, %v1361
    %1363 = vmatmul.f32.gmra.mxu0 %v1333
    %v1364 = vpop.f32.mrf.mxu0
    %v1365 = vadd.f32 0.0, %v1364
    %1366 = vdwg.mxu0
    %1367 = vrot.lane.b32.xlu0 %v891, 96
    %v1368 = vpop.permute.xlu0 %1367
    %1369 = vrot.lane.b32.xlu0 %v893, 96
    %v1370 = vpop.permute.xlu0 %1369
    %1371 = vrot.lane.b32.xlu0 %v895, 96
    %v1372 = vpop.permute.xlu0 %1371
    %v1373 = vsel %vm932, %v891, 0
    %v1375 = vsel %vm932, %v893, 0
    %v1377 = vsel %vm932, %v895, 0
    %v1379 = vsel %vm932, %v1368, 0
    %v1381 = vsel %vm932, %v1370, 0
    %v1383 = vsel %vm932, %v1372, 0
    %1385 = vmatpush.xpose.msra.mxu0 0.0
    %1386 = vmatpush.xpose.msra.mxu0 0.0
    %1387 = vmatpush.xpose.msra.mxu0 0.0
    %1388 = vmatpush.xpose.msra.mxu0 0.0
    %1389 = vmatpush.xpose.msra.mxu0 0.0
    %1390 = vmatpush.xpose.msra.mxu0 0.0
    %1391 = vmatpush.xpose.msra.mxu0 0.0
    %1392 = vmatpush.xpose.msra.mxu0 0.0
    %1393 = vmatpush.xpose.msra.mxu0 0.0
    %1394 = vmatpush.xpose.msra.mxu0 0.0
    %1395 = vmatpush.xpose.msra.mxu0 0.0
    %1396 = vmatpush.xpose.msra.mxu0 0.0
    %1397 = vmatpush.xpose.msra.mxu0 0.0
    %1398 = vmatpush.xpose.msra.mxu0 %v1383
    %1399 = vmatpush.xpose.msra.mxu0 %v1381
    %1400 = vmatpush.xpose.msra.mxu0 %v1379
    %1401 = vmatmul.f32.gmra.mxu0 %v1373
    %v1402 = vpop.f32.mrf.mxu0
    %v1403 = vadd.f32 0.0, %v1402
    %1404 = vmatmul.f32.gmra.mxu0 %v1375
    %v1405 = vpop.f32.mrf.mxu0
    %v1406 = vadd.f32 0.0, %v1405
    %1407 = vmatmul.f32.gmra.mxu0 %v1377
    %v1408 = vpop.f32.mrf.mxu0
    %v1409 = vadd.f32 0.0, %v1408
    %1410 = vdwg.mxu0
    %1411 = vrot.lane.b32.xlu0 %v897, 96
    %v1412 = vpop.permute.xlu0 %1411
    %1413 = vrot.lane.b32.xlu0 %v899, 96
    %v1414 = vpop.permute.xlu0 %1413
    %1415 = vrot.lane.b32.xlu0 %v901, 96
    %v1416 = vpop.permute.xlu0 %1415
    %v1417 = vsel %vm932, %v897, 0
    %v1419 = vsel %vm932, %v899, 0
    %v1421 = vsel %vm932, %v901, 0
    %v1423 = vsel %vm932, %v1412, 0
    %v1425 = vsel %vm932, %v1414, 0
    %v1427 = vsel %vm932, %v1416, 0
    %1429 = vmatpush.xpose.msra.mxu0 0.0
    %1430 = vmatpush.xpose.msra.mxu0 0.0
    %1431 = vmatpush.xpose.msra.mxu0 0.0
    %1432 = vmatpush.xpose.msra.mxu0 0.0
    %1433 = vmatpush.xpose.msra.mxu0 0.0
    %1434 = vmatpush.xpose.msra.mxu0 0.0
    %1435 = vmatpush.xpose.msra.mxu0 0.0
    %1436 = vmatpush.xpose.msra.mxu0 0.0
    %1437 = vmatpush.xpose.msra.mxu0 0.0
    %1438 = vmatpush.xpose.msra.mxu0 0.0
    %1439 = vmatpush.xpose.msra.mxu0 0.0
    %1440 = vmatpush.xpose.msra.mxu0 0.0
    %1441 = vmatpush.xpose.msra.mxu0 0.0
    %1442 = vmatpush.xpose.msra.mxu0 %v1427
    %1443 = vmatpush.xpose.msra.mxu0 %v1425
    %1444 = vmatpush.xpose.msra.mxu0 %v1423
    %1445 = vmatmul.f32.gmra.mxu0 %v1417
    %v1446 = vpop.f32.mrf.mxu0
    %v1447 = vadd.f32 0.0, %v1446
    %1448 = vmatmul.f32.gmra.mxu0 %v1419
    %v1449 = vpop.f32.mrf.mxu0
    %v1450 = vadd.f32 0.0, %v1449
    %1451 = vmatmul.f32.gmra.mxu0 %v1421
    %v1452 = vpop.f32.mrf.mxu0
    %v1453 = vadd.f32 0.0, %v1452
    %1454 = vdwg.mxu0
    %1455 = vrot.lane.b32.xlu0 %v903, 96
    %v1456 = vpop.permute.xlu0 %1455
    %1457 = vrot.lane.b32.xlu0 %v905, 96
    %v1458 = vpop.permute.xlu0 %1457
    %1459 = vrot.lane.b32.xlu0 %v907, 96
    %v1460 = vpop.permute.xlu0 %1459
    %v1461 = vsel %vm932, %v903, 0
    %v1463 = vsel %vm932, %v905, 0
    %v1465 = vsel %vm932, %v907, 0
    %v1467 = vsel %vm932, %v1456, 0
    %v1469 = vsel %vm932, %v1458, 0
    %v1471 = vsel %vm932, %v1460, 0
    %1473 = vmatpush.xpose.msra.mxu0 0.0
    %1474 = vmatpush.xpose.msra.mxu0 0.0
    %1475 = vmatpush.xpose.msra.mxu0 0.0
    %1476 = vmatpush.xpose.msra.mxu0 0.0
    %1477 = vmatpush.xpose.msra.mxu0 0.0
    %1478 = vmatpush.xpose.msra.mxu0 0.0
    %1479 = vmatpush.xpose.msra.mxu0 0.0
    %1480 = vmatpush.xpose.msra.mxu0 0.0
    %1481 = vmatpush.xpose.msra.mxu0 0.0
    %1482 = vmatpush.xpose.msra.mxu0 0.0
    %1483 = vmatpush.xpose.msra.mxu0 0.0
    %1484 = vmatpush.xpose.msra.mxu0 0.0
    %1485 = vmatpush.xpose.msra.mxu0 0.0
    %1486 = vmatpush.xpose.msra.mxu0 %v1471
    %1487 = vmatpush.xpose.msra.mxu0 %v1469
    %1488 = vmatpush.xpose.msra.mxu0 %v1467
    %1489 = vmatmul.f32.gmra.mxu0 %v1461
    %v1490 = vpop.f32.mrf.mxu0
    %v1491 = vadd.f32 0.0, %v1490
    %1492 = vmatmul.f32.gmra.mxu0 %v1463
    %v1493 = vpop.f32.mrf.mxu0
    %v1494 = vadd.f32 0.0, %v1493
    %1495 = vmatmul.f32.gmra.mxu0 %v1465
    %v1496 = vpop.f32.mrf.mxu0
    %v1497 = vadd.f32 0.0, %v1496
    %1498 = vdwg.mxu0
    %1499 = vrot.lane.b32.xlu0 %v909, 96
    %v1500 = vpop.permute.xlu0 %1499
    %1501 = vrot.lane.b32.xlu0 %v911, 96
    %v1502 = vpop.permute.xlu0 %1501
    %1503 = vrot.lane.b32.xlu0 %v913, 96
    %v1504 = vpop.permute.xlu0 %1503
    %v1505 = vsel %vm932, %v909, 0
    %v1507 = vsel %vm932, %v911, 0
    %v1509 = vsel %vm932, %v913, 0
    %v1511 = vsel %vm932, %v1500, 0
    %v1513 = vsel %vm932, %v1502, 0
    %v1515 = vsel %vm932, %v1504, 0
    %1517 = vmatpush.xpose.msra.mxu0 0.0
    %1518 = vmatpush.xpose.msra.mxu0 0.0
    %1519 = vmatpush.xpose.msra.mxu0 0.0
    %1520 = vmatpush.xpose.msra.mxu0 0.0
    %1521 = vmatpush.xpose.msra.mxu0 0.0
    %1522 = vmatpush.xpose.msra.mxu0 0.0
    %1523 = vmatpush.xpose.msra.mxu0 0.0
    %1524 = vmatpush.xpose.msra.mxu0 0.0
    %1525 = vmatpush.xpose.msra.mxu0 0.0
    %1526 = vmatpush.xpose.msra.mxu0 0.0
    %1527 = vmatpush.xpose.msra.mxu0 0.0
    %1528 = vmatpush.xpose.msra.mxu0 0.0
    %1529 = vmatpush.xpose.msra.mxu0 0.0
    %1530 = vmatpush.xpose.msra.mxu0 %v1515
    %1531 = vmatpush.xpose.msra.mxu0 %v1513
    %1532 = vmatpush.xpose.msra.mxu0 %v1511
    %1533 = vmatmul.f32.gmra.mxu0 %v1505
    %v1534 = vpop.f32.mrf.mxu0
    %v1535 = vadd.f32 0.0, %v1534
    %1536 = vmatmul.f32.gmra.mxu0 %v1507
    %v1537 = vpop.f32.mrf.mxu0
    %v1538 = vadd.f32 0.0, %v1537
    %1539 = vmatmul.f32.gmra.mxu0 %v1509
    %v1540 = vpop.f32.mrf.mxu0
    %v1541 = vadd.f32 0.0, %v1540
    %1542 = vdwg.mxu0
    %1543 = vrot.lane.b32.xlu0 %v915, 96
    %v1544 = vpop.permute.xlu0 %1543
    %1545 = vrot.lane.b32.xlu0 %v917, 96
    %v1546 = vpop.permute.xlu0 %1545
    %1547 = vrot.lane.b32.xlu0 %v919, 96
    %v1548 = vpop.permute.xlu0 %1547
    %v1549 = vsel %vm932, %v915, 0
    %v1551 = vsel %vm932, %v917, 0
    %v1553 = vsel %vm932, %v919, 0
    %v1555 = vsel %vm932, %v1544, 0
    %v1557 = vsel %vm932, %v1546, 0
    %v1559 = vsel %vm932, %v1548, 0
    %1561 = vmatpush.xpose.msra.mxu0 0.0
    %1562 = vmatpush.xpose.msra.mxu0 0.0
    %1563 = vmatpush.xpose.msra.mxu0 0.0
    %1564 = vmatpush.xpose.msra.mxu0 0.0
    %1565 = vmatpush.xpose.msra.mxu0 0.0
    %1566 = vmatpush.xpose.msra.mxu0 0.0
    %1567 = vmatpush.xpose.msra.mxu0 0.0
    %1568 = vmatpush.xpose.msra.mxu0 0.0
    %1569 = vmatpush.xpose.msra.mxu0 0.0
    %1570 = vmatpush.xpose.msra.mxu0 0.0
    %1571 = vmatpush.xpose.msra.mxu0 0.0
    %1572 = vmatpush.xpose.msra.mxu0 0.0
    %1573 = vmatpush.xpose.msra.mxu0 0.0
    %1574 = vmatpush.xpose.msra.mxu0 %v1559
    %1575 = vmatpush.xpose.msra.mxu0 %v1557
    %1576 = vmatpush.xpose.msra.mxu0 %v1555
    %1577 = vmatmul.f32.gmra.mxu0 %v1549
    %v1578 = vpop.f32.mrf.mxu0
    %v1579 = vadd.f32 0.0, %v1578
    %1580 = vmatmul.f32.gmra.mxu0 %v1551
    %v1581 = vpop.f32.mrf.mxu0
    %v1582 = vadd.f32 0.0, %v1581
    %1583 = vmatmul.f32.gmra.mxu0 %v1553
    %v1584 = vpop.f32.mrf.mxu0
    %v1585 = vadd.f32 0.0, %v1584
    %1586 = vdwg.mxu0
    %1587 = vrot.lane.b32.xlu0 %v921, 96
    %v1588 = vpop.permute.xlu0 %1587
    %1589 = vrot.lane.b32.xlu0 %v923, 96
    %v1590 = vpop.permute.xlu0 %1589
    %1591 = vrot.lane.b32.xlu0 %v925, 96
    %v1592 = vpop.permute.xlu0 %1591
    %v1593 = vsel %vm932, %v921, 0
    %v1595 = vsel %vm932, %v923, 0
    %v1597 = vsel %vm932, %v925, 0
    %v1599 = vsel %vm932, %v1588, 0
    %v1601 = vsel %vm932, %v1590, 0
    %v1603 = vsel %vm932, %v1592, 0
    %1605 = vmatpush.xpose.msra.mxu0 0.0
    %1606 = vmatpush.xpose.msra.mxu0 0.0
    %1607 = vmatpush.xpose.msra.mxu0 0.0
    %1608 = vmatpush.xpose.msra.mxu0 0.0
    %1609 = vmatpush.xpose.msra.mxu0 0.0
    %1610 = vmatpush.xpose.msra.mxu0 0.0
    %1611 = vmatpush.xpose.msra.mxu0 0.0
    %1612 = vmatpush.xpose.msra.mxu0 0.0
    %1613 = vmatpush.xpose.msra.mxu0 0.0
    %1614 = vmatpush.xpose.msra.mxu0 0.0
    %1615 = vmatpush.xpose.msra.mxu0 0.0
    %1616 = vmatpush.xpose.msra.mxu0 0.0
    %1617 = vmatpush.xpose.msra.mxu0 0.0
    %1618 = vmatpush.xpose.msra.mxu0 %v1603
    %1619 = vmatpush.xpose.msra.mxu0 %v1601
    %1620 = vmatpush.xpose.msra.mxu0 %v1599
    %1621 = vmatmul.f32.gmra.mxu0 %v1593
    %v1622 = vpop.f32.mrf.mxu0
    %v1623 = vadd.f32 0.0, %v1622
    %1624 = vmatmul.f32.gmra.mxu0 %v1595
    %v1625 = vpop.f32.mrf.mxu0
    %v1626 = vadd.f32 0.0, %v1625
    %1627 = vmatmul.f32.gmra.mxu0 %v1597
    %v1628 = vpop.f32.mrf.mxu0
    %v1629 = vadd.f32 0.0, %v1628
    %1630 = vdwg.mxu0
    %vm1631 = vcmask 195584
    %v1632 = vsel %vm1631, %v963, -inf
    %1633 = vmax.xlane.f32.xlu0 %v1632
    %v1634 = vpop.xlane.xlu0 %1633
    %v1635 = vsel %vm1631, %v966, -inf
    %1636 = vmax.xlane.f32.xlu0 %v1635
    %v1637 = vpop.xlane.xlu0 %1636
    %v1638 = vsel %vm1631, %v969, -inf
    %1639 = vmax.xlane.f32.xlu0 %v1638
    %v1640 = vpop.xlane.xlu0 %1639
    %v1641 = vsel %vm1631, %v1007, -inf
    %1642 = vmax.xlane.f32.xlu0 %v1641
    %v1643 = vpop.xlane.xlu0 %1642
    %v1644 = vsel %vm1631, %v1010, -inf
    %1645 = vmax.xlane.f32.xlu0 %v1644
    %v1646 = vpop.xlane.xlu0 %1645
    %v1647 = vsel %vm1631, %v1013, -inf
    %1648 = vmax.xlane.f32.xlu0 %v1647
    %v1649 = vpop.xlane.xlu0 %1648
    %v1650 = vsel %vm1631, %v1051, -inf
    %1651 = vmax.xlane.f32.xlu0 %v1650
    %v1652 = vpop.xlane.xlu0 %1651
    %v1653 = vsel %vm1631, %v1054, -inf
    %1654 = vmax.xlane.f32.xlu0 %v1653
    %v1655 = vpop.xlane.xlu0 %1654
    %v1656 = vsel %vm1631, %v1057, -inf
    %1657 = vmax.xlane.f32.xlu0 %v1656
    %v1658 = vpop.xlane.xlu0 %1657
    %v1659 = vsel %vm1631, %v1095, -inf
    %1660 = vmax.xlane.f32.xlu0 %v1659
    %v1661 = vpop.xlane.xlu0 %1660
    %v1662 = vsel %vm1631, %v1098, -inf
    %1663 = vmax.xlane.f32.xlu0 %v1662
    %v1664 = vpop.xlane.xlu0 %1663
    %v1665 = vsel %vm1631, %v1101, -inf
    %1666 = vmax.xlane.f32.xlu0 %v1665
    %v1667 = vpop.xlane.xlu0 %1666
    %v1668 = vsel %vm1631, %v1139, -inf
    %1669 = vmax.xlane.f32.xlu0 %v1668
    %v1670 = vpop.xlane.xlu0 %1669
    %v1671 = vsel %vm1631, %v1142, -inf
    %1672 = vmax.xlane.f32.xlu0 %v1671
    %v1673 = vpop.xlane.xlu0 %1672
    %v1674 = vsel %vm1631, %v1145, -inf
    %1675 = vmax.xlane.f32.xlu0 %v1674
    %v1676 = vpop.xlane.xlu0 %1675
    %v1677 = vsel %vm1631, %v1183, -inf
    %1678 = vmax.xlane.f32.xlu0 %v1677
    %v1679 = vpop.xlane.xlu0 %1678
    %v1680 = vsel %vm1631, %v1186, -inf
    %1681 = vmax.xlane.f32.xlu0 %v1680
    %v1682 = vpop.xlane.xlu0 %1681
    %v1683 = vsel %vm1631, %v1189, -inf
    %1684 = vmax.xlane.f32.xlu0 %v1683
    %v1685 = vpop.xlane.xlu0 %1684
    %v1686 = vsel %vm1631, %v1227, -inf
    %1687 = vmax.xlane.f32.xlu0 %v1686
    %v1688 = vpop.xlane.xlu0 %1687
    %v1689 = vsel %vm1631, %v1230, -inf
    %1690 = vmax.xlane.f32.xlu0 %v1689
    %v1691 = vpop.xlane.xlu0 %1690
    %v1692 = vsel %vm1631, %v1233, -inf
    %1693 = vmax.xlane.f32.xlu0 %v1692
    %v1694 = vpop.xlane.xlu0 %1693
    %v1695 = vsel %vm1631, %v1271, -inf
    %1696 = vmax.xlane.f32.xlu0 %v1695
    %v1697 = vpop.xlane.xlu0 %1696
    %v1698 = vsel %vm1631, %v1274, -inf
    %1699 = vmax.xlane.f32.xlu0 %v1698
    %v1700 = vpop.xlane.xlu0 %1699
    %v1701 = vsel %vm1631, %v1277, -inf
    %1702 = vmax.xlane.f32.xlu0 %v1701
    %v1703 = vpop.xlane.xlu0 %1702
    %v1704 = vsel %vm1631, %v1315, -inf
    %1705 = vmax.xlane.f32.xlu0 %v1704
    %v1706 = vpop.xlane.xlu0 %1705
    %v1707 = vsel %vm1631, %v1318, -inf
    %1708 = vmax.xlane.f32.xlu0 %v1707
    %v1709 = vpop.xlane.xlu0 %1708
    %v1710 = vsel %vm1631, %v1321, -inf
    %1711 = vmax.xlane.f32.xlu0 %v1710
    %v1712 = vpop.xlane.xlu0 %1711
    %v1713 = vsel %vm1631, %v1359, -inf
    %1714 = vmax.xlane.f32.xlu0 %v1713
    %v1715 = vpop.xlane.xlu0 %1714
    %v1716 = vsel %vm1631, %v1362, -inf
    %1717 = vmax.xlane.f32.xlu0 %v1716
    %v1718 = vpop.xlane.xlu0 %1717
    %v1719 = vsel %vm1631, %v1365, -inf
    %1720 = vmax.xlane.f32.xlu0 %v1719
    %v1721 = vpop.xlane.xlu0 %1720
    %v1722 = vsel %vm1631, %v1403, -inf
    %1723 = vmax.xlane.f32.xlu0 %v1722
    %v1724 = vpop.xlane.xlu0 %1723
    %v1725 = vsel %vm1631, %v1406, -inf
    %1726 = vmax.xlane.f32.xlu0 %v1725
    %v1727 = vpop.xlane.xlu0 %1726
    %v1728 = vsel %vm1631, %v1409, -inf
    %1729 = vmax.xlane.f32.xlu0 %v1728
    %v1730 = vpop.xlane.xlu0 %1729
    %v1731 = vsel %vm1631, %v1447, -inf
    %1732 = vmax.xlane.f32.xlu0 %v1731
    %v1733 = vpop.xlane.xlu0 %1732
    %v1734 = vsel %vm1631, %v1450, -inf
    %1735 = vmax.xlane.f32.xlu0 %v1734
    %v1736 = vpop.xlane.xlu0 %1735
    %v1737 = vsel %vm1631, %v1453, -inf
    %1738 = vmax.xlane.f32.xlu0 %v1737
    %v1739 = vpop.xlane.xlu0 %1738
    %v1740 = vsel %vm1631, %v1491, -inf
    %1741 = vmax.xlane.f32.xlu0 %v1740
    %v1742 = vpop.xlane.xlu0 %1741
    %v1743 = vsel %vm1631, %v1494, -inf
    %1744 = vmax.xlane.f32.xlu0 %v1743
    %v1745 = vpop.xlane.xlu0 %1744
    %v1746 = vsel %vm1631, %v1497, -inf
    %1747 = vmax.xlane.f32.xlu0 %v1746
    %v1748 = vpop.xlane.xlu0 %1747
    %v1749 = vsel %vm1631, %v1535, -inf
    %1750 = vmax.xlane.f32.xlu0 %v1749
    %v1751 = vpop.xlane.xlu0 %1750
    %v1752 = vsel %vm1631, %v1538, -inf
    %1753 = vmax.xlane.f32.xlu0 %v1752
    %v1754 = vpop.xlane.xlu0 %1753
    %v1755 = vsel %vm1631, %v1541, -inf
    %1756 = vmax.xlane.f32.xlu0 %v1755
    %v1757 = vpop.xlane.xlu0 %1756
    %v1758 = vsel %vm1631, %v1579, -inf
    %1759 = vmax.xlane.f32.xlu0 %v1758
    %v1760 = vpop.xlane.xlu0 %1759
    %v1761 = vsel %vm1631, %v1582, -inf
    %1762 = vmax.xlane.f32.xlu0 %v1761
    %v1763 = vpop.xlane.xlu0 %1762
    %v1764 = vsel %vm1631, %v1585, -inf
    %1765 = vmax.xlane.f32.xlu0 %v1764
    %v1766 = vpop.xlane.xlu0 %1765
    %v1767 = vsel %vm1631, %v1623, -inf
    %1768 = vmax.xlane.f32.xlu0 %v1767
    %v1769 = vpop.xlane.xlu0 %1768
    %v1770 = vsel %vm1631, %v1626, -inf
    %1771 = vmax.xlane.f32.xlu0 %v1770
    %v1772 = vpop.xlane.xlu0 %1771
    %v1773 = vsel %vm1631, %v1629, -inf
    %1774 = vmax.xlane.f32.xlu0 %v1773
    %v1775 = vpop.xlane.xlu0 %1774
    %v1776 = vsub.f32 %v963, %v1634
    %v1777 = vsub.f32 %v966, %v1637
    %v1778 = vsub.f32 %v969, %v1640
    %v1779 = vsub.f32 %v1007, %v1643
    %v1780 = vsub.f32 %v1010, %v1646
    %v1781 = vsub.f32 %v1013, %v1649
    %v1782 = vsub.f32 %v1051, %v1652
    %v1783 = vsub.f32 %v1054, %v1655
    %v1784 = vsub.f32 %v1057, %v1658
    %v1785 = vsub.f32 %v1095, %v1661
    %v1786 = vsub.f32 %v1098, %v1664
    %v1787 = vsub.f32 %v1101, %v1667
    %v1788 = vsub.f32 %v1139, %v1670
    %v1789 = vsub.f32 %v1142, %v1673
    %v1790 = vsub.f32 %v1145, %v1676
    %v1791 = vsub.f32 %v1183, %v1679
    %v1792 = vsub.f32 %v1186, %v1682
    %v1793 = vsub.f32 %v1189, %v1685
    %v1794 = vsub.f32 %v1227, %v1688
    %v1795 = vsub.f32 %v1230, %v1691
    %v1796 = vsub.f32 %v1233, %v1694
    %v1797 = vsub.f32 %v1271, %v1697
    %v1798 = vsub.f32 %v1274, %v1700
    %v1799 = vsub.f32 %v1277, %v1703
    %v1800 = vsub.f32 %v1315, %v1706
    %v1801 = vsub.f32 %v1318, %v1709
    %v1802 = vsub.f32 %v1321, %v1712
    %v1803 = vsub.f32 %v1359, %v1715
    %v1804 = vsub.f32 %v1362, %v1718
    %v1805 = vsub.f32 %v1365, %v1721
    %v1806 = vsub.f32 %v1403, %v1724
    %v1807 = vsub.f32 %v1406, %v1727
    %v1808 = vsub.f32 %v1409, %v1730
    %v1809 = vsub.f32 %v1447, %v1733
    %v1810 = vsub.f32 %v1450, %v1736
    %v1811 = vsub.f32 %v1453, %v1739
    %v1812 = vsub.f32 %v1491, %v1742
    %v1813 = vsub.f32 %v1494, %v1745
    %v1814 = vsub.f32 %v1497, %v1748
    %v1815 = vsub.f32 %v1535, %v1751
    %v1816 = vsub.f32 %v1538, %v1754
    %v1817 = vsub.f32 %v1541, %v1757
    %v1818 = vsub.f32 %v1579, %v1760
    %v1819 = vsub.f32 %v1582, %v1763
    %v1820 = vsub.f32 %v1585, %v1766
    %v1821 = vsub.f32 %v1623, %v1769
    %v1822 = vsub.f32 %v1626, %v1772
    %v1823 = vsub.f32 %v1629, %v1775
    %v1824 = vmul.f32 %v1776, 1.442695
    %v1825 = vpow.pop %v1824
    %v1826 = vmul.f32 %v1777, 1.442695
    %v1827 = vpow.pop %v1826
    %v1828 = vmul.f32 %v1778, 1.442695
    %v1829 = vpow.pop %v1828
    %v1830 = vmul.f32 %v1779, 1.442695
    %v1831 = vpow.pop %v1830
    %v1832 = vmul.f32 %v1780, 1.442695
    %v1833 = vpow.pop %v1832
    %v1834 = vmul.f32 %v1781, 1.442695
    %v1835 = vpow.pop %v1834
    %v1836 = vmul.f32 %v1782, 1.442695
    %v1837 = vpow.pop %v1836
    %v1838 = vmul.f32 %v1783, 1.442695
    %v1839 = vpow.pop %v1838
    %v1840 = vmul.f32 %v1784, 1.442695
    %v1841 = vpow.pop %v1840
    %v1842 = vmul.f32 %v1785, 1.442695
    %v1843 = vpow.pop %v1842
    %v1844 = vmul.f32 %v1786, 1.442695
    %v1845 = vpow.pop %v1844
    %v1846 = vmul.f32 %v1787, 1.442695
    %v1847 = vpow.pop %v1846
    %v1848 = vmul.f32 %v1788, 1.442695
    %v1849 = vpow.pop %v1848
    %v1850 = vmul.f32 %v1789, 1.442695
    %v1851 = vpow.pop %v1850
    %v1852 = vmul.f32 %v1790, 1.442695
    %v1853 = vpow.pop %v1852
    %v1854 = vmul.f32 %v1791, 1.442695
    %v1855 = vpow.pop %v1854
    %v1856 = vmul.f32 %v1792, 1.442695
    %v1857 = vpow.pop %v1856
    %v1858 = vmul.f32 %v1793, 1.442695
    %v1859 = vpow.pop %v1858
    %v1860 = vmul.f32 %v1794, 1.442695
    %v1861 = vpow.pop %v1860
    %v1862 = vmul.f32 %v1795, 1.442695
    %v1863 = vpow.pop %v1862
    %v1864 = vmul.f32 %v1796, 1.442695
    %v1865 = vpow.pop %v1864
    %v1866 = vmul.f32 %v1797, 1.442695
    %v1867 = vpow.pop %v1866
    %v1868 = vmul.f32 %v1798, 1.442695
    %v1869 = vpow.pop %v1868
    %v1870 = vmul.f32 %v1799, 1.442695
    %v1871 = vpow.pop %v1870
    %v1872 = vmul.f32 %v1800, 1.442695
    %v1873 = vpow.pop %v1872
    %v1874 = vmul.f32 %v1801, 1.442695
    %v1875 = vpow.pop %v1874
    %v1876 = vmul.f32 %v1802, 1.442695
    %v1877 = vpow.pop %v1876
    %v1878 = vmul.f32 %v1803, 1.442695
    %v1879 = vpow.pop %v1878
    %v1880 = vmul.f32 %v1804, 1.442695
    %v1881 = vpow.pop %v1880
    %v1882 = vmul.f32 %v1805, 1.442695
    %v1883 = vpow.pop %v1882
    %v1884 = vmul.f32 %v1806, 1.442695
    %v1885 = vpow.pop %v1884
    %v1886 = vmul.f32 %v1807, 1.442695
    %v1887 = vpow.pop %v1886
    %v1888 = vmul.f32 %v1808, 1.442695
    %v1889 = vpow.pop %v1888
    %v1890 = vmul.f32 %v1809, 1.442695
    %v1891 = vpow.pop %v1890
    %v1892 = vmul.f32 %v1810, 1.442695
    %v1893 = vpow.pop %v1892
    %v1894 = vmul.f32 %v1811, 1.442695
    %v1895 = vpow.pop %v1894
    %v1896 = vmul.f32 %v1812, 1.442695
    %v1897 = vpow.pop %v1896
    %v1898 = vmul.f32 %v1813, 1.442695
    %v1899 = vpow.pop %v1898
    %v1900 = vmul.f32 %v1814, 1.442695
    %v1901 = vpow.pop %v1900
    %v1902 = vmul.f32 %v1815, 1.442695
    %v1903 = vpow.pop %v1902
    %v1904 = vmul.f32 %v1816, 1.442695
    %v1905 = vpow.pop %v1904
    %v1906 = vmul.f32 %v1817, 1.442695
    %v1907 = vpow.pop %v1906
    %v1908 = vmul.f32 %v1818, 1.442695
    %v1909 = vpow.pop %v1908
    %v1910 = vmul.f32 %v1819, 1.442695
    %v1911 = vpow.pop %v1910
    %v1912 = vmul.f32 %v1820, 1.442695
    %v1913 = vpow.pop %v1912
    %v1914 = vmul.f32 %v1821, 1.442695
    %v1915 = vpow.pop %v1914
    %v1916 = vmul.f32 %v1822, 1.442695
    %v1917 = vpow.pop %v1916
    %v1918 = vmul.f32 %v1823, 1.442695
    %v1919 = vpow.pop %v1918
    %v1920 = vsel %vm1631, %v1825, 0.0
    %1921 = vadd.xlane.f32.xlu0 %v1920
    %v1922 = vpop.xlane.xlu0 %1921
    %v1923 = vsel %vm1631, %v1827, 0.0
    %1924 = vadd.xlane.f32.xlu0 %v1923
    %v1925 = vpop.xlane.xlu0 %1924
    %v1926 = vsel %vm1631, %v1829, 0.0
    %1927 = vadd.xlane.f32.xlu0 %v1926
    %v1928 = vpop.xlane.xlu0 %1927
    %v1929 = vsel %vm1631, %v1831, 0.0
    %1930 = vadd.xlane.f32.xlu0 %v1929
    %v1931 = vpop.xlane.xlu0 %1930
    %v1932 = vsel %vm1631, %v1833, 0.0
    %1933 = vadd.xlane.f32.xlu0 %v1932
    %v1934 = vpop.xlane.xlu0 %1933
    %v1935 = vsel %vm1631, %v1835, 0.0
    %1936 = vadd.xlane.f32.xlu0 %v1935
    %v1937 = vpop.xlane.xlu0 %1936
    %v1938 = vsel %vm1631, %v1837, 0.0
    %1939 = vadd.xlane.f32.xlu0 %v1938
    %v1940 = vpop.xlane.xlu0 %1939
    %v1941 = vsel %vm1631, %v1839, 0.0
    %1942 = vadd.xlane.f32.xlu0 %v1941
    %v1943 = vpop.xlane.xlu0 %1942
    %v1944 = vsel %vm1631, %v1841, 0.0
    %1945 = vadd.xlane.f32.xlu0 %v1944
    %v1946 = vpop.xlane.xlu0 %1945
    %v1947 = vsel %vm1631, %v1843, 0.0
    %1948 = vadd.xlane.f32.xlu0 %v1947
    %v1949 = vpop.xlane.xlu0 %1948
    %v1950 = vsel %vm1631, %v1845, 0.0
    %1951 = vadd.xlane.f32.xlu0 %v1950
    %v1952 = vpop.xlane.xlu0 %1951
    %v1953 = vsel %vm1631, %v1847, 0.0
    %1954 = vadd.xlane.f32.xlu0 %v1953
    %v1955 = vpop.xlane.xlu0 %1954
    %v1956 = vsel %vm1631, %v1849, 0.0
    %1957 = vadd.xlane.f32.xlu0 %v1956
    %v1958 = vpop.xlane.xlu0 %1957
    %v1959 = vsel %vm1631, %v1851, 0.0
    %1960 = vadd.xlane.f32.xlu0 %v1959
    %v1961 = vpop.xlane.xlu0 %1960
    %v1962 = vsel %vm1631, %v1853, 0.0
    %1963 = vadd.xlane.f32.xlu0 %v1962
    %v1964 = vpop.xlane.xlu0 %1963
    %v1965 = vsel %vm1631, %v1855, 0.0
    %1966 = vadd.xlane.f32.xlu0 %v1965
    %v1967 = vpop.xlane.xlu0 %1966
    %v1968 = vsel %vm1631, %v1857, 0.0
    %1969 = vadd.xlane.f32.xlu0 %v1968
    %v1970 = vpop.xlane.xlu0 %1969
    %v1971 = vsel %vm1631, %v1859, 0.0
    %1972 = vadd.xlane.f32.xlu0 %v1971
    %v1973 = vpop.xlane.xlu0 %1972
    %v1974 = vsel %vm1631, %v1861, 0.0
    %1975 = vadd.xlane.f32.xlu0 %v1974
    %v1976 = vpop.xlane.xlu0 %1975
    %v1977 = vsel %vm1631, %v1863, 0.0
    %1978 = vadd.xlane.f32.xlu0 %v1977
    %v1979 = vpop.xlane.xlu0 %1978
    %v1980 = vsel %vm1631, %v1865, 0.0
    %1981 = vadd.xlane.f32.xlu0 %v1980
    %v1982 = vpop.xlane.xlu0 %1981
    %v1983 = vsel %vm1631, %v1867, 0.0
    %1984 = vadd.xlane.f32.xlu0 %v1983
    %v1985 = vpop.xlane.xlu0 %1984
    %v1986 = vsel %vm1631, %v1869, 0.0
    %1987 = vadd.xlane.f32.xlu0 %v1986
    %v1988 = vpop.xlane.xlu0 %1987
    %v1989 = vsel %vm1631, %v1871, 0.0
    %1990 = vadd.xlane.f32.xlu0 %v1989
    %v1991 = vpop.xlane.xlu0 %1990
    %v1992 = vsel %vm1631, %v1873, 0.0
    %1993 = vadd.xlane.f32.xlu0 %v1992
    %v1994 = vpop.xlane.xlu0 %1993
    %v1995 = vsel %vm1631, %v1875, 0.0
    %1996 = vadd.xlane.f32.xlu0 %v1995
    %v1997 = vpop.xlane.xlu0 %1996
    %v1998 = vsel %vm1631, %v1877, 0.0
    %1999 = vadd.xlane.f32.xlu0 %v1998
    %v2000 = vpop.xlane.xlu0 %1999
    %v2001 = vsel %vm1631, %v1879, 0.0
    %2002 = vadd.xlane.f32.xlu0 %v2001
    %v2003 = vpop.xlane.xlu0 %2002
    %v2004 = vsel %vm1631, %v1881, 0.0
    %2005 = vadd.xlane.f32.xlu0 %v2004
    %v2006 = vpop.xlane.xlu0 %2005
    %v2007 = vsel %vm1631, %v1883, 0.0
    %2008 = vadd.xlane.f32.xlu0 %v2007
    %v2009 = vpop.xlane.xlu0 %2008
    %v2010 = vsel %vm1631, %v1885, 0.0
    %2011 = vadd.xlane.f32.xlu0 %v2010
    %v2012 = vpop.xlane.xlu0 %2011
    %v2013 = vsel %vm1631, %v1887, 0.0
    %2014 = vadd.xlane.f32.xlu0 %v2013
    %v2015 = vpop.xlane.xlu0 %2014
    %v2016 = vsel %vm1631, %v1889, 0.0
    %2017 = vadd.xlane.f32.xlu0 %v2016
    %v2018 = vpop.xlane.xlu0 %2017
    %v2019 = vsel %vm1631, %v1891, 0.0
    %2020 = vadd.xlane.f32.xlu0 %v2019
    %v2021 = vpop.xlane.xlu0 %2020
    %v2022 = vsel %vm1631, %v1893, 0.0
    %2023 = vadd.xlane.f32.xlu0 %v2022
    %v2024 = vpop.xlane.xlu0 %2023
    %v2025 = vsel %vm1631, %v1895, 0.0
    %2026 = vadd.xlane.f32.xlu0 %v2025
    %v2027 = vpop.xlane.xlu0 %2026
    %v2028 = vsel %vm1631, %v1897, 0.0
    %2029 = vadd.xlane.f32.xlu0 %v2028
    %v2030 = vpop.xlane.xlu0 %2029
    %v2031 = vsel %vm1631, %v1899, 0.0
    %2032 = vadd.xlane.f32.xlu0 %v2031
    %v2033 = vpop.xlane.xlu0 %2032
    %v2034 = vsel %vm1631, %v1901, 0.0
    %2035 = vadd.xlane.f32.xlu0 %v2034
    %v2036 = vpop.xlane.xlu0 %2035
    %v2037 = vsel %vm1631, %v1903, 0.0
    %2038 = vadd.xlane.f32.xlu0 %v2037
    %v2039 = vpop.xlane.xlu0 %2038
    %v2040 = vsel %vm1631, %v1905, 0.0
    %2041 = vadd.xlane.f32.xlu0 %v2040
    %v2042 = vpop.xlane.xlu0 %2041
    %v2043 = vsel %vm1631, %v1907, 0.0
    %2044 = vadd.xlane.f32.xlu0 %v2043
    %v2045 = vpop.xlane.xlu0 %2044
    %v2046 = vsel %vm1631, %v1909, 0.0
    %2047 = vadd.xlane.f32.xlu0 %v2046
    %v2048 = vpop.xlane.xlu0 %2047
    %v2049 = vsel %vm1631, %v1911, 0.0
    %2050 = vadd.xlane.f32.xlu0 %v2049
    %v2051 = vpop.xlane.xlu0 %2050
    %v2052 = vsel %vm1631, %v1913, 0.0
    %2053 = vadd.xlane.f32.xlu0 %v2052
    %v2054 = vpop.xlane.xlu0 %2053
    %v2055 = vsel %vm1631, %v1915, 0.0
    %2056 = vadd.xlane.f32.xlu0 %v2055
    %v2057 = vpop.xlane.xlu0 %2056
    %v2058 = vsel %vm1631, %v1917, 0.0
    %2059 = vadd.xlane.f32.xlu0 %v2058
    %v2060 = vpop.xlane.xlu0 %2059
    %v2061 = vsel %vm1631, %v1919, 0.0
    %2062 = vadd.xlane.f32.xlu0 %v2061
    %v2063 = vpop.xlane.xlu0 %2062
    %v2064 = vrcp.pop %v1922
    %v2065 = vrcp.pop %v1925
    %v2066 = vrcp.pop %v1928
    %v2067 = vrcp.pop %v1931
    %v2068 = vrcp.pop %v1934
    %v2069 = vrcp.pop %v1937
    %v2070 = vrcp.pop %v1940
    %v2071 = vrcp.pop %v1943
    %v2072 = vrcp.pop %v1946
    %v2073 = vrcp.pop %v1949
    %v2074 = vrcp.pop %v1952
    %v2075 = vrcp.pop %v1955
    %v2076 = vrcp.pop %v1958
    %v2077 = vrcp.pop %v1961
    %v2078 = vrcp.pop %v1964
    %v2079 = vrcp.pop %v1967
    %v2080 = vrcp.pop %v1970
    %v2081 = vrcp.pop %v1973
    %v2082 = vrcp.pop %v1976
    %v2083 = vrcp.pop %v1979
    %v2084 = vrcp.pop %v1982
    %v2085 = vrcp.pop %v1985
    %v2086 = vrcp.pop %v1988
    %v2087 = vrcp.pop %v1991
    %v2088 = vrcp.pop %v1994
    %v2089 = vrcp.pop %v1997
    %v2090 = vrcp.pop %v2000
    %v2091 = vrcp.pop %v2003
    %v2092 = vrcp.pop %v2006
    %v2093 = vrcp.pop %v2009
    %v2094 = vrcp.pop %v2012
    %v2095 = vrcp.pop %v2015
    %v2096 = vrcp.pop %v2018
    %v2097 = vrcp.pop %v2021
    %v2098 = vrcp.pop %v2024
    %v2099 = vrcp.pop %v2027
    %v2100 = vrcp.pop %v2030
    %v2101 = vrcp.pop %v2033
    %v2102 = vrcp.pop %v2036
    %v2103 = vrcp.pop %v2039
    %v2104 = vrcp.pop %v2042
    %v2105 = vrcp.pop %v2045
    %v2106 = vrcp.pop %v2048
    %v2107 = vrcp.pop %v2051
    %v2108 = vrcp.pop %v2054
    %v2109 = vrcp.pop %v2057
    %v2110 = vrcp.pop %v2060
    %v2111 = vrcp.pop %v2063
    %v2112 = vmul.f32 %v1825, %v2064
    %v2113 = vmul.f32 %v1827, %v2065
    %v2114 = vmul.f32 %v1829, %v2066
    %v2115 = vmul.f32 %v1831, %v2067
    %v2116 = vmul.f32 %v1833, %v2068
    %v2117 = vmul.f32 %v1835, %v2069
    %v2118 = vmul.f32 %v1837, %v2070
    %v2119 = vmul.f32 %v1839, %v2071
    %v2120 = vmul.f32 %v1841, %v2072
    %v2121 = vmul.f32 %v1843, %v2073
    %v2122 = vmul.f32 %v1845, %v2074
    %v2123 = vmul.f32 %v1847, %v2075
    %v2124 = vmul.f32 %v1849, %v2076
    %v2125 = vmul.f32 %v1851, %v2077
    %v2126 = vmul.f32 %v1853, %v2078
    %v2127 = vmul.f32 %v1855, %v2079
    %v2128 = vmul.f32 %v1857, %v2080
    %v2129 = vmul.f32 %v1859, %v2081
    %v2130 = vmul.f32 %v1861, %v2082
    %v2131 = vmul.f32 %v1863, %v2083
    %v2132 = vmul.f32 %v1865, %v2084
    %v2133 = vmul.f32 %v1867, %v2085
    %v2134 = vmul.f32 %v1869, %v2086
    %v2135 = vmul.f32 %v1871, %v2087
    %v2136 = vmul.f32 %v1873, %v2088
    %v2137 = vmul.f32 %v1875, %v2089
    %v2138 = vmul.f32 %v1877, %v2090
    %v2139 = vmul.f32 %v1879, %v2091
    %v2140 = vmul.f32 %v1881, %v2092
    %v2141 = vmul.f32 %v1883, %v2093
    %v2142 = vmul.f32 %v1885, %v2094
    %v2143 = vmul.f32 %v1887, %v2095
    %v2144 = vmul.f32 %v1889, %v2096
    %v2145 = vmul.f32 %v1891, %v2097
    %v2146 = vmul.f32 %v1893, %v2098
    %v2147 = vmul.f32 %v1895, %v2099
    %v2148 = vmul.f32 %v1897, %v2100
    %v2149 = vmul.f32 %v1899, %v2101
    %v2150 = vmul.f32 %v1901, %v2102
    %v2151 = vmul.f32 %v1903, %v2103
    %v2152 = vmul.f32 %v1905, %v2104
    %v2153 = vmul.f32 %v1907, %v2105
    %v2154 = vmul.f32 %v1909, %v2106
    %v2155 = vmul.f32 %v1911, %v2107
    %v2156 = vmul.f32 %v1913, %v2108
    %v2157 = vmul.f32 %v1915, %v2109
    %v2158 = vmul.f32 %v1917, %v2110
    %v2159 = vmul.f32 %v1919, %v2111
    %2160 = vrot.lane.b32.xlu0 %v819, 64
    %v2161 = vpop.permute.xlu0 %2160
    %2162 = vrot.lane.b32.xlu0 %v822, 64
    %v2163 = vpop.permute.xlu0 %2162
    %2164 = vrot.lane.b32.xlu0 %v825, 64
    %v2165 = vpop.permute.xlu0 %2164
    %v2170 = vsel %vm1631, %v2112, 0
    %v2173 = vsel %vm1631, %v2113, 0
    %v2176 = vsel %vm1631, %v2114, 0
    %2178 = vmatpush.msra.mxu0 0.0
    %2179 = vmatpush.msra.mxu0 0.0
    %2180 = vmatpush.msra.mxu0 0.0
    %2181 = vmatpush.msra.mxu0 0.0
    %2182 = vmatpush.msra.mxu0 0.0
    %2183 = vmatpush.msra.mxu0 0.0
    %2184 = vmatpush.msra.mxu0 0.0
    %2185 = vmatpush.msra.mxu0 0.0
    %2186 = vmatpush.msra.mxu0 0.0
    %2187 = vmatpush.msra.mxu0 0.0
    %2188 = vmatpush.msra.mxu0 0.0
    %2189 = vmatpush.msra.mxu0 0.0
    %2190 = vmatpush.msra.mxu0 0.0
    %2191 = vmatpush.msra.mxu0 %v2165
    %2192 = vmatpush.msra.mxu0 %v2163
    %2193 = vmatpush.msra.mxu0 %v2161
    %2194 = vmatmul.f32.gmra.mxu0 %v2170
    %v2195 = vpop.f32.mrf.mxu0
    %v2196 = vadd.f32 0.0, %v2195
    %2197 = vmatmul.f32.gmra.mxu0 %v2173
    %v2198 = vpop.f32.mrf.mxu0
    %v2199 = vadd.f32 0.0, %v2198
    %2200 = vmatmul.f32.gmra.mxu0 %v2176
    %v2201 = vpop.f32.mrf.mxu0
    %v2202 = vadd.f32 0.0, %v2201
    %2203 = vdwg.mxu0
    %2204 = vrot.lane.b32.xlu0 %v828, 64
    %v2205 = vpop.permute.xlu0 %2204
    %2206 = vrot.lane.b32.xlu0 %v831, 64
    %v2207 = vpop.permute.xlu0 %2206
    %2208 = vrot.lane.b32.xlu0 %v834, 64
    %v2209 = vpop.permute.xlu0 %2208
    %v2214 = vsel %vm1631, %v2115, 0
    %v2217 = vsel %vm1631, %v2116, 0
    %v2220 = vsel %vm1631, %v2117, 0
    %2222 = vmatpush.msra.mxu0 0.0
    %2223 = vmatpush.msra.mxu0 0.0
    %2224 = vmatpush.msra.mxu0 0.0
    %2225 = vmatpush.msra.mxu0 0.0
    %2226 = vmatpush.msra.mxu0 0.0
    %2227 = vmatpush.msra.mxu0 0.0
    %2228 = vmatpush.msra.mxu0 0.0
    %2229 = vmatpush.msra.mxu0 0.0
    %2230 = vmatpush.msra.mxu0 0.0
    %2231 = vmatpush.msra.mxu0 0.0
    %2232 = vmatpush.msra.mxu0 0.0
    %2233 = vmatpush.msra.mxu0 0.0
    %2234 = vmatpush.msra.mxu0 0.0
    %2235 = vmatpush.msra.mxu0 %v2209
    %2236 = vmatpush.msra.mxu0 %v2207
    %2237 = vmatpush.msra.mxu0 %v2205
    %2238 = vmatmul.f32.gmra.mxu0 %v2214
    %v2239 = vpop.f32.mrf.mxu0
    %v2240 = vadd.f32 0.0, %v2239
    %2241 = vmatmul.f32.gmra.mxu0 %v2217
    %v2242 = vpop.f32.mrf.mxu0
    %v2243 = vadd.f32 0.0, %v2242
    %2244 = vmatmul.f32.gmra.mxu0 %v2220
    %v2245 = vpop.f32.mrf.mxu0
    %v2246 = vadd.f32 0.0, %v2245
    %2247 = vdwg.mxu0
    %2248 = vrot.lane.b32.xlu0 %v843, 64
    %v2249 = vpop.permute.xlu0 %2248
    %2250 = vrot.lane.b32.xlu0 %v845, 64
    %v2251 = vpop.permute.xlu0 %2250
    %2252 = vrot.lane.b32.xlu0 %v847, 64
    %v2253 = vpop.permute.xlu0 %2252
    %v2258 = vsel %vm1631, %v2118, 0
    %v2261 = vsel %vm1631, %v2119, 0
    %v2264 = vsel %vm1631, %v2120, 0
    %2266 = vmatpush.msra.mxu0 0.0
    %2267 = vmatpush.msra.mxu0 0.0
    %2268 = vmatpush.msra.mxu0 0.0
    %2269 = vmatpush.msra.mxu0 0.0
    %2270 = vmatpush.msra.mxu0 0.0
    %2271 = vmatpush.msra.mxu0 0.0
    %2272 = vmatpush.msra.mxu0 0.0
    %2273 = vmatpush.msra.mxu0 0.0
    %2274 = vmatpush.msra.mxu0 0.0
    %2275 = vmatpush.msra.mxu0 0.0
    %2276 = vmatpush.msra.mxu0 0.0
    %2277 = vmatpush.msra.mxu0 0.0
    %2278 = vmatpush.msra.mxu0 0.0
    %2279 = vmatpush.msra.mxu0 %v2253
    %2280 = vmatpush.msra.mxu0 %v2251
    %2281 = vmatpush.msra.mxu0 %v2249
    %2282 = vmatmul.f32.gmra.mxu0 %v2258
    %v2283 = vpop.f32.mrf.mxu0
    %v2284 = vadd.f32 0.0, %v2283
    %2285 = vmatmul.f32.gmra.mxu0 %v2261
    %v2286 = vpop.f32.mrf.mxu0
    %v2287 = vadd.f32 0.0, %v2286
    %2288 = vmatmul.f32.gmra.mxu0 %v2264
    %v2289 = vpop.f32.mrf.mxu0
    %v2290 = vadd.f32 0.0, %v2289
    %2291 = vdwg.mxu0
    %2292 = vrot.lane.b32.xlu0 %v849, 64
    %v2293 = vpop.permute.xlu0 %2292
    %2294 = vrot.lane.b32.xlu0 %v851, 64
    %v2295 = vpop.permute.xlu0 %2294
    %2296 = vrot.lane.b32.xlu0 %v853, 64
    %v2297 = vpop.permute.xlu0 %2296
    %v2302 = vsel %vm1631, %v2121, 0
    %v2305 = vsel %vm1631, %v2122, 0
    %v2308 = vsel %vm1631, %v2123, 0
    %2310 = vmatpush.msra.mxu0 0.0
    %2311 = vmatpush.msra.mxu0 0.0
    %2312 = vmatpush.msra.mxu0 0.0
    %2313 = vmatpush.msra.mxu0 0.0
    %2314 = vmatpush.msra.mxu0 0.0
    %2315 = vmatpush.msra.mxu0 0.0
    %2316 = vmatpush.msra.mxu0 0.0
    %2317 = vmatpush.msra.mxu0 0.0
    %2318 = vmatpush.msra.mxu0 0.0
    %2319 = vmatpush.msra.mxu0 0.0
    %2320 = vmatpush.msra.mxu0 0.0
    %2321 = vmatpush.msra.mxu0 0.0
    %2322 = vmatpush.msra.mxu0 0.0
    %2323 = vmatpush.msra.mxu0 %v2297
    %2324 = vmatpush.msra.mxu0 %v2295
    %2325 = vmatpush.msra.mxu0 %v2293
    %2326 = vmatmul.f32.gmra.mxu0 %v2302
    %v2327 = vpop.f32.mrf.mxu0
    %v2328 = vadd.f32 0.0, %v2327
    %2329 = vmatmul.f32.gmra.mxu0 %v2305
    %v2330 = vpop.f32.mrf.mxu0
    %v2331 = vadd.f32 0.0, %v2330
    %2332 = vmatmul.f32.gmra.mxu0 %v2308
    %v2333 = vpop.f32.mrf.mxu0
    %v2334 = vadd.f32 0.0, %v2333
    %2335 = vdwg.mxu0
    %2336 = vrot.lane.b32.xlu0 %v855, 64
    %v2337 = vpop.permute.xlu0 %2336
    %2338 = vrot.lane.b32.xlu0 %v857, 64
    %v2339 = vpop.permute.xlu0 %2338
    %2340 = vrot.lane.b32.xlu0 %v859, 64
    %v2341 = vpop.permute.xlu0 %2340
    %v2346 = vsel %vm1631, %v2124, 0
    %v2349 = vsel %vm1631, %v2125, 0
    %v2352 = vsel %vm1631, %v2126, 0
    %2354 = vmatpush.msra.mxu0 0.0
    %2355 = vmatpush.msra.mxu0 0.0
    %2356 = vmatpush.msra.mxu0 0.0
    %2357 = vmatpush.msra.mxu0 0.0
    %2358 = vmatpush.msra.mxu0 0.0
    %2359 = vmatpush.msra.mxu0 0.0
    %2360 = vmatpush.msra.mxu0 0.0
    %2361 = vmatpush.msra.mxu0 0.0
    %2362 = vmatpush.msra.mxu0 0.0
    %2363 = vmatpush.msra.mxu0 0.0
    %2364 = vmatpush.msra.mxu0 0.0
    %2365 = vmatpush.msra.mxu0 0.0
    %2366 = vmatpush.msra.mxu0 0.0
    %2367 = vmatpush.msra.mxu0 %v2341
    %2368 = vmatpush.msra.mxu0 %v2339
    %2369 = vmatpush.msra.mxu0 %v2337
    %2370 = vmatmul.f32.gmra.mxu0 %v2346
    %v2371 = vpop.f32.mrf.mxu0
    %v2372 = vadd.f32 0.0, %v2371
    %2373 = vmatmul.f32.gmra.mxu0 %v2349
    %v2374 = vpop.f32.mrf.mxu0
    %v2375 = vadd.f32 0.0, %v2374
    %2376 = vmatmul.f32.gmra.mxu0 %v2352
    %v2377 = vpop.f32.mrf.mxu0
    %v2378 = vadd.f32 0.0, %v2377
    %2379 = vdwg.mxu0
    %2380 = vrot.lane.b32.xlu0 %v861, 64
    %v2381 = vpop.permute.xlu0 %2380
    %2382 = vrot.lane.b32.xlu0 %v863, 64
    %v2383 = vpop.permute.xlu0 %2382
    %2384 = vrot.lane.b32.xlu0 %v865, 64
    %v2385 = vpop.permute.xlu0 %2384
    %v2390 = vsel %vm1631, %v2127, 0
    %v2393 = vsel %vm1631, %v2128, 0
    %v2396 = vsel %vm1631, %v2129, 0
    %2398 = vmatpush.msra.mxu0 0.0
    %2399 = vmatpush.msra.mxu0 0.0
    %2400 = vmatpush.msra.mxu0 0.0
    %2401 = vmatpush.msra.mxu0 0.0
    %2402 = vmatpush.msra.mxu0 0.0
    %2403 = vmatpush.msra.mxu0 0.0
    %2404 = vmatpush.msra.mxu0 0.0
    %2405 = vmatpush.msra.mxu0 0.0
    %2406 = vmatpush.msra.mxu0 0.0
    %2407 = vmatpush.msra.mxu0 0.0
    %2408 = vmatpush.msra.mxu0 0.0
    %2409 = vmatpush.msra.mxu0 0.0
    %2410 = vmatpush.msra.mxu0 0.0
    %2411 = vmatpush.msra.mxu0 %v2385
    %2412 = vmatpush.msra.mxu0 %v2383
    %2413 = vmatpush.msra.mxu0 %v2381
    %2414 = vmatmul.f32.gmra.mxu0 %v2390
    %v2415 = vpop.f32.mrf.mxu0
    %v2416 = vadd.f32 0.0, %v2415
    %2417 = vmatmul.f32.gmra.mxu0 %v2393
    %v2418 = vpop.f32.mrf.mxu0
    %v2419 = vadd.f32 0.0, %v2418
    %2420 = vmatmul.f32.gmra.mxu0 %v2396
    %v2421 = vpop.f32.mrf.mxu0
    %v2422 = vadd.f32 0.0, %v2421
    %2423 = vdwg.mxu0
    %2424 = vrot.lane.b32.xlu0 %v867, 64
    %v2425 = vpop.permute.xlu0 %2424
    %2426 = vrot.lane.b32.xlu0 %v869, 64
    %v2427 = vpop.permute.xlu0 %2426
    %2428 = vrot.lane.b32.xlu0 %v871, 64
    %v2429 = vpop.permute.xlu0 %2428
    %v2434 = vsel %vm1631, %v2130, 0
    %v2437 = vsel %vm1631, %v2131, 0
    %v2440 = vsel %vm1631, %v2132, 0
    %2442 = vmatpush.msra.mxu0 0.0
    %2443 = vmatpush.msra.mxu0 0.0
    %2444 = vmatpush.msra.mxu0 0.0
    %2445 = vmatpush.msra.mxu0 0.0
    %2446 = vmatpush.msra.mxu0 0.0
    %2447 = vmatpush.msra.mxu0 0.0
    %2448 = vmatpush.msra.mxu0 0.0
    %2449 = vmatpush.msra.mxu0 0.0
    %2450 = vmatpush.msra.mxu0 0.0
    %2451 = vmatpush.msra.mxu0 0.0
    %2452 = vmatpush.msra.mxu0 0.0
    %2453 = vmatpush.msra.mxu0 0.0
    %2454 = vmatpush.msra.mxu0 0.0
    %2455 = vmatpush.msra.mxu0 %v2429
    %2456 = vmatpush.msra.mxu0 %v2427
    %2457 = vmatpush.msra.mxu0 %v2425
    %2458 = vmatmul.f32.gmra.mxu0 %v2434
    %v2459 = vpop.f32.mrf.mxu0
    %v2460 = vadd.f32 0.0, %v2459
    %2461 = vmatmul.f32.gmra.mxu0 %v2437
    %v2462 = vpop.f32.mrf.mxu0
    %v2463 = vadd.f32 0.0, %v2462
    %2464 = vmatmul.f32.gmra.mxu0 %v2440
    %v2465 = vpop.f32.mrf.mxu0
    %v2466 = vadd.f32 0.0, %v2465
    %2467 = vdwg.mxu0
    %2468 = vrot.lane.b32.xlu0 %v873, 64
    %v2469 = vpop.permute.xlu0 %2468
    %2470 = vrot.lane.b32.xlu0 %v875, 64
    %v2471 = vpop.permute.xlu0 %2470
    %2472 = vrot.lane.b32.xlu0 %v877, 64
    %v2473 = vpop.permute.xlu0 %2472
    %v2478 = vsel %vm1631, %v2133, 0
    %v2481 = vsel %vm1631, %v2134, 0
    %v2484 = vsel %vm1631, %v2135, 0
    %2486 = vmatpush.msra.mxu0 0.0
    %2487 = vmatpush.msra.mxu0 0.0
    %2488 = vmatpush.msra.mxu0 0.0
    %2489 = vmatpush.msra.mxu0 0.0
    %2490 = vmatpush.msra.mxu0 0.0
    %2491 = vmatpush.msra.mxu0 0.0
    %2492 = vmatpush.msra.mxu0 0.0
    %2493 = vmatpush.msra.mxu0 0.0
    %2494 = vmatpush.msra.mxu0 0.0
    %2495 = vmatpush.msra.mxu0 0.0
    %2496 = vmatpush.msra.mxu0 0.0
    %2497 = vmatpush.msra.mxu0 0.0
    %2498 = vmatpush.msra.mxu0 0.0
    %2499 = vmatpush.msra.mxu0 %v2473
    %2500 = vmatpush.msra.mxu0 %v2471
    %2501 = vmatpush.msra.mxu0 %v2469
    %2502 = vmatmul.f32.gmra.mxu0 %v2478
    %v2503 = vpop.f32.mrf.mxu0
    %v2504 = vadd.f32 0.0, %v2503
    %2505 = vmatmul.f32.gmra.mxu0 %v2481
    %v2506 = vpop.f32.mrf.mxu0
    %v2507 = vadd.f32 0.0, %v2506
    %2508 = vmatmul.f32.gmra.mxu0 %v2484
    %v2509 = vpop.f32.mrf.mxu0
    %v2510 = vadd.f32 0.0, %v2509
    %2511 = vdwg.mxu0
    %2512 = vrot.lane.b32.xlu0 %v879, 64
    %v2513 = vpop.permute.xlu0 %2512
    %2514 = vrot.lane.b32.xlu0 %v881, 64
    %v2515 = vpop.permute.xlu0 %2514
    %2516 = vrot.lane.b32.xlu0 %v883, 64
    %v2517 = vpop.permute.xlu0 %2516
    %v2522 = vsel %vm1631, %v2136, 0
    %v2525 = vsel %vm1631, %v2137, 0
    %v2528 = vsel %vm1631, %v2138, 0
    %2530 = vmatpush.msra.mxu0 0.0
    %2531 = vmatpush.msra.mxu0 0.0
    %2532 = vmatpush.msra.mxu0 0.0
    %2533 = vmatpush.msra.mxu0 0.0
    %2534 = vmatpush.msra.mxu0 0.0
    %2535 = vmatpush.msra.mxu0 0.0
    %2536 = vmatpush.msra.mxu0 0.0
    %2537 = vmatpush.msra.mxu0 0.0
    %2538 = vmatpush.msra.mxu0 0.0
    %2539 = vmatpush.msra.mxu0 0.0
    %2540 = vmatpush.msra.mxu0 0.0
    %2541 = vmatpush.msra.mxu0 0.0
    %2542 = vmatpush.msra.mxu0 0.0
    %2543 = vmatpush.msra.mxu0 %v2517
    %2544 = vmatpush.msra.mxu0 %v2515
    %2545 = vmatpush.msra.mxu0 %v2513
    %2546 = vmatmul.f32.gmra.mxu0 %v2522
    %v2547 = vpop.f32.mrf.mxu0
    %v2548 = vadd.f32 0.0, %v2547
    %2549 = vmatmul.f32.gmra.mxu0 %v2525
    %v2550 = vpop.f32.mrf.mxu0
    %v2551 = vadd.f32 0.0, %v2550
    %2552 = vmatmul.f32.gmra.mxu0 %v2528
    %v2553 = vpop.f32.mrf.mxu0
    %v2554 = vadd.f32 0.0, %v2553
    %2555 = vdwg.mxu0
    %2556 = vrot.lane.b32.xlu0 %v885, 64
    %v2557 = vpop.permute.xlu0 %2556
    %2558 = vrot.lane.b32.xlu0 %v887, 64
    %v2559 = vpop.permute.xlu0 %2558
    %2560 = vrot.lane.b32.xlu0 %v889, 64
    %v2561 = vpop.permute.xlu0 %2560
    %v2566 = vsel %vm1631, %v2139, 0
    %v2569 = vsel %vm1631, %v2140, 0
    %v2572 = vsel %vm1631, %v2141, 0
    %2574 = vmatpush.msra.mxu0 0.0
    %2575 = vmatpush.msra.mxu0 0.0
    %2576 = vmatpush.msra.mxu0 0.0
    %2577 = vmatpush.msra.mxu0 0.0
    %2578 = vmatpush.msra.mxu0 0.0
    %2579 = vmatpush.msra.mxu0 0.0
    %2580 = vmatpush.msra.mxu0 0.0
    %2581 = vmatpush.msra.mxu0 0.0
    %2582 = vmatpush.msra.mxu0 0.0
    %2583 = vmatpush.msra.mxu0 0.0
    %2584 = vmatpush.msra.mxu0 0.0
    %2585 = vmatpush.msra.mxu0 0.0
    %2586 = vmatpush.msra.mxu0 0.0
    %2587 = vmatpush.msra.mxu0 %v2561
    %2588 = vmatpush.msra.mxu0 %v2559
    %2589 = vmatpush.msra.mxu0 %v2557
    %2590 = vmatmul.f32.gmra.mxu0 %v2566
    %v2591 = vpop.f32.mrf.mxu0
    %v2592 = vadd.f32 0.0, %v2591
    %2593 = vmatmul.f32.gmra.mxu0 %v2569
    %v2594 = vpop.f32.mrf.mxu0
    %v2595 = vadd.f32 0.0, %v2594
    %2596 = vmatmul.f32.gmra.mxu0 %v2572
    %v2597 = vpop.f32.mrf.mxu0
    %v2598 = vadd.f32 0.0, %v2597
    %2599 = vdwg.mxu0
    %2600 = vrot.lane.b32.xlu0 %v891, 64
    %v2601 = vpop.permute.xlu0 %2600
    %2602 = vrot.lane.b32.xlu0 %v893, 64
    %v2603 = vpop.permute.xlu0 %2602
    %2604 = vrot.lane.b32.xlu0 %v895, 64
    %v2605 = vpop.permute.xlu0 %2604
    %v2610 = vsel %vm1631, %v2142, 0
    %v2613 = vsel %vm1631, %v2143, 0
    %v2616 = vsel %vm1631, %v2144, 0
    %2618 = vmatpush.msra.mxu0 0.0
    %2619 = vmatpush.msra.mxu0 0.0
    %2620 = vmatpush.msra.mxu0 0.0
    %2621 = vmatpush.msra.mxu0 0.0
    %2622 = vmatpush.msra.mxu0 0.0
    %2623 = vmatpush.msra.mxu0 0.0
    %2624 = vmatpush.msra.mxu0 0.0
    %2625 = vmatpush.msra.mxu0 0.0
    %2626 = vmatpush.msra.mxu0 0.0
    %2627 = vmatpush.msra.mxu0 0.0
    %2628 = vmatpush.msra.mxu0 0.0
    %2629 = vmatpush.msra.mxu0 0.0
    %2630 = vmatpush.msra.mxu0 0.0
    %2631 = vmatpush.msra.mxu0 %v2605
    %2632 = vmatpush.msra.mxu0 %v2603
    %2633 = vmatpush.msra.mxu0 %v2601
    %2634 = vmatmul.f32.gmra.mxu0 %v2610
    %v2635 = vpop.f32.mrf.mxu0
    %v2636 = vadd.f32 0.0, %v2635
    %2637 = vmatmul.f32.gmra.mxu0 %v2613
    %v2638 = vpop.f32.mrf.mxu0
    %v2639 = vadd.f32 0.0, %v2638
    %2640 = vmatmul.f32.gmra.mxu0 %v2616
    %v2641 = vpop.f32.mrf.mxu0
    %v2642 = vadd.f32 0.0, %v2641
    %2643 = vdwg.mxu0
    %2644 = vrot.lane.b32.xlu0 %v897, 64
    %v2645 = vpop.permute.xlu0 %2644
    %2646 = vrot.lane.b32.xlu0 %v899, 64
    %v2647 = vpop.permute.xlu0 %2646
    %2648 = vrot.lane.b32.xlu0 %v901, 64
    %v2649 = vpop.permute.xlu0 %2648
    %v2654 = vsel %vm1631, %v2145, 0
    %v2657 = vsel %vm1631, %v2146, 0
    %v2660 = vsel %vm1631, %v2147, 0
    %2662 = vmatpush.msra.mxu0 0.0
    %2663 = vmatpush.msra.mxu0 0.0
    %2664 = vmatpush.msra.mxu0 0.0
    %2665 = vmatpush.msra.mxu0 0.0
    %2666 = vmatpush.msra.mxu0 0.0
    %2667 = vmatpush.msra.mxu0 0.0
    %2668 = vmatpush.msra.mxu0 0.0
    %2669 = vmatpush.msra.mxu0 0.0
    %2670 = vmatpush.msra.mxu0 0.0
    %2671 = vmatpush.msra.mxu0 0.0
    %2672 = vmatpush.msra.mxu0 0.0
    %2673 = vmatpush.msra.mxu0 0.0
    %2674 = vmatpush.msra.mxu0 0.0
    %2675 = vmatpush.msra.mxu0 %v2649
    %2676 = vmatpush.msra.mxu0 %v2647
    %2677 = vmatpush.msra.mxu0 %v2645
    %2678 = vmatmul.f32.gmra.mxu0 %v2654
    %v2679 = vpop.f32.mrf.mxu0
    %v2680 = vadd.f32 0.0, %v2679
    %2681 = vmatmul.f32.gmra.mxu0 %v2657
    %v2682 = vpop.f32.mrf.mxu0
    %v2683 = vadd.f32 0.0, %v2682
    %2684 = vmatmul.f32.gmra.mxu0 %v2660
    %v2685 = vpop.f32.mrf.mxu0
    %v2686 = vadd.f32 0.0, %v2685
    %2687 = vdwg.mxu0
    %2688 = vrot.lane.b32.xlu0 %v903, 64
    %v2689 = vpop.permute.xlu0 %2688
    %2690 = vrot.lane.b32.xlu0 %v905, 64
    %v2691 = vpop.permute.xlu0 %2690
    %2692 = vrot.lane.b32.xlu0 %v907, 64
    %v2693 = vpop.permute.xlu0 %2692
    %v2698 = vsel %vm1631, %v2148, 0
    %v2701 = vsel %vm1631, %v2149, 0
    %v2704 = vsel %vm1631, %v2150, 0
    %2706 = vmatpush.msra.mxu0 0.0
    %2707 = vmatpush.msra.mxu0 0.0
    %2708 = vmatpush.msra.mxu0 0.0
    %2709 = vmatpush.msra.mxu0 0.0
    %2710 = vmatpush.msra.mxu0 0.0
    %2711 = vmatpush.msra.mxu0 0.0
    %2712 = vmatpush.msra.mxu0 0.0
    %2713 = vmatpush.msra.mxu0 0.0
    %2714 = vmatpush.msra.mxu0 0.0
    %2715 = vmatpush.msra.mxu0 0.0
    %2716 = vmatpush.msra.mxu0 0.0
    %2717 = vmatpush.msra.mxu0 0.0
    %2718 = vmatpush.msra.mxu0 0.0
    %2719 = vmatpush.msra.mxu0 %v2693
    %2720 = vmatpush.msra.mxu0 %v2691
    %2721 = vmatpush.msra.mxu0 %v2689
    %2722 = vmatmul.f32.gmra.mxu0 %v2698
    %v2723 = vpop.f32.mrf.mxu0
    %v2724 = vadd.f32 0.0, %v2723
    %2725 = vmatmul.f32.gmra.mxu0 %v2701
    %v2726 = vpop.f32.mrf.mxu0
    %v2727 = vadd.f32 0.0, %v2726
    %2728 = vmatmul.f32.gmra.mxu0 %v2704
    %v2729 = vpop.f32.mrf.mxu0
    %v2730 = vadd.f32 0.0, %v2729
    %2731 = vdwg.mxu0
    %2732 = vrot.lane.b32.xlu0 %v909, 64
    %v2733 = vpop.permute.xlu0 %2732
    %2734 = vrot.lane.b32.xlu0 %v911, 64
    %v2735 = vpop.permute.xlu0 %2734
    %2736 = vrot.lane.b32.xlu0 %v913, 64
    %v2737 = vpop.permute.xlu0 %2736
    %v2742 = vsel %vm1631, %v2151, 0
    %v2745 = vsel %vm1631, %v2152, 0
    %v2748 = vsel %vm1631, %v2153, 0
    %2750 = vmatpush.msra.mxu0 0.0
    %2751 = vmatpush.msra.mxu0 0.0
    %2752 = vmatpush.msra.mxu0 0.0
    %2753 = vmatpush.msra.mxu0 0.0
    %2754 = vmatpush.msra.mxu0 0.0
    %2755 = vmatpush.msra.mxu0 0.0
    %2756 = vmatpush.msra.mxu0 0.0
    %2757 = vmatpush.msra.mxu0 0.0
    %2758 = vmatpush.msra.mxu0 0.0
    %2759 = vmatpush.msra.mxu0 0.0
    %2760 = vmatpush.msra.mxu0 0.0
    %2761 = vmatpush.msra.mxu0 0.0
    %2762 = vmatpush.msra.mxu0 0.0
    %2763 = vmatpush.msra.mxu0 %v2737
    %2764 = vmatpush.msra.mxu0 %v2735
    %2765 = vmatpush.msra.mxu0 %v2733
    %2766 = vmatmul.f32.gmra.mxu0 %v2742
    %v2767 = vpop.f32.mrf.mxu0
    %v2768 = vadd.f32 0.0, %v2767
    %2769 = vmatmul.f32.gmra.mxu0 %v2745
    %v2770 = vpop.f32.mrf.mxu0
    %v2771 = vadd.f32 0.0, %v2770
    %2772 = vmatmul.f32.gmra.mxu0 %v2748
    %v2773 = vpop.f32.mrf.mxu0
    %v2774 = vadd.f32 0.0, %v2773
    %2775 = vdwg.mxu0
    %2776 = vrot.lane.b32.xlu0 %v915, 64
    %v2777 = vpop.permute.xlu0 %2776
    %2778 = vrot.lane.b32.xlu0 %v917, 64
    %v2779 = vpop.permute.xlu0 %2778
    %2780 = vrot.lane.b32.xlu0 %v919, 64
    %v2781 = vpop.permute.xlu0 %2780
    %v2786 = vsel %vm1631, %v2154, 0
    %v2789 = vsel %vm1631, %v2155, 0
    %v2792 = vsel %vm1631, %v2156, 0
    %2794 = vmatpush.msra.mxu0 0.0
    %2795 = vmatpush.msra.mxu0 0.0
    %2796 = vmatpush.msra.mxu0 0.0
    %2797 = vmatpush.msra.mxu0 0.0
    %2798 = vmatpush.msra.mxu0 0.0
    %2799 = vmatpush.msra.mxu0 0.0
    %2800 = vmatpush.msra.mxu0 0.0
    %2801 = vmatpush.msra.mxu0 0.0
    %2802 = vmatpush.msra.mxu0 0.0
    %2803 = vmatpush.msra.mxu0 0.0
    %2804 = vmatpush.msra.mxu0 0.0
    %2805 = vmatpush.msra.mxu0 0.0
    %2806 = vmatpush.msra.mxu0 0.0
    %2807 = vmatpush.msra.mxu0 %v2781
    %2808 = vmatpush.msra.mxu0 %v2779
    %2809 = vmatpush.msra.mxu0 %v2777
    %2810 = vmatmul.f32.gmra.mxu0 %v2786
    %v2811 = vpop.f32.mrf.mxu0
    %v2812 = vadd.f32 0.0, %v2811
    %2813 = vmatmul.f32.gmra.mxu0 %v2789
    %v2814 = vpop.f32.mrf.mxu0
    %v2815 = vadd.f32 0.0, %v2814
    %2816 = vmatmul.f32.gmra.mxu0 %v2792
    %v2817 = vpop.f32.mrf.mxu0
    %v2818 = vadd.f32 0.0, %v2817
    %2819 = vdwg.mxu0
    %2820 = vrot.lane.b32.xlu0 %v921, 64
    %v2821 = vpop.permute.xlu0 %2820
    %2822 = vrot.lane.b32.xlu0 %v923, 64
    %v2823 = vpop.permute.xlu0 %2822
    %2824 = vrot.lane.b32.xlu0 %v925, 64
    %v2825 = vpop.permute.xlu0 %2824
    %v2830 = vsel %vm1631, %v2157, 0
    %v2833 = vsel %vm1631, %v2158, 0
    %v2836 = vsel %vm1631, %v2159, 0
    %2838 = vmatpush.msra.mxu0 0.0
    %2839 = vmatpush.msra.mxu0 0.0
    %2840 = vmatpush.msra.mxu0 0.0
    %2841 = vmatpush.msra.mxu0 0.0
    %2842 = vmatpush.msra.mxu0 0.0
    %2843 = vmatpush.msra.mxu0 0.0
    %2844 = vmatpush.msra.mxu0 0.0
    %2845 = vmatpush.msra.mxu0 0.0
    %2846 = vmatpush.msra.mxu0 0.0
    %2847 = vmatpush.msra.mxu0 0.0
    %2848 = vmatpush.msra.mxu0 0.0
    %2849 = vmatpush.msra.mxu0 0.0
    %2850 = vmatpush.msra.mxu0 0.0
    %2851 = vmatpush.msra.mxu0 %v2825
    %2852 = vmatpush.msra.mxu0 %v2823
    %2853 = vmatpush.msra.mxu0 %v2821
    %2854 = vmatmul.f32.gmra.mxu0 %v2830
    %v2855 = vpop.f32.mrf.mxu0
    %v2856 = vadd.f32 0.0, %v2855
    %2857 = vmatmul.f32.gmra.mxu0 %v2833
    %v2858 = vpop.f32.mrf.mxu0
    %v2859 = vadd.f32 0.0, %v2858
    %2860 = vmatmul.f32.gmra.mxu0 %v2836
    %v2861 = vpop.f32.mrf.mxu0
    %v2862 = vadd.f32 0.0, %v2861
    %2863 = vdwg.mxu0
    %v2864 = vld [vmem:[%s39] sm:$0xf]
    %s2865 = scalar_lea.vmem %s39, 4
    %v2866 = vld [vmem:[%s2865] sm:$0xf]
    %v2868 = vsel %vm932, %v2284, 0
    %v2871 = vsel %vm932, %v2287, 0
    %v2874 = vsel %vm932, %v2290, 0
    %v2877 = vsel %vm932, %v2328, 0
    %v2880 = vsel %vm932, %v2331, 0
    %v2883 = vsel %vm932, %v2334, 0
    %vm2885 = vcmask 1043456
    %v2887 = vsel %vm2885, %v2866, 0
    %2889 = vmatpush.msra.mxu0 0.0
    %2890 = vmatpush.msra.mxu0 0.0
    %2891 = vmatpush.msra.mxu0 0.0
    %2892 = vmatpush.msra.mxu0 0.0
    %2893 = vmatpush.msra.mxu0 0.0
    %2894 = vmatpush.msra.mxu0 0.0
    %2895 = vmatpush.msra.mxu0 0.0
    %2896 = vmatpush.msra.mxu0 0.0
    %2897 = vmatpush.msra.mxu0 0.0
    %2898 = vmatpush.msra.mxu0 0.0
    %2899 = vmatpush.msra.mxu0 0.0
    %2900 = vmatpush.msra.mxu0 0.0
    %2901 = vmatpush.msra.mxu0 0.0
    %2902 = vmatpush.msra.mxu0 0.0
    %2903 = vmatpush.msra.mxu0 0.0
    %2904 = vmatpush.msra.mxu0 %v2887
    %2905 = vmatmul.f32.gmra.mxu0 %v2868
    %v2906 = vpop.f32.mrf.mxu0
    %v2907 = vadd.f32 0.0, %v2906
    %2908 = vmatmul.f32.gmra.mxu0 %v2871
    %v2909 = vpop.f32.mrf.mxu0
    %v2910 = vadd.f32 0.0, %v2909
    %2911 = vmatmul.f32.gmra.mxu0 %v2874
    %v2912 = vpop.f32.mrf.mxu0
    %v2913 = vadd.f32 0.0, %v2912
    %2914 = vmatmul.f32.gmra.mxu0 %v2877
    %v2915 = vpop.f32.mrf.mxu0
    %v2916 = vadd.f32 0.0, %v2915
    %2917 = vmatmul.f32.gmra.mxu0 %v2880
    %v2918 = vpop.f32.mrf.mxu0
    %v2919 = vadd.f32 0.0, %v2918
    %2920 = vmatmul.f32.gmra.mxu0 %v2883
    %v2921 = vpop.f32.mrf.mxu0
    %v2922 = vadd.f32 0.0, %v2921
    %2923 = vdwg.mxu0
    %v2925 = vsel %vm932, %v2196, 0
    %v2928 = vsel %vm932, %v2199, 0
    %v2931 = vsel %vm932, %v2202, 0
    %v2934 = vsel %vm932, %v2240, 0
    %v2937 = vsel %vm932, %v2243, 0
    %v2940 = vsel %vm932, %v2246, 0
    %v2943 = vsel %vm2885, %v2864, 0
    %2945 = vmatpush.msra.mxu0 0.0
    %2946 = vmatpush.msra.mxu0 0.0
    %2947 = vmatpush.msra.mxu0 0.0
    %2948 = vmatpush.msra.mxu0 0.0
    %2949 = vmatpush.msra.mxu0 0.0
    %2950 = vmatpush.msra.mxu0 0.0
    %2951 = vmatpush.msra.mxu0 0.0
    %2952 = vmatpush.msra.mxu0 0.0
    %2953 = vmatpush.msra.mxu0 0.0
    %2954 = vmatpush.msra.mxu0 0.0
    %2955 = vmatpush.msra.mxu0 0.0
    %2956 = vmatpush.msra.mxu0 0.0
    %2957 = vmatpush.msra.mxu0 0.0
    %2958 = vmatpush.msra.mxu0 0.0
    %2959 = vmatpush.msra.mxu0 0.0
    %2960 = vmatpush.msra.mxu0 %v2943
    %2961 = vmatmul.f32.gmra.mxu0 %v2925
    %v2962 = vpop.f32.mrf.mxu0
    %v2963 = vadd.f32 %v2907, %v2962
    %2964 = vmatmul.f32.gmra.mxu0 %v2928
    %v2965 = vpop.f32.mrf.mxu0
    %v2966 = vadd.f32 %v2910, %v2965
    %2967 = vmatmul.f32.gmra.mxu0 %v2931
    %v2968 = vpop.f32.mrf.mxu0
    %v2969 = vadd.f32 %v2913, %v2968
    %2970 = vmatmul.f32.gmra.mxu0 %v2934
    %v2971 = vpop.f32.mrf.mxu0
    %v2972 = vadd.f32 %v2916, %v2971
    %2973 = vmatmul.f32.gmra.mxu0 %v2937
    %v2974 = vpop.f32.mrf.mxu0
    %v2975 = vadd.f32 %v2919, %v2974
    %2976 = vmatmul.f32.gmra.mxu0 %v2940
    %v2977 = vpop.f32.mrf.mxu0
    %v2978 = vadd.f32 %v2922, %v2977
    %2979 = vdwg.mxu0
    %s2980 = scalar_lea.vmem %s39, 8
    %v2981 = vld [vmem:[%s2980] sm:$0xf]
    %v2983 = vsel %vm932, %v2372, 0
    %v2986 = vsel %vm932, %v2375, 0
    %v2989 = vsel %vm932, %v2378, 0
    %v2992 = vsel %vm932, %v2416, 0
    %v2995 = vsel %vm932, %v2419, 0
    %v2998 = vsel %vm932, %v2422, 0
    %v3001 = vsel %vm2885, %v2981, 0
    %3003 = vmatpush.msra.mxu0 0.0
    %3004 = vmatpush.msra.mxu0 0.0
    %3005 = vmatpush.msra.mxu0 0.0
    %3006 = vmatpush.msra.mxu0 0.0
    %3007 = vmatpush.msra.mxu0 0.0
    %3008 = vmatpush.msra.mxu0 0.0
    %3009 = vmatpush.msra.mxu0 0.0
    %3010 = vmatpush.msra.mxu0 0.0
    %3011 = vmatpush.msra.mxu0 0.0
    %3012 = vmatpush.msra.mxu0 0.0
    %3013 = vmatpush.msra.mxu0 0.0
    %3014 = vmatpush.msra.mxu0 0.0
    %3015 = vmatpush.msra.mxu0 0.0
    %3016 = vmatpush.msra.mxu0 0.0
    %3017 = vmatpush.msra.mxu0 0.0
    %3018 = vmatpush.msra.mxu0 %v3001
    %3019 = vmatmul.f32.gmra.mxu0 %v2983
    %v3020 = vpop.f32.mrf.mxu0
    %v3021 = vadd.f32 0.0, %v3020
    %3022 = vmatmul.f32.gmra.mxu0 %v2986
    %v3023 = vpop.f32.mrf.mxu0
    %v3024 = vadd.f32 0.0, %v3023
    %3025 = vmatmul.f32.gmra.mxu0 %v2989
    %v3026 = vpop.f32.mrf.mxu0
    %v3027 = vadd.f32 0.0, %v3026
    %3028 = vmatmul.f32.gmra.mxu0 %v2992
    %v3029 = vpop.f32.mrf.mxu0
    %v3030 = vadd.f32 0.0, %v3029
    %3031 = vmatmul.f32.gmra.mxu0 %v2995
    %v3032 = vpop.f32.mrf.mxu0
    %v3033 = vadd.f32 0.0, %v3032
    %3034 = vmatmul.f32.gmra.mxu0 %v2998
    %v3035 = vpop.f32.mrf.mxu0
    %v3036 = vadd.f32 0.0, %v3035
    %3037 = vdwg.mxu0
    %v3038 = vadd.f32 %v2963, %v3021
    %v3039 = vadd.f32 %v2966, %v3024
    %v3040 = vadd.f32 %v2969, %v3027
    %v3041 = vadd.f32 %v2972, %v3030
    %v3042 = vadd.f32 %v2975, %v3033
    %v3043 = vadd.f32 %v2978, %v3036
    %s3044 = scalar_lea.vmem %s39, 12
    %v3045 = vld [vmem:[%s3044] sm:$0xf]
    %v3047 = vsel %vm932, %v2460, 0
    %v3050 = vsel %vm932, %v2463, 0
    %v3053 = vsel %vm932, %v2466, 0
    %v3056 = vsel %vm932, %v2504, 0
    %v3059 = vsel %vm932, %v2507, 0
    %v3062 = vsel %vm932, %v2510, 0
    %v3065 = vsel %vm2885, %v3045, 0
    %3067 = vmatpush.msra.mxu0 0.0
    %3068 = vmatpush.msra.mxu0 0.0
    %3069 = vmatpush.msra.mxu0 0.0
    %3070 = vmatpush.msra.mxu0 0.0
    %3071 = vmatpush.msra.mxu0 0.0
    %3072 = vmatpush.msra.mxu0 0.0
    %3073 = vmatpush.msra.mxu0 0.0
    %3074 = vmatpush.msra.mxu0 0.0
    %3075 = vmatpush.msra.mxu0 0.0
    %3076 = vmatpush.msra.mxu0 0.0
    %3077 = vmatpush.msra.mxu0 0.0
    %3078 = vmatpush.msra.mxu0 0.0
    %3079 = vmatpush.msra.mxu0 0.0
    %3080 = vmatpush.msra.mxu0 0.0
    %3081 = vmatpush.msra.mxu0 0.0
    %3082 = vmatpush.msra.mxu0 %v3065
    %3083 = vmatmul.f32.gmra.mxu0 %v3047
    %v3084 = vpop.f32.mrf.mxu0
    %v3085 = vadd.f32 0.0, %v3084
    %3086 = vmatmul.f32.gmra.mxu0 %v3050
    %v3087 = vpop.f32.mrf.mxu0
    %v3088 = vadd.f32 0.0, %v3087
    %3089 = vmatmul.f32.gmra.mxu0 %v3053
    %v3090 = vpop.f32.mrf.mxu0
    %v3091 = vadd.f32 0.0, %v3090
    %3092 = vmatmul.f32.gmra.mxu0 %v3056
    %v3093 = vpop.f32.mrf.mxu0
    %v3094 = vadd.f32 0.0, %v3093
    %3095 = vmatmul.f32.gmra.mxu0 %v3059
    %v3096 = vpop.f32.mrf.mxu0
    %v3097 = vadd.f32 0.0, %v3096
    %3098 = vmatmul.f32.gmra.mxu0 %v3062
    %v3099 = vpop.f32.mrf.mxu0
    %v3100 = vadd.f32 0.0, %v3099
    %3101 = vdwg.mxu0
    %v3102 = vadd.f32 %v3038, %v3085
    %v3103 = vadd.f32 %v3039, %v3088
    %v3104 = vadd.f32 %v3040, %v3091
    %v3105 = vadd.f32 %v3041, %v3094
    %v3106 = vadd.f32 %v3042, %v3097
    %v3107 = vadd.f32 %v3043, %v3100
    %s3108 = scalar_lea.vmem %s39, 16
    %v3109 = vld [vmem:[%s3108] sm:$0xf]
    %v3111 = vsel %vm932, %v2548, 0
    %v3114 = vsel %vm932, %v2551, 0
    %v3117 = vsel %vm932, %v2554, 0
    %v3120 = vsel %vm932, %v2592, 0
    %v3123 = vsel %vm932, %v2595, 0
    %v3126 = vsel %vm932, %v2598, 0
    %v3129 = vsel %vm2885, %v3109, 0
    %3131 = vmatpush.msra.mxu0 0.0
    %3132 = vmatpush.msra.mxu0 0.0
    %3133 = vmatpush.msra.mxu0 0.0
    %3134 = vmatpush.msra.mxu0 0.0
    %3135 = vmatpush.msra.mxu0 0.0
    %3136 = vmatpush.msra.mxu0 0.0
    %3137 = vmatpush.msra.mxu0 0.0
    %3138 = vmatpush.msra.mxu0 0.0
    %3139 = vmatpush.msra.mxu0 0.0
    %3140 = vmatpush.msra.mxu0 0.0
    %3141 = vmatpush.msra.mxu0 0.0
    %3142 = vmatpush.msra.mxu0 0.0
    %3143 = vmatpush.msra.mxu0 0.0
    %3144 = vmatpush.msra.mxu0 0.0
    %3145 = vmatpush.msra.mxu0 0.0
    %3146 = vmatpush.msra.mxu0 %v3129
    %3147 = vmatmul.f32.gmra.mxu0 %v3111
    %v3148 = vpop.f32.mrf.mxu0
    %v3149 = vadd.f32 0.0, %v3148
    %3150 = vmatmul.f32.gmra.mxu0 %v3114
    %v3151 = vpop.f32.mrf.mxu0
    %v3152 = vadd.f32 0.0, %v3151
    %3153 = vmatmul.f32.gmra.mxu0 %v3117
    %v3154 = vpop.f32.mrf.mxu0
    %v3155 = vadd.f32 0.0, %v3154
    %3156 = vmatmul.f32.gmra.mxu0 %v3120
    %v3157 = vpop.f32.mrf.mxu0
    %v3158 = vadd.f32 0.0, %v3157
    %3159 = vmatmul.f32.gmra.mxu0 %v3123
    %v3160 = vpop.f32.mrf.mxu0
    %v3161 = vadd.f32 0.0, %v3160
    %3162 = vmatmul.f32.gmra.mxu0 %v3126
    %v3163 = vpop.f32.mrf.mxu0
    %v3164 = vadd.f32 0.0, %v3163
    %3165 = vdwg.mxu0
    %v3166 = vadd.f32 %v3102, %v3149
    %v3167 = vadd.f32 %v3103, %v3152
    %v3168 = vadd.f32 %v3104, %v3155
    %v3169 = vadd.f32 %v3105, %v3158
    %v3170 = vadd.f32 %v3106, %v3161
    %v3171 = vadd.f32 %v3107, %v3164
    %s3172 = scalar_lea.vmem %s39, 20
    %v3173 = vld [vmem:[%s3172] sm:$0xf]
    %v3175 = vsel %vm932, %v2636, 0
    %v3178 = vsel %vm932, %v2639, 0
    %v3181 = vsel %vm932, %v2642, 0
    %v3184 = vsel %vm932, %v2680, 0
    %v3187 = vsel %vm932, %v2683, 0
    %v3190 = vsel %vm932, %v2686, 0
    %v3193 = vsel %vm2885, %v3173, 0
    %3195 = vmatpush.msra.mxu0 0.0
    %3196 = vmatpush.msra.mxu0 0.0
    %3197 = vmatpush.msra.mxu0 0.0
    %3198 = vmatpush.msra.mxu0 0.0
    %3199 = vmatpush.msra.mxu0 0.0
    %3200 = vmatpush.msra.mxu0 0.0
    %3201 = vmatpush.msra.mxu0 0.0
    %3202 = vmatpush.msra.mxu0 0.0
    %3203 = vmatpush.msra.mxu0 0.0
    %3204 = vmatpush.msra.mxu0 0.0
    %3205 = vmatpush.msra.mxu0 0.0
    %3206 = vmatpush.msra.mxu0 0.0
    %3207 = vmatpush.msra.mxu0 0.0
    %3208 = vmatpush.msra.mxu0 0.0
    %3209 = vmatpush.msra.mxu0 0.0
    %3210 = vmatpush.msra.mxu0 %v3193
    %3211 = vmatmul.f32.gmra.mxu0 %v3175
    %v3212 = vpop.f32.mrf.mxu0
    %v3213 = vadd.f32 0.0, %v3212
    %3214 = vmatmul.f32.gmra.mxu0 %v3178
    %v3215 = vpop.f32.mrf.mxu0
    %v3216 = vadd.f32 0.0, %v3215
    %3217 = vmatmul.f32.gmra.mxu0 %v3181
    %v3218 = vpop.f32.mrf.mxu0
    %v3219 = vadd.f32 0.0, %v3218
    %3220 = vmatmul.f32.gmra.mxu0 %v3184
    %v3221 = vpop.f32.mrf.mxu0
    %v3222 = vadd.f32 0.0, %v3221
    %3223 = vmatmul.f32.gmra.mxu0 %v3187
    %v3224 = vpop.f32.mrf.mxu0
    %v3225 = vadd.f32 0.0, %v3224
    %3226 = vmatmul.f32.gmra.mxu0 %v3190
    %v3227 = vpop.f32.mrf.mxu0
    %v3228 = vadd.f32 0.0, %v3227
    %3229 = vdwg.mxu0
    %v3230 = vadd.f32 %v3166, %v3213
    %v3231 = vadd.f32 %v3167, %v3216
    %v3232 = vadd.f32 %v3168, %v3219
    %v3233 = vadd.f32 %v3169, %v3222
    %v3234 = vadd.f32 %v3170, %v3225
    %v3235 = vadd.f32 %v3171, %v3228
    %s3236 = scalar_lea.vmem %s39, 24
    %v3237 = vld [vmem:[%s3236] sm:$0xf]
    %v3239 = vsel %vm932, %v2724, 0
    %v3242 = vsel %vm932, %v2727, 0
    %v3245 = vsel %vm932, %v2730, 0
    %v3248 = vsel %vm932, %v2768, 0
    %v3251 = vsel %vm932, %v2771, 0
    %v3254 = vsel %vm932, %v2774, 0
    %v3257 = vsel %vm2885, %v3237, 0
    %3259 = vmatpush.msra.mxu0 0.0
    %3260 = vmatpush.msra.mxu0 0.0
    %3261 = vmatpush.msra.mxu0 0.0
    %3262 = vmatpush.msra.mxu0 0.0
    %3263 = vmatpush.msra.mxu0 0.0
    %3264 = vmatpush.msra.mxu0 0.0
    %3265 = vmatpush.msra.mxu0 0.0
    %3266 = vmatpush.msra.mxu0 0.0
    %3267 = vmatpush.msra.mxu0 0.0
    %3268 = vmatpush.msra.mxu0 0.0
    %3269 = vmatpush.msra.mxu0 0.0
    %3270 = vmatpush.msra.mxu0 0.0
    %3271 = vmatpush.msra.mxu0 0.0
    %3272 = vmatpush.msra.mxu0 0.0
    %3273 = vmatpush.msra.mxu0 0.0
    %3274 = vmatpush.msra.mxu0 %v3257
    %3275 = vmatmul.f32.gmra.mxu0 %v3239
    %v3276 = vpop.f32.mrf.mxu0
    %v3277 = vadd.f32 0.0, %v3276
    %3278 = vmatmul.f32.gmra.mxu0 %v3242
    %v3279 = vpop.f32.mrf.mxu0
    %v3280 = vadd.f32 0.0, %v3279
    %3281 = vmatmul.f32.gmra.mxu0 %v3245
    %v3282 = vpop.f32.mrf.mxu0
    %v3283 = vadd.f32 0.0, %v3282
    %3284 = vmatmul.f32.gmra.mxu0 %v3248
    %v3285 = vpop.f32.mrf.mxu0
    %v3286 = vadd.f32 0.0, %v3285
    %3287 = vmatmul.f32.gmra.mxu0 %v3251
    %v3288 = vpop.f32.mrf.mxu0
    %v3289 = vadd.f32 0.0, %v3288
    %3290 = vmatmul.f32.gmra.mxu0 %v3254
    %v3291 = vpop.f32.mrf.mxu0
    %v3292 = vadd.f32 0.0, %v3291
    %3293 = vdwg.mxu0
    %v3294 = vadd.f32 %v3230, %v3277
    %v3295 = vadd.f32 %v3231, %v3280
    %v3296 = vadd.f32 %v3232, %v3283
    %v3297 = vadd.f32 %v3233, %v3286
    %v3298 = vadd.f32 %v3234, %v3289
    %v3299 = vadd.f32 %v3235, %v3292
    %s3300 = scalar_lea.vmem %s39, 28
    %v3301 = vld [vmem:[%s3300] sm:$0xf]
    %v3303 = vsel %vm932, %v2812, 0
    %v3306 = vsel %vm932, %v2815, 0
    %v3309 = vsel %vm932, %v2818, 0
    %v3312 = vsel %vm932, %v2856, 0
    %v3315 = vsel %vm932, %v2859, 0
    %v3318 = vsel %vm932, %v2862, 0
    %v3321 = vsel %vm2885, %v3301, 0
    %3323 = vmatpush.msra.mxu0 0.0
    %3324 = vmatpush.msra.mxu0 0.0
    %3325 = vmatpush.msra.mxu0 0.0
    %3326 = vmatpush.msra.mxu0 0.0
    %3327 = vmatpush.msra.mxu0 0.0
    %3328 = vmatpush.msra.mxu0 0.0
    %3329 = vmatpush.msra.mxu0 0.0
    %3330 = vmatpush.msra.mxu0 0.0
    %3331 = vmatpush.msra.mxu0 0.0
    %3332 = vmatpush.msra.mxu0 0.0
    %3333 = vmatpush.msra.mxu0 0.0
    %3334 = vmatpush.msra.mxu0 0.0
    %3335 = vmatpush.msra.mxu0 0.0
    %3336 = vmatpush.msra.mxu0 0.0
    %3337 = vmatpush.msra.mxu0 0.0
    %3338 = vmatpush.msra.mxu0 %v3321
    %3339 = vmatmul.f32.gmra.mxu0 %v3303
    %v3340 = vpop.f32.mrf.mxu0
    %v3341 = vadd.f32 0.0, %v3340
    %3342 = vmatmul.f32.gmra.mxu0 %v3306
    %v3343 = vpop.f32.mrf.mxu0
    %v3344 = vadd.f32 0.0, %v3343
    %3345 = vmatmul.f32.gmra.mxu0 %v3309
    %v3346 = vpop.f32.mrf.mxu0
    %v3347 = vadd.f32 0.0, %v3346
    %3348 = vmatmul.f32.gmra.mxu0 %v3312
    %v3349 = vpop.f32.mrf.mxu0
    %v3350 = vadd.f32 0.0, %v3349
    %3351 = vmatmul.f32.gmra.mxu0 %v3315
    %v3352 = vpop.f32.mrf.mxu0
    %v3353 = vadd.f32 0.0, %v3352
    %3354 = vmatmul.f32.gmra.mxu0 %v3318
    %v3355 = vpop.f32.mrf.mxu0
    %v3356 = vadd.f32 0.0, %v3355
    %3357 = vdwg.mxu0
    %v3358 = vadd.f32 %v3294, %v3341
    %v3359 = vadd.f32 %v3295, %v3344
    %v3360 = vadd.f32 %v3296, %v3347
    %v3361 = vadd.f32 %v3297, %v3350
    %v3362 = vadd.f32 %v3298, %v3353
    %v3363 = vadd.f32 %v3299, %v3356
    %v3364 = vld [vmem:[%s41] sm:$0x1]
    %v3366 = vperm.slane %v3364, 0
    %v3368 = vadd.f32 %v3358, %v3366
    %v3369 = vadd.f32 %v3359, %v3366
    %v3370 = vadd.f32 %v3360, %v3366
    %v3371 = vadd.f32 %v3361, %v3366
    %v3372 = vadd.f32 %v3362, %v3366
    %v3373 = vadd.f32 %v3363, %v3366
    %v3374 = vadd.f32 %v617, %v3368
    %v3375 = vadd.f32 %v618, %v3369
    %v3376 = vadd.f32 %v619, %v3370
    %v3377 = vadd.f32 %v620, %v3371
    %v3378 = vadd.f32 %v621, %v3372
    %v3379 = vadd.f32 %v622, %v3373
    %v3380 = vld [vmem:[%s43] sm:$0x1]
    %v3381 = vld [vmem:[%s45] sm:$0x1]
    %v3382 = vsel %vm277, %v3374, 0.0
    %3383 = vadd.xlane.f32.xlu0 %v3382
    %v3384 = vpop.xlane.xlu0 %3383
    %v3385 = vsel %vm277, %v3375, 0.0
    %3386 = vadd.xlane.f32.xlu0 %v3385
    %v3387 = vpop.xlane.xlu0 %3386
    %v3388 = vsel %vm277, %v3376, 0.0
    %3389 = vadd.xlane.f32.xlu0 %v3388
    %v3390 = vpop.xlane.xlu0 %3389
    %v3391 = vsel %vm277, %v3377, 0.0
    %3392 = vadd.xlane.f32.xlu0 %v3391
    %v3393 = vpop.xlane.xlu0 %3392
    %v3394 = vsel %vm277, %v3378, 0.0
    %3395 = vadd.xlane.f32.xlu0 %v3394
    %v3396 = vpop.xlane.xlu0 %3395
    %v3397 = vsel %vm277, %v3379, 0.0
    %3398 = vadd.xlane.f32.xlu0 %v3397
    %v3399 = vpop.xlane.xlu0 %3398
    %v3400 = vmul.f32 %v3384, %v321
    %v3401 = vmul.f32 %v3387, %v321
    %v3402 = vmul.f32 %v3390, %v321
    %v3403 = vmul.f32 %v3393, %v321
    %v3404 = vmul.f32 %v3396, %v321
    %v3405 = vmul.f32 %v3399, %v321
    %v3406 = vsub.f32 %v3374, %v3400
    %v3407 = vsub.f32 %v3375, %v3401
    %v3408 = vsub.f32 %v3376, %v3402
    %v3409 = vsub.f32 %v3377, %v3403
    %v3410 = vsub.f32 %v3378, %v3404
    %v3411 = vsub.f32 %v3379, %v3405
    %v3412 = vmul.f32 %v3406, %v3406
    %v3413 = vmul.f32 %v3407, %v3407
    %v3414 = vmul.f32 %v3408, %v3408
    %v3415 = vmul.f32 %v3409, %v3409
    %v3416 = vmul.f32 %v3410, %v3410
    %v3417 = vmul.f32 %v3411, %v3411
    %v3418 = vsel %vm277, %v3412, 0.0
    %3419 = vadd.xlane.f32.xlu0 %v3418
    %v3420 = vpop.xlane.xlu0 %3419
    %v3421 = vsel %vm277, %v3413, 0.0
    %3422 = vadd.xlane.f32.xlu0 %v3421
    %v3423 = vpop.xlane.xlu0 %3422
    %v3424 = vsel %vm277, %v3414, 0.0
    %3425 = vadd.xlane.f32.xlu0 %v3424
    %v3426 = vpop.xlane.xlu0 %3425
    %v3427 = vsel %vm277, %v3415, 0.0
    %3428 = vadd.xlane.f32.xlu0 %v3427
    %v3429 = vpop.xlane.xlu0 %3428
    %v3430 = vsel %vm277, %v3416, 0.0
    %3431 = vadd.xlane.f32.xlu0 %v3430
    %v3432 = vpop.xlane.xlu0 %3431
    %v3433 = vsel %vm277, %v3417, 0.0
    %3434 = vadd.xlane.f32.xlu0 %v3433
    %v3435 = vpop.xlane.xlu0 %3434
    %v3436 = vmul.f32 %v3420, %v321
    %v3437 = vmul.f32 %v3423, %v321
    %v3438 = vmul.f32 %v3426, %v321
    %v3439 = vmul.f32 %v3429, %v321
    %v3440 = vmul.f32 %v3432, %v321
    %v3441 = vmul.f32 %v3435, %v321
    %v3442 = vadd.f32 %v3436, 1e-05
    %v3443 = vadd.f32 %v3437, 1e-05
    %v3444 = vadd.f32 %v3438, 1e-05
    %v3445 = vadd.f32 %v3439, 1e-05
    %v3446 = vadd.f32 %v3440, 1e-05
    %v3447 = vadd.f32 %v3441, 1e-05
    %v3448 = vrsqrt.pop %v3442
    %v3449 = vmul.f32 %v3448, %v3442
    %v3450 = vmul.f32 %v3449, %v3448
    %v3451 = vmul.f32 0.5, %v3450
    %v3452 = vsub.f32 1.5, %v3451
    %v3453 = vmul.f32 %v3448, %v3452
    %vm3454 = vweird.f32 %v3442
    %vm3455 = vweird.f32 %v3448
    %vm3456 = vmor %vm3454, %vm3455
    %v3457 = vsel %vm3456, %v3448, %v3453
    %v3458 = vrsqrt.pop %v3443
    %v3459 = vmul.f32 %v3458, %v3443
    %v3460 = vmul.f32 %v3459, %v3458
    %v3461 = vmul.f32 0.5, %v3460
    %v3462 = vsub.f32 1.5, %v3461
    %v3463 = vmul.f32 %v3458, %v3462
    %vm3464 = vweird.f32 %v3443
    %vm3465 = vweird.f32 %v3458
    %vm3466 = vmor %vm3464, %vm3465
    %v3467 = vsel %vm3466, %v3458, %v3463
    %v3468 = vrsqrt.pop %v3444
    %v3469 = vmul.f32 %v3468, %v3444
    %v3470 = vmul.f32 %v3469, %v3468
    %v3471 = vmul.f32 0.5, %v3470
    %v3472 = vsub.f32 1.5, %v3471
    %v3473 = vmul.f32 %v3468, %v3472
    %vm3474 = vweird.f32 %v3444
    %vm3475 = vweird.f32 %v3468
    %vm3476 = vmor %vm3474, %vm3475
    %v3477 = vsel %vm3476, %v3468, %v3473
    %v3478 = vrsqrt.pop %v3445
    %v3479 = vmul.f32 %v3478, %v3445
    %v3480 = vmul.f32 %v3479, %v3478
    %v3481 = vmul.f32 0.5, %v3480
    %v3482 = vsub.f32 1.5, %v3481
    %v3483 = vmul.f32 %v3478, %v3482
    %vm3484 = vweird.f32 %v3445
    %vm3485 = vweird.f32 %v3478
    %vm3486 = vmor %vm3484, %vm3485
    %v3487 = vsel %vm3486, %v3478, %v3483
    %v3488 = vrsqrt.pop %v3446
    %v3489 = vmul.f32 %v3488, %v3446
    %v3490 = vmul.f32 %v3489, %v3488
    %v3491 = vmul.f32 0.5, %v3490
    %v3492 = vsub.f32 1.5, %v3491
    %v3493 = vmul.f32 %v3488, %v3492
    %vm3494 = vweird.f32 %v3446
    %vm3495 = vweird.f32 %v3488
    %vm3496 = vmor %vm3494, %vm3495
    %v3497 = vsel %vm3496, %v3488, %v3493
    %v3498 = vrsqrt.pop %v3447
    %v3499 = vmul.f32 %v3498, %v3447
    %v3500 = vmul.f32 %v3499, %v3498
    %v3501 = vmul.f32 0.5, %v3500
    %v3502 = vsub.f32 1.5, %v3501
    %v3503 = vmul.f32 %v3498, %v3502
    %vm3504 = vweird.f32 %v3447
    %vm3505 = vweird.f32 %v3498
    %vm3506 = vmor %vm3504, %vm3505
    %v3507 = vsel %vm3506, %v3498, %v3503
    %v3508 = vmul.f32 %v3406, %v3457
    %v3509 = vmul.f32 %v3407, %v3467
    %v3510 = vmul.f32 %v3408, %v3477
    %v3511 = vmul.f32 %v3409, %v3487
    %v3512 = vmul.f32 %v3410, %v3497
    %v3513 = vmul.f32 %v3411, %v3507
    %v3515 = vperm.slane %v3380, 0
    %v3517 = vmul.f32 %v3508, %v3515
    %v3518 = vmul.f32 %v3509, %v3515
    %v3519 = vmul.f32 %v3510, %v3515
    %v3520 = vmul.f32 %v3511, %v3515
    %v3521 = vmul.f32 %v3512, %v3515
    %v3522 = vmul.f32 %v3513, %v3515
    %v3524 = vperm.slane %v3381, 0
    %v3526 = vadd.f32 %v3517, %v3524
    %v3527 = vadd.f32 %v3518, %v3524
    %v3528 = vadd.f32 %v3519, %v3524
    %v3529 = vadd.f32 %v3520, %v3524
    %v3530 = vadd.f32 %v3521, %v3524
    %v3531 = vadd.f32 %v3522, %v3524
    %v3532 = vld [vmem:[#allocation19] sm:$0xff]
    %v3533 = vld [vmem:[#allocation19 + $0x8] sm:$0xff]
    %v3534 = vld [vmem:[#allocation19 + $0x10] sm:$0xff]
    %v3535 = vld [vmem:[#allocation19 + $0x18] sm:$0xff]
    %v3536 = vld [vmem:[%s49] sm:$0x1]
    %v3538 = vperm.slane %v3536, 0
    %v3541 = vsel %vm277, %v3526, 0
    %v3544 = vsel %vm277, %v3527, 0
    %v3547 = vsel %vm277, %v3528, 0
    %v3550 = vsel %vm277, %v3529, 0
    %v3553 = vsel %vm277, %v3530, 0
    %v3556 = vsel %vm277, %v3531, 0
    %3558 = vmatpush.msra.mxu0 0.0
    %3559 = vmatpush.msra.mxu0 0.0
    %3560 = vmatpush.msra.mxu0 0.0
    %3561 = vmatpush.msra.mxu0 0.0
    %3562 = vmatpush.msra.mxu0 0.0
    %3563 = vmatpush.msra.mxu0 0.0
    %3564 = vmatpush.msra.mxu0 0.0
    %3565 = vmatpush.msra.mxu0 0.0
    %3566 = vmatpush.msra.mxu0 0.0
    %3567 = vmatpush.msra.mxu0 0.0
    %3568 = vmatpush.msra.mxu0 0.0
    %3569 = vmatpush.msra.mxu0 0.0
    %3570 = vmatpush.msra.mxu0 %v3535
    %3571 = vmatpush.msra.mxu0 %v3534
    %3572 = vmatpush.msra.mxu0 %v3533
    %3573 = vmatpush.msra.mxu0 %v3532
    %3574 = vmatmul.f32.gmra.mxu0 %v3541
    %v3575 = vpop.f32.mrf.mxu0
    %v3576 = vadd.f32 %v3538, %v3575
    %3577 = vmatmul.f32.gmra.mxu0 %v3544
    %v3578 = vpop.f32.mrf.mxu0
    %v3579 = vadd.f32 %v3538, %v3578
    %3580 = vmatmul.f32.gmra.mxu0 %v3547
    %v3581 = vpop.f32.mrf.mxu0
    %v3582 = vadd.f32 %v3538, %v3581
    %3583 = vmatmul.f32.gmra.mxu0 %v3550
    %v3584 = vpop.f32.mrf.mxu0
    %v3585 = vadd.f32 %v3538, %v3584
    %3586 = vmatmul.f32.gmra.mxu0 %v3553
    %v3587 = vpop.f32.mrf.mxu0
    %v3588 = vadd.f32 %v3538, %v3587
    %3589 = vmatmul.f32.gmra.mxu0 %v3556
    %v3590 = vpop.f32.mrf.mxu0
    %v3591 = vadd.f32 %v3538, %v3590
    %3592 = vdwg.mxu0
    %v3593 = vxor.u32 %v3576, 2147483648
    %v3594 = vxor.u32 %v3579, 2147483648
    %v3595 = vxor.u32 %v3582, 2147483648
    %v3596 = vxor.u32 %v3585, 2147483648
    %v3597 = vxor.u32 %v3588, 2147483648
    %v3598 = vxor.u32 %v3591, 2147483648
    %v3599 = vmul.f32 %v3593, 1.442695
    %v3600 = vpow.pop %v3599
    %v3601 = vmul.f32 %v3594, 1.442695
    %v3602 = vpow.pop %v3601
    %v3603 = vmul.f32 %v3595, 1.442695
    %v3604 = vpow.pop %v3603
    %v3605 = vmul.f32 %v3596, 1.442695
    %v3606 = vpow.pop %v3605
    %v3607 = vmul.f32 %v3597, 1.442695
    %v3608 = vpow.pop %v3607
    %v3609 = vmul.f32 %v3598, 1.442695
    %v3610 = vpow.pop %v3609
    %v3611 = vadd.f32 %v3600, 1.0
    %v3612 = vadd.f32 %v3602, 1.0
    %v3613 = vadd.f32 %v3604, 1.0
    %v3614 = vadd.f32 %v3606, 1.0
    %v3615 = vadd.f32 %v3608, 1.0
    %v3616 = vadd.f32 %v3610, 1.0
    %v3617 = vrcp.pop %v3611
    %v3618 = vmul.f32 %v3611, %v3617
    %v3619 = vsub.f32 1.0, %v3618
    %v3620 = vmul.f32 %v3617, %v3619
    %v3621 = vadd.f32 %v3617, %v3620
    %vm3622 = vweird.f32 %v3611
    %vm3623 = vweird.f32 %v3617
    %vm3624 = vmor %vm3622, %vm3623
    %v3625 = vsel %vm3624, %v3617, %v3621
    %v3626 = vand.u32 2147483647, %v3611
    %vm3627 = vcmp.eq.f32.partialorder %v3626, 8.507059e+37
    %v3628 = vand.u32 %v3611, 2147483648
    %v3629 = vor.u32 1.1754944e-38, %v3628
    %v3630 = vsel %vm3627, %v3629, %v3625
    %v3631 = vmul.f32 1.0, %v3630
    %v3632 = vrcp.pop %v3612
    %v3633 = vmul.f32 %v3612, %v3632
    %v3634 = vsub.f32 1.0, %v3633
    %v3635 = vmul.f32 %v3632, %v3634
    %v3636 = vadd.f32 %v3632, %v3635
    %vm3637 = vweird.f32 %v3612
    %vm3638 = vweird.f32 %v3632
    %vm3639 = vmor %vm3637, %vm3638
    %v3640 = vsel %vm3639, %v3632, %v3636
    %v3641 = vand.u32 2147483647, %v3612
    %vm3642 = vcmp.eq.f32.partialorder %v3641, 8.507059e+37
    %v3643 = vand.u32 %v3612, 2147483648
    %v3644 = vor.u32 1.1754944e-38, %v3643
    %v3645 = vsel %vm3642, %v3644, %v3640
    %v3646 = vmul.f32 1.0, %v3645
    %v3647 = vrcp.pop %v3613
    %v3648 = vmul.f32 %v3613, %v3647
    %v3649 = vsub.f32 1.0, %v3648
    %v3650 = vmul.f32 %v3647, %v3649
    %v3651 = vadd.f32 %v3647, %v3650
    %vm3652 = vweird.f32 %v3613
    %vm3653 = vweird.f32 %v3647
    %vm3654 = vmor %vm3652, %vm3653
    %v3655 = vsel %vm3654, %v3647, %v3651
    %v3656 = vand.u32 2147483647, %v3613
    %vm3657 = vcmp.eq.f32.partialorder %v3656, 8.507059e+37
    %v3658 = vand.u32 %v3613, 2147483648
    %v3659 = vor.u32 1.1754944e-38, %v3658
    %v3660 = vsel %vm3657, %v3659, %v3655
    %v3661 = vmul.f32 1.0, %v3660
    %v3662 = vrcp.pop %v3614
    %v3663 = vmul.f32 %v3614, %v3662
    %v3664 = vsub.f32 1.0, %v3663
    %v3665 = vmul.f32 %v3662, %v3664
    %v3666 = vadd.f32 %v3662, %v3665
    %vm3667 = vweird.f32 %v3614
    %vm3668 = vweird.f32 %v3662
    %vm3669 = vmor %vm3667, %vm3668
    %v3670 = vsel %vm3669, %v3662, %v3666
    %v3671 = vand.u32 2147483647, %v3614
    %vm3672 = vcmp.eq.f32.partialorder %v3671, 8.507059e+37
    %v3673 = vand.u32 %v3614, 2147483648
    %v3674 = vor.u32 1.1754944e-38, %v3673
    %v3675 = vsel %vm3672, %v3674, %v3670
    %v3676 = vmul.f32 1.0, %v3675
    %v3677 = vrcp.pop %v3615
    %v3678 = vmul.f32 %v3615, %v3677
    %v3679 = vsub.f32 1.0, %v3678
    %v3680 = vmul.f32 %v3677, %v3679
    %v3681 = vadd.f32 %v3677, %v3680
    %vm3682 = vweird.f32 %v3615
    %vm3683 = vweird.f32 %v3677
    %vm3684 = vmor %vm3682, %vm3683
    %v3685 = vsel %vm3684, %v3677, %v3681
    %v3686 = vand.u32 2147483647, %v3615
    %vm3687 = vcmp.eq.f32.partialorder %v3686, 8.507059e+37
    %v3688 = vand.u32 %v3615, 2147483648
    %v3689 = vor.u32 1.1754944e-38, %v3688
    %v3690 = vsel %vm3687, %v3689, %v3685
    %v3691 = vmul.f32 1.0, %v3690
    %v3692 = vrcp.pop %v3616
    %v3693 = vmul.f32 %v3616, %v3692
    %v3694 = vsub.f32 1.0, %v3693
    %v3695 = vmul.f32 %v3692, %v3694
    %v3696 = vadd.f32 %v3692, %v3695
    %vm3697 = vweird.f32 %v3616
    %vm3698 = vweird.f32 %v3692
    %vm3699 = vmor %vm3697, %vm3698
    %v3700 = vsel %vm3699, %v3692, %v3696
    %v3701 = vand.u32 2147483647, %v3616
    %vm3702 = vcmp.eq.f32.partialorder %v3701, 8.507059e+37
    %v3703 = vand.u32 %v3616, 2147483648
    %v3704 = vor.u32 1.1754944e-38, %v3703
    %v3705 = vsel %vm3702, %v3704, %v3700
    %v3706 = vmul.f32 1.0, %v3705
    %v3707 = vmul.f32 %v3576, %v3631
    %v3708 = vmul.f32 %v3579, %v3646
    %v3709 = vmul.f32 %v3582, %v3661
    %v3710 = vmul.f32 %v3585, %v3676
    %v3711 = vmul.f32 %v3588, %v3691
    %v3712 = vmul.f32 %v3591, %v3706
    %v3713 = vld [vmem:[%s51] sm:$0xff]
    %v3714 = vld [vmem:[%s51 + $0x8] sm:$0xff]
    %v3715 = vld [vmem:[%s51 + $0x10] sm:$0xff]
    %v3716 = vld [vmem:[%s51 + $0x18] sm:$0xff]
    %v3717 = vld [vmem:[%s51 + $0x20] sm:$0xff]
    %v3718 = vld [vmem:[%s51 + $0x28] sm:$0xff]
    %v3719 = vld [vmem:[%s51 + $0x30] sm:$0xff]
    %v3720 = vld [vmem:[%s51 + $0x38] sm:$0xff]
    %v3721 = vld [vmem:[%s51 + $0x40] sm:$0xff]
    %v3722 = vld [vmem:[%s51 + $0x48] sm:$0xff]
    %v3723 = vld [vmem:[%s51 + $0x50] sm:$0xff]
    %v3724 = vld [vmem:[%s51 + $0x58] sm:$0xff]
    %v3725 = vld [vmem:[%s51 + $0x60] sm:$0xff]
    %v3726 = vld [vmem:[%s51 + $0x68] sm:$0xff]
    %v3727 = vld [vmem:[%s51 + $0x70] sm:$0xff]
    %v3728 = vld [vmem:[%s51 + $0x78] sm:$0xff]
    %3729 = vmatpush.msra.mxu0 %v3728
    %3730 = vmatpush.msra.mxu0 %v3727
    %3731 = vmatpush.msra.mxu0 %v3726
    %3732 = vmatpush.msra.mxu0 %v3725
    %3733 = vmatpush.msra.mxu0 %v3724
    %3734 = vmatpush.msra.mxu0 %v3723
    %3735 = vmatpush.msra.mxu0 %v3722
    %3736 = vmatpush.msra.mxu0 %v3721
    %3737 = vmatpush.msra.mxu0 %v3720
    %3738 = vmatpush.msra.mxu0 %v3719
    %3739 = vmatpush.msra.mxu0 %v3718
    %3740 = vmatpush.msra.mxu0 %v3717
    %3741 = vmatpush.msra.mxu0 %v3716
    %3742 = vmatpush.msra.mxu0 %v3715
    %3743 = vmatpush.msra.mxu0 %v3714
    %3744 = vmatpush.msra.mxu0 %v3713
    %3745 = vmatmul.f32.gmra.mxu0 %v3707
    %v3746 = vpop.f32.mrf.mxu0
    %v3747 = vadd.f32 0.0, %v3746
    %3748 = vmatmul.f32.gmra.mxu0 %v3708
    %v3749 = vpop.f32.mrf.mxu0
    %v3750 = vadd.f32 0.0, %v3749
    %3751 = vmatmul.f32.gmra.mxu0 %v3709
    %v3752 = vpop.f32.mrf.mxu0
    %v3753 = vadd.f32 0.0, %v3752
    %3754 = vmatmul.f32.gmra.mxu0 %v3710
    %v3755 = vpop.f32.mrf.mxu0
    %v3756 = vadd.f32 0.0, %v3755
    %3757 = vmatmul.f32.gmra.mxu0 %v3711
    %v3758 = vpop.f32.mrf.mxu0
    %v3759 = vadd.f32 0.0, %v3758
    %3760 = vmatmul.f32.gmra.mxu0 %v3712
    %v3761 = vpop.f32.mrf.mxu0
    %v3762 = vadd.f32 0.0, %v3761
    %3763 = vdwg.mxu0
    %v3764 = vadd.f32 %v3374, %v3747
    %v3765 = vadd.f32 %v3375, %v3750
    %v3766 = vadd.f32 %v3376, %v3753
    %v3767 = vadd.f32 %v3377, %v3756
    %v3768 = vadd.f32 %v3378, %v3759
    %v3769 = vadd.f32 %v3379, %v3762
    %v3770 = vld [vmem:[%s53] sm:$0x1]
    %v3772 = vperm.slane %v3770, 0
    %v3774 = vadd.f32 %v3764, %v3772
    %v3775 = vadd.f32 %v3765, %v3772
    %v3776 = vadd.f32 %v3766, %v3772
    %v3777 = vadd.f32 %v3767, %v3772
    %v3778 = vadd.f32 %v3768, %v3772
    %v3779 = vadd.f32 %v3769, %v3772
    %3780 = vst.msk [vmem:[#allocation20] sm:$0xff] %vm277, %v3774
    %3781 = vst.msk [vmem:[#allocation20 + $0x8] sm:$0xff] %vm277, %v3775
    %3782 = vst.msk [vmem:[#allocation20 + $0x10] sm:$0xff] %vm277, %v3776
    %3783 = vst.msk [vmem:[#allocation20 + $0x18] sm:$0xff] %vm277, %v3777
    %3784 = vst.msk [vmem:[#allocation20 + $0x20] sm:$0xff] %vm277, %v3778
    %3785 = vst.msk [vmem:[#allocation20 + $0x28] sm:$0xff] %vm277, %v3779
    // Predicated region
    $region150: #{tpu_custom_call.1} parent=1 // pred_check
      _
    $region151: #{tpu_custom_call.1} parent=1 // pred_check_branch
      %3787 = sbr.rel (0) target = $region153
    $region152: #{tpu_custom_call.1} parent=1 // pred_region
      %3789 = vsyncadd [#allocation5], 0
      %s3790 = sshll.u32 [#allocation20], 4
      %s3791 = int_to_ptr.vmem [resolvable:$true] %s3790
      %s3792 = sshll.u32 %s55, 4
      %s3793 = int_to_ptr.hbm [resolvable:$true] %s3792
      %3798 = dma.vmem_to_hbm [thread:$0]  %s3791, 768, %s3793, [#allocation5], 128, 128, 8
    $region153: #{tpu_custom_call.1} parent=1 // pred_fallthru
      _
    // Predicated region
    $region154: #{tpu_custom_call.1} parent=1 // pred_check
      _
    $region155: #{tpu_custom_call.1} parent=1 // pred_check_branch
      %3800 = sbr.rel (0) target = $region157
    $region156: #{tpu_custom_call.1} parent=1 // pred_region
      %3802 = vsyncadd [#allocation22], 0
      %s3803 = sshll.u32 [#allocation21], 4
      %s3804 = int_to_ptr.vmem [resolvable:$true] %s3803
      %s3805 = sshll.u32 %s57, 4
      %s3806 = int_to_ptr.hbm [resolvable:$true] %s3805
      %3811 = dma.vmem_to_hbm [thread:$0]  %s3804, 256, %s3806, [#allocation22], 128, 128, 8
    $region157: #{tpu_custom_call.1} parent=1 // pred_fallthru
      _
    // Predicated region
    $region158: #{tpu_custom_call.1} parent=1 // pred_check
      _
    $region159: #{tpu_custom_call.1} parent=1 // pred_check_branch
      %3813 = sbr.rel (0) target = $region161
    $region160: #{tpu_custom_call.1} parent=1 // pred_region
      %3815 = vsyncadd [#allocation22], 0
      %s3816 = sshll.u32 [#allocation23], 4
      %s3817 = int_to_ptr.vmem [resolvable:$true] %s3816
      %s3818 = sshll.u32 %s59, 4
      %s3819 = int_to_ptr.hbm [resolvable:$true] %s3818
      %3824 = dma.vmem_to_hbm [thread:$0]  %s3817, 256, %s3819, [#allocation22], 128, 128, 8
    $region161: #{tpu_custom_call.1} parent=1 // pred_fallthru
      _
    // Predicated region
    $region162: #{tpu_custom_call.1} parent=1 // pred_check
      _
    $region163: #{tpu_custom_call.1} parent=1 // pred_check_branch
      %3826 = sbr.rel (0) target = $region165
    $region164: #{tpu_custom_call.1} parent=1 // pred_region
      %3828 = dma.done [#allocation5], 768
    $region165: #{tpu_custom_call.1} parent=1 // pred_fallthru
      _
    // Predicated region
    $region166: #{tpu_custom_call.1} parent=1 // pred_check
      _
    $region167: #{tpu_custom_call.1} parent=1 // pred_check_branch
      %3830 = sbr.rel (0) target = $region169
    $region168: #{tpu_custom_call.1} parent=1 // pred_region
      %3832 = dma.done [#allocation22], 256
    $region169: #{tpu_custom_call.1} parent=1 // pred_fallthru
      _
    // Predicated region
    $region170: #{tpu_custom_call.1} parent=1 // pred_check
      _
    $region171: #{tpu_custom_call.1} parent=1 // pred_check_branch
      %3834 = sbr.rel (0) target = $region173
    $region172: #{tpu_custom_call.1} parent=1 // pred_region
      %3836 = dma.done [#allocation22], 256
    $region173: #{tpu_custom_call.1} parent=1 // pred_fallthru
      _
    %3837 = vsyncpa [#allocation4], 1
    %3838 = vsyncpa [#allocation9], 1
    %3839 = vsyncpa [#allocation12], 1
    %3840 = vsyncpa [#allocation15], 1
    %3841 = vsyncpa [#allocation18], 1
    %3842 = vsyncpa [#allocation5], 1
    %3843 = vsyncpa [#allocation22], 1
    %3844 = vsyncpa [#allocation6], 1

</llo_original>
